<compile_context>
chip_gen: v6e
topology: v6e:2x2x1
jax: 0.10.0
libtpu: 0.0.40
codegen_flags: <defaults>
</compile_context>

<pallas_src>
import math
import jax
import jax.numpy as jnp
from jax.experimental import pallas as pl
from jax.experimental.pallas import tpu as pltpu  # noqa: F401  (TPU backend)

# ---------------- model config (small, consistent with the module) ----------
VOCAB = 100
MAX_LEN = 16
PAD_ID = 0
N_LAYERS = 2
N_HEADS = 4
HIDDEN = 32
MLP = 4 * HIDDEN           # 128 -> already lane-dense
HEAD = HIDDEN // N_HEADS
B, S = 2, 8
G = B * N_HEADS            # batched attention "groups"
LANE = 128                 # lane-dense padded output width (>= VOCAB, >= 2)
EPS = 1e-5                 # nn.LayerNorm default


# ---------------- shared math helpers (used in-kernel and in reference) -----
def _layernorm(x, g, b):
    mean = jnp.mean(x, axis=-1, keepdims=True)
    var = jnp.mean((x - mean) ** 2, axis=-1, keepdims=True)
    return (x - mean) * jax.lax.rsqrt(var + EPS) * g + b


def _gelu(x):
    # exact (erf-based) GELU, matching F.gelu default
    return 0.5 * x * (1.0 + jax.lax.erf(x * (1.0 / math.sqrt(2.0))))


# ---------------- fused kernel ------------------------------------------------
def bert_kernel(tok_ref, emb_ref,
                emb_g_ref, emb_b_ref,
                qkv_w_ref, out_w_ref,
                ln1_g_ref, ln1_b_ref, ln2_g_ref, ln2_b_ref,
                p1_w_ref, p1_b_ref, p2_w_ref, p2_b_ref,
                nsp_w_ref, nsp_b_ref, mlm_w_ref, mlm_b_ref,
                nsp_ref, mlm_ref):
    # ---- embeddings were pre-summed in the wrapper; LayerNorm here ----------
    x = _layernorm(emb_ref[...], emb_g_ref[...], emb_b_ref[...])       # (B*S, H)

    # ---- pad mask from token ids, built & broadcast ONCE: (G, S, S) ---------
    padf = jnp.where(tok_ref[...] == PAD_ID, 1.0, 0.0)                  # (B, S)
    pad_rows = jnp.concatenate(
        [padf[b:b + 1] for b in range(B) for _ in range(N_HEADS)], axis=0)  # (G, S)
    key_is_pad = jnp.broadcast_to(pad_rows[:, None, :], (G, S, S)) > 0.5

    scale = 1.0 / math.sqrt(HEAD)

    for l in range(N_LAYERS):                          # static unroll (2 layers)
        # ---- attention sublayer: x + out_proj(attn(norm(x))) ----------------
        h = _layernorm(x, ln1_g_ref[l], ln1_b_ref[l])
        qkv = jnp.dot(h, qkv_w_ref[l], preferred_element_type=jnp.float32)  # (B*S, 3H)

        def head_groups(col0):
            # one 2-D (S, HEAD) tile per (batch, head) pair -> (G, S, HEAD)
            return jnp.stack(
                [qkv[b * S:(b + 1) * S, col0 + hd * HEAD: col0 + (hd + 1) * HEAD]
                 for b in range(B) for hd in range(N_HEADS)])

        qg = head_groups(0)
        kg = head_groups(HIDDEN)
        vg = head_groups(2 * HIDDEN)

        sc = jnp.einsum('gqd,gkd->gqk', qg, kg,
                        preferred_element_type=jnp.float32) * scale     # (G, S, S)
        sc = jnp.where(key_is_pad, jnp.float32(-1e9), sc)               # masked_fill
        sc = sc - jnp.max(sc, axis=-1, keepdims=True)
        p = jnp.exp(sc)
        w = p / jnp.sum(p, axis=-1, keepdims=True)                      # softmax(keys)
        ctx = jnp.einsum('gqk,gkd->gqd', w, vg,
                         preferred_element_type=jnp.float32)            # (G, S, HEAD)

        # heads back onto the lane axis -> (B*S, H), then ONE out_proj matmul
        ctx2 = jnp.concatenate(
            [jnp.concatenate([ctx[b * N_HEADS + hd] for hd in range(N_HEADS)],
                             axis=-1)
             for b in range(B)], axis=0)                                # (B*S, H)
        x = x + jnp.dot(ctx2, out_w_ref[l], preferred_element_type=jnp.float32)

        # ---- feed-forward sublayer: x + proj2(gelu(proj1(norm(x)))) ---------
        h2 = _layernorm(x, ln2_g_ref[l], ln2_b_ref[l])
        m = jnp.dot(h2, p1_w_ref[l], preferred_element_type=jnp.float32) + p1_b_ref[l]
        m = _gelu(m)
        m = jnp.dot(m, p2_w_ref[l], preferred_element_type=jnp.float32) + p2_b_ref[l]
        x = x + m

    # ---- prediction heads (lane-padded to 128 -> unmasked stores) -----------
    mlm_ref[...] = (jnp.dot(x, mlm_w_ref[...], preferred_element_type=jnp.float32)
                    + mlm_b_ref[...])
    cls = jnp.concatenate([x[b * S:b * S + 1, :] for b in range(B)], axis=0)  # (B, H)
    nsp_ref[...] = (jnp.dot(cls, nsp_w_ref[...], preferred_element_type=jnp.float32)
                    + nsp_b_ref[...])


# ---------------- wrapper -----------------------------------------------------
def bert_for_pretraining(token_ids, seg_ids, params):
    # embedding lookups are gathers (glue, plain JAX); pre-sum so the kernel
    # takes a single activation input
    tok_e = params["tok_table"][token_ids]                       # (B, S, H)
    pos_e = params["pos_table"][:S][None, :, :]                  # (1, S, H)
    seg_e = params["seg_table"][seg_ids]                         # (B, S, H)
    emb = (tok_e + pos_e + seg_e).reshape(B * S, HIDDEN)

    nsp_p, mlm_p = pl.pallas_call(
        bert_kernel,
        out_shape=(jax.ShapeDtypeStruct((B, LANE), jnp.float32),
                   jax.ShapeDtypeStruct((B * S, LANE), jnp.float32)),
    )(token_ids.astype(jnp.int32), emb,
      params["emb_g"], params["emb_b"],
      params["qkv_w"], params["out_w"],
      params["ln1_g"], params["ln1_b"], params["ln2_g"], params["ln2_b"],
      params["p1_w"], params["p1_b"], params["p2_w"], params["p2_b"],
      params["nsp_w_p"], params["nsp_b_p"],
      params["mlm_w_p"], params["mlm_b_p"])

    pred_is_next = nsp_p[:, :2]                                  # (B, 2)
    pred_token_ids = mlm_p[:, :VOCAB].reshape(B, S, VOCAB)       # (B, S, VOCAB)
    return pred_is_next, pred_token_ids


# ---------------- parameters --------------------------------------------------
def init_params(key):
    kit = iter(jax.random.split(key, 16))

    def nrm(shape, scale=0.02):
        return (scale * jax.random.normal(next(kit), shape)).astype(jnp.float32)

    nsp_w = nrm((HIDDEN, 2))
    nsp_b = nrm((1, 2))
    mlm_w = nrm((HIDDEN, VOCAB))
    mlm_b = nrm((1, VOCAB))

    params = {
        "tok_table": nrm((VOCAB, HIDDEN)).at[PAD_ID].set(0.0),   # padding_idx row = 0
        "pos_table": nrm((MAX_LEN, HIDDEN)),
        "seg_table": nrm((2, HIDDEN)),
        "emb_g": jnp.ones((1, HIDDEN), jnp.float32),
        "emb_b": jnp.zeros((1, HIDDEN), jnp.float32),
        # per-layer weights stacked along a leading layer axis
        "qkv_w": nrm((N_LAYERS, HIDDEN, 3 * HIDDEN)),
        "out_w": nrm((N_LAYERS, HIDDEN, HIDDEN)),
        "ln1_g": jnp.ones((N_LAYERS, 1, HIDDEN), jnp.float32),
        "ln1_b": jnp.zeros((N_LAYERS, 1, HIDDEN), jnp.float32),
        "ln2_g": jnp.ones((N_LAYERS, 1, HIDDEN), jnp.float32),
        "ln2_b": jnp.zeros((N_LAYERS, 1, HIDDEN), jnp.float32),
        "p1_w": nrm((N_LAYERS, HIDDEN, MLP)),
        "p1_b": nrm((N_LAYERS, 1, MLP)),
        "p2_w": nrm((N_LAYERS, MLP, HIDDEN)),
        "p2_b": nrm((N_LAYERS, 1, HIDDEN)),
        # heads, zero-padded to 128 output lanes for lane-dense stores
        "nsp_w_p": jnp.zeros((HIDDEN, LANE), jnp.float32).at[:, :2].set(nsp_w),
        "nsp_b_p": jnp.zeros((1, LANE), jnp.float32).at[:, :2].set(nsp_b),
        "mlm_w_p": jnp.zeros((HIDDEN, LANE), jnp.float32).at[:, :VOCAB].set(mlm_w),
        "mlm_b_p": jnp.zeros((1, LANE), jnp.float32).at[:, :VOCAB].set(mlm_b),
    }
    return params


# ---------------- pure-JAX reference (same math, for a sanity check) ----------
def bert_reference(token_ids, seg_ids, p):
    x = p["tok_table"][token_ids] + p["pos_table"][:S][None] + p["seg_table"][seg_ids]
    x = _layernorm(x, p["emb_g"], p["emb_b"])
    pad = (token_ids == PAD_ID)[:, None, None, :]                # (B,1,1,S)
    for l in range(N_LAYERS):
        h = _layernorm(x, p["ln1_g"][l], p["ln1_b"][l])
        qkv = h @ p["qkv_w"][l]
        q, k, v = jnp.split(qkv, 3, axis=-1)
        q = q.reshape(B, S, N_HEADS, HEAD).transpose(0, 2, 1, 3)
        k = k.reshape(B, S, N_HEADS, HEAD).transpose(0, 2, 1, 3)
        v = v.reshape(B, S, N_HEADS, HEAD).transpose(0, 2, 1, 3)
        sc = jnp.einsum('bhqd,bhkd->bhqk', q, k) / math.sqrt(HEAD)
        sc = jnp.where(pad, -1e9, sc)
        w = jax.nn.softmax(sc, axis=-1)
        ctx = jnp.einsum('bhqk,bhkd->bhqd', w, v)
        ctx = ctx.transpose(0, 2, 1, 3).reshape(B, S, HIDDEN)
        x = x + ctx @ p["out_w"][l]
        h2 = _layernorm(x, p["ln2_g"][l], p["ln2_b"][l])
        m = _gelu(h2 @ p["p1_w"][l] + p["p1_b"][l])
        x = x + (m @ p["p2_w"][l] + p["p2_b"][l])
    nsp = x[:, 0, :] @ p["nsp_w_p"][:, :2] + p["nsp_b_p"][0, :2]
    mlm = x @ p["mlm_w_p"][:, :VOCAB] + p["mlm_b_p"][0, :VOCAB]
    return nsp, mlm


if __name__ == "__main__":
    key = jax.random.PRNGKey(0)
    k_tok, k_seg, k_param = jax.random.split(key, 3)

    token_ids = jax.random.randint(k_tok, (B, S), 1, VOCAB, dtype=jnp.int32)
    token_ids = token_ids.at[0, -2:].set(PAD_ID)   # some padding exercises the mask
    seg_ids = jax.random.randint(k_seg, (B, S), 0, 2, dtype=jnp.int32)

    params = init_params(k_param)

    pred_is_next, pred_token_ids = bert_for_pretraining(token_ids, seg_ids, params)
    jax.block_until_ready((pred_is_next, pred_token_ids))

    assert pred_is_next.shape == (B, 2)
    assert pred_token_ids.shape == (B, S, VOCAB)
    assert jnp.all(jnp.isfinite(pred_is_next)) and jnp.all(jnp.isfinite(pred_token_ids))

    # cross-check the fused kernel against a pure-JAX reference of the module
    ref_nsp, ref_mlm = bert_reference(token_ids, seg_ids, params)
    assert jnp.allclose(pred_is_next, ref_nsp, atol=1e-3, rtol=1e-3)
    assert jnp.allclose(pred_token_ids, ref_mlm, atol=1e-3, rtol=1e-3)

    print("KERNEL_OK")
</pallas_src>

<mosaic_0001>
module attributes {stable_mosaic.version = 11 : i64} {
  func.func @bert_kernel(%arg0: memref<2x8xi32, #tpu.memory_space<vmem>>, %arg1: memref<16x32xf32, #tpu.memory_space<vmem>>, %arg2: memref<1x32xf32, #tpu.memory_space<vmem>>, %arg3: memref<1x32xf32, #tpu.memory_space<vmem>>, %arg4: memref<2x32x96xf32, #tpu.memory_space<vmem>>, %arg5: memref<2x32x32xf32, #tpu.memory_space<vmem>>, %arg6: memref<2x1x32xf32, #tpu.memory_space<vmem>>, %arg7: memref<2x1x32xf32, #tpu.memory_space<vmem>>, %arg8: memref<2x1x32xf32, #tpu.memory_space<vmem>>, %arg9: memref<2x1x32xf32, #tpu.memory_space<vmem>>, %arg10: memref<2x32x128xf32, #tpu.memory_space<vmem>>, %arg11: memref<2x1x128xf32, #tpu.memory_space<vmem>>, %arg12: memref<2x128x32xf32, #tpu.memory_space<vmem>>, %arg13: memref<2x1x32xf32, #tpu.memory_space<vmem>>, %arg14: memref<32x128xf32, #tpu.memory_space<vmem>>, %arg15: memref<1x128xf32, #tpu.memory_space<vmem>>, %arg16: memref<32x128xf32, #tpu.memory_space<vmem>>, %arg17: memref<1x128xf32, #tpu.memory_space<vmem>>, %arg18: memref<2x128xf32, #tpu.memory_space<vmem>>, %arg19: memref<16x128xf32, #tpu.memory_space<vmem>>) attributes {dimension_semantics = [], scalar_prefetch = 0 : i64, scratch_operands = 0 : i64, tpu.core_type = #tpu.core_type<tc>} {
    %c0 = arith.constant 0 : index
    %c0_0 = arith.constant 0 : index
    %0 = vector.load %arg1[%c0, %c0_0] : memref<16x32xf32, #tpu.memory_space<vmem>>, vector<16x32xf32>
    %c0_1 = arith.constant 0 : index
    %c0_2 = arith.constant 0 : index
    %1 = vector.load %arg2[%c0_1, %c0_2] : memref<1x32xf32, #tpu.memory_space<vmem>>, vector<1x32xf32>
    %c0_3 = arith.constant 0 : index
    %c0_4 = arith.constant 0 : index
    %2 = vector.load %arg3[%c0_3, %c0_4] : memref<1x32xf32, #tpu.memory_space<vmem>>, vector<1x32xf32>
    %cst = arith.constant dense<0.000000e+00> : vector<16xf32>
    %3 = vector.multi_reduction <add>, %0, %cst [1] : vector<16x32xf32> to vector<16xf32>
    %4 = vector.shape_cast %3 : vector<16xf32> to vector<16x1xf32>
    %cst_5 = arith.constant 3.200000e+01 : f32
    %5 = vector.broadcast %cst_5 : f32 to vector<16x1xf32>
    %6 = arith.divf %4, %5 : vector<16x1xf32>
    %7 = vector.broadcast %6 : vector<16x1xf32> to vector<16x32xf32>
    %8 = arith.subf %0, %7 : vector<16x32xf32>
    %9 = arith.mulf %8, %8 : vector<16x32xf32>
    %cst_6 = arith.constant dense<0.000000e+00> : vector<16xf32>
    %10 = vector.multi_reduction <add>, %9, %cst_6 [1] : vector<16x32xf32> to vector<16xf32>
    %11 = vector.shape_cast %10 : vector<16xf32> to vector<16x1xf32>
    %cst_7 = arith.constant 3.200000e+01 : f32
    %12 = vector.broadcast %cst_7 : f32 to vector<16x1xf32>
    %13 = arith.divf %11, %12 : vector<16x1xf32>
    %14 = vector.broadcast %6 : vector<16x1xf32> to vector<16x32xf32>
    %15 = arith.subf %0, %14 : vector<16x32xf32>
    %cst_8 = arith.constant 9.99999974E-6 : f32
    %16 = vector.broadcast %cst_8 : f32 to vector<16x1xf32>
    %17 = arith.addf %13, %16 : vector<16x1xf32>
    %18 = math.rsqrt %17 : vector<16x1xf32>
    %19 = vector.broadcast %18 : vector<16x1xf32> to vector<16x32xf32>
    %20 = arith.mulf %15, %19 : vector<16x32xf32>
    %21 = vector.broadcast %1 : vector<1x32xf32> to vector<16x32xf32>
    %22 = arith.mulf %20, %21 : vector<16x32xf32>
    %23 = vector.broadcast %2 : vector<1x32xf32> to vector<16x32xf32>
    %24 = arith.addf %22, %23 : vector<16x32xf32>
    %c0_9 = arith.constant 0 : index
    %c0_10 = arith.constant 0 : index
    %25 = vector.load %arg0[%c0_9, %c0_10] : memref<2x8xi32, #tpu.memory_space<vmem>>, vector<2x8xi32>
    %c0_i32 = arith.constant 0 : i32
    %26 = vector.broadcast %c0_i32 : i32 to vector<2x8xi32>
    %27 = arith.cmpi eq, %25, %26 : vector<2x8xi32>
    %cst_11 = arith.constant 1.000000e+00 : f32
    %cst_12 = arith.constant 0.000000e+00 : f32
    %28 = vector.broadcast %cst_11 : f32 to vector<2x8xf32>
    %29 = vector.broadcast %cst_12 : f32 to vector<2x8xf32>
    %30 = arith.select %27, %28, %29 : vector<2x8xi1>, vector<2x8xf32>
    %31 = vector.extract_strided_slice %30 {offsets = [0, 0], sizes = [1, 8], strides = [1, 1]} : vector<2x8xf32> to vector<1x8xf32>
    %32 = vector.extract_strided_slice %30 {offsets = [0, 0], sizes = [1, 8], strides = [1, 1]} : vector<2x8xf32> to vector<1x8xf32>
    %33 = vector.extract_strided_slice %30 {offsets = [0, 0], sizes = [1, 8], strides = [1, 1]} : vector<2x8xf32> to vector<1x8xf32>
    %34 = vector.extract_strided_slice %30 {offsets = [0, 0], sizes = [1, 8], strides = [1, 1]} : vector<2x8xf32> to vector<1x8xf32>
    %35 = vector.extract_strided_slice %30 {offsets = [1, 0], sizes = [1, 8], strides = [1, 1]} : vector<2x8xf32> to vector<1x8xf32>
    %36 = vector.extract_strided_slice %30 {offsets = [1, 0], sizes = [1, 8], strides = [1, 1]} : vector<2x8xf32> to vector<1x8xf32>
    %37 = vector.extract_strided_slice %30 {offsets = [1, 0], sizes = [1, 8], strides = [1, 1]} : vector<2x8xf32> to vector<1x8xf32>
    %38 = vector.extract_strided_slice %30 {offsets = [1, 0], sizes = [1, 8], strides = [1, 1]} : vector<2x8xf32> to vector<1x8xf32>
    %39 = tpu.concatenate %31, %32, %33, %34, %35, %36, %37, %38 in 0 : vector<1x8xf32>, vector<1x8xf32>, vector<1x8xf32>, vector<1x8xf32>, vector<1x8xf32>, vector<1x8xf32>, vector<1x8xf32>, vector<1x8xf32> -> vector<8x8xf32>
    %40 = vector.shape_cast %39 : vector<8x8xf32> to vector<8x1x8xf32>
    %41 = vector.shape_cast %40 : vector<8x1x8xf32> to vector<8x1x8xf32>
    %42 = vector.broadcast %41 : vector<8x1x8xf32> to vector<8x8x8xf32>
    %cst_13 = arith.constant 5.000000e-01 : f32
    %43 = vector.broadcast %cst_13 : f32 to vector<8x8x8xf32>
    %44 = arith.cmpf ogt, %42, %43 : vector<8x8x8xf32>
    %c0_14 = arith.constant 0 : index
    %c0_15 = arith.constant 0 : index
    %c0_16 = arith.constant 0 : index
    %45 = vector.load %arg6[%c0_14, %c0_15, %c0_16] : memref<2x1x32xf32, #tpu.memory_space<vmem>>, vector<1x1x32xf32>
    %46 = vector.shape_cast %45 : vector<1x1x32xf32> to vector<1x32xf32>
    %c0_17 = arith.constant 0 : index
    %c0_18 = arith.constant 0 : index
    %c0_19 = arith.constant 0 : index
    %47 = vector.load %arg7[%c0_17, %c0_18, %c0_19] : memref<2x1x32xf32, #tpu.memory_space<vmem>>, vector<1x1x32xf32>
    %48 = vector.shape_cast %47 : vector<1x1x32xf32> to vector<1x32xf32>
    %cst_20 = arith.constant dense<0.000000e+00> : vector<16xf32>
    %49 = vector.multi_reduction <add>, %24, %cst_20 [1] : vector<16x32xf32> to vector<16xf32>
    %50 = vector.shape_cast %49 : vector<16xf32> to vector<16x1xf32>
    %cst_21 = arith.constant 3.200000e+01 : f32
    %51 = vector.broadcast %cst_21 : f32 to vector<16x1xf32>
    %52 = arith.divf %50, %51 : vector<16x1xf32>
    %53 = vector.broadcast %52 : vector<16x1xf32> to vector<16x32xf32>
    %54 = arith.subf %24, %53 : vector<16x32xf32>
    %55 = arith.mulf %54, %54 : vector<16x32xf32>
    %cst_22 = arith.constant dense<0.000000e+00> : vector<16xf32>
    %56 = vector.multi_reduction <add>, %55, %cst_22 [1] : vector<16x32xf32> to vector<16xf32>
    %57 = vector.shape_cast %56 : vector<16xf32> to vector<16x1xf32>
    %cst_23 = arith.constant 3.200000e+01 : f32
    %58 = vector.broadcast %cst_23 : f32 to vector<16x1xf32>
    %59 = arith.divf %57, %58 : vector<16x1xf32>
    %60 = vector.broadcast %52 : vector<16x1xf32> to vector<16x32xf32>
    %61 = arith.subf %24, %60 : vector<16x32xf32>
    %cst_24 = arith.constant 9.99999974E-6 : f32
    %62 = vector.broadcast %cst_24 : f32 to vector<16x1xf32>
    %63 = arith.addf %59, %62 : vector<16x1xf32>
    %64 = math.rsqrt %63 : vector<16x1xf32>
    %65 = vector.broadcast %64 : vector<16x1xf32> to vector<16x32xf32>
    %66 = arith.mulf %61, %65 : vector<16x32xf32>
    %67 = vector.broadcast %46 : vector<1x32xf32> to vector<16x32xf32>
    %68 = arith.mulf %66, %67 : vector<16x32xf32>
    %69 = vector.broadcast %48 : vector<1x32xf32> to vector<16x32xf32>
    %70 = arith.addf %68, %69 : vector<16x32xf32>
    %c0_25 = arith.constant 0 : index
    %c0_26 = arith.constant 0 : index
    %c0_27 = arith.constant 0 : index
    %71 = vector.load %arg4[%c0_25, %c0_26, %c0_27] : memref<2x32x96xf32, #tpu.memory_space<vmem>>, vector<1x32x96xf32>
    %72 = vector.shape_cast %71 : vector<1x32x96xf32> to vector<32x96xf32>
    %cst_28 = arith.constant dense<0.000000e+00> : vector<16x96xf32>
    %73 = tpu.matmul %70, %72, %cst_28 {dimension_numbers = #tpu.dot_dimension_numbers<[1], [0], [0], [1], [0, 0, 1, 1], [], []>} : vector<16x32xf32>, vector<32x96xf32>, vector<16x96xf32> -> vector<16x96xf32>
    %74 = vector.extract_strided_slice %73 {offsets = [0, 0], sizes = [8, 8], strides = [1, 1]} : vector<16x96xf32> to vector<8x8xf32>
    %75 = vector.extract_strided_slice %73 {offsets = [0, 8], sizes = [8, 8], strides = [1, 1]} : vector<16x96xf32> to vector<8x8xf32>
    %76 = vector.extract_strided_slice %73 {offsets = [0, 16], sizes = [8, 8], strides = [1, 1]} : vector<16x96xf32> to vector<8x8xf32>
    %77 = vector.extract_strided_slice %73 {offsets = [0, 24], sizes = [8, 8], strides = [1, 1]} : vector<16x96xf32> to vector<8x8xf32>
    %78 = vector.extract_strided_slice %73 {offsets = [8, 0], sizes = [8, 8], strides = [1, 1]} : vector<16x96xf32> to vector<8x8xf32>
    %79 = vector.extract_strided_slice %73 {offsets = [8, 8], sizes = [8, 8], strides = [1, 1]} : vector<16x96xf32> to vector<8x8xf32>
    %80 = vector.extract_strided_slice %73 {offsets = [8, 16], sizes = [8, 8], strides = [1, 1]} : vector<16x96xf32> to vector<8x8xf32>
    %81 = vector.extract_strided_slice %73 {offsets = [8, 24], sizes = [8, 8], strides = [1, 1]} : vector<16x96xf32> to vector<8x8xf32>
    %82 = vector.shape_cast %74 : vector<8x8xf32> to vector<1x8x8xf32>
    %83 = vector.shape_cast %75 : vector<8x8xf32> to vector<1x8x8xf32>
    %84 = vector.shape_cast %76 : vector<8x8xf32> to vector<1x8x8xf32>
    %85 = vector.shape_cast %77 : vector<8x8xf32> to vector<1x8x8xf32>
    %86 = vector.shape_cast %78 : vector<8x8xf32> to vector<1x8x8xf32>
    %87 = vector.shape_cast %79 : vector<8x8xf32> to vector<1x8x8xf32>
    %88 = vector.shape_cast %80 : vector<8x8xf32> to vector<1x8x8xf32>
    %89 = vector.shape_cast %81 : vector<8x8xf32> to vector<1x8x8xf32>
    %90 = tpu.concatenate %82, %83, %84, %85, %86, %87, %88, %89 in 0 : vector<1x8x8xf32>, vector<1x8x8xf32>, vector<1x8x8xf32>, vector<1x8x8xf32>, vector<1x8x8xf32>, vector<1x8x8xf32>, vector<1x8x8xf32>, vector<1x8x8xf32> -> vector<8x8x8xf32>
    %91 = vector.extract_strided_slice %73 {offsets = [0, 32], sizes = [8, 8], strides = [1, 1]} : vector<16x96xf32> to vector<8x8xf32>
    %92 = vector.extract_strided_slice %73 {offsets = [0, 40], sizes = [8, 8], strides = [1, 1]} : vector<16x96xf32> to vector<8x8xf32>
    %93 = vector.extract_strided_slice %73 {offsets = [0, 48], sizes = [8, 8], strides = [1, 1]} : vector<16x96xf32> to vector<8x8xf32>
    %94 = vector.extract_strided_slice %73 {offsets = [0, 56], sizes = [8, 8], strides = [1, 1]} : vector<16x96xf32> to vector<8x8xf32>
    %95 = vector.extract_strided_slice %73 {offsets = [8, 32], sizes = [8, 8], strides = [1, 1]} : vector<16x96xf32> to vector<8x8xf32>
    %96 = vector.extract_strided_slice %73 {offsets = [8, 40], sizes = [8, 8], strides = [1, 1]} : vector<16x96xf32> to vector<8x8xf32>
    %97 = vector.extract_strided_slice %73 {offsets = [8, 48], sizes = [8, 8], strides = [1, 1]} : vector<16x96xf32> to vector<8x8xf32>
    %98 = vector.extract_strided_slice %73 {offsets = [8, 56], sizes = [8, 8], strides = [1, 1]} : vector<16x96xf32> to vector<8x8xf32>
    %99 = vector.shape_cast %91 : vector<8x8xf32> to vector<1x8x8xf32>
    %100 = vector.shape_cast %92 : vector<8x8xf32> to vector<1x8x8xf32>
    %101 = vector.shape_cast %93 : vector<8x8xf32> to vector<1x8x8xf32>
    %102 = vector.shape_cast %94 : vector<8x8xf32> to vector<1x8x8xf32>
    %103 = vector.shape_cast %95 : vector<8x8xf32> to vector<1x8x8xf32>
    %104 = vector.shape_cast %96 : vector<8x8xf32> to vector<1x8x8xf32>
    %105 = vector.shape_cast %97 : vector<8x8xf32> to vector<1x8x8xf32>
    %106 = vector.shape_cast %98 : vector<8x8xf32> to vector<1x8x8xf32>
    %107 = tpu.concatenate %99, %100, %101, %102, %103, %104, %105, %106 in 0 : vector<1x8x8xf32>, vector<1x8x8xf32>, vector<1x8x8xf32>, vector<1x8x8xf32>, vector<1x8x8xf32>, vector<1x8x8xf32>, vector<1x8x8xf32>, vector<1x8x8xf32> -> vector<8x8x8xf32>
    %108 = vector.extract_strided_slice %73 {offsets = [0, 64], sizes = [8, 8], strides = [1, 1]} : vector<16x96xf32> to vector<8x8xf32>
    %109 = vector.extract_strided_slice %73 {offsets = [0, 72], sizes = [8, 8], strides = [1, 1]} : vector<16x96xf32> to vector<8x8xf32>
    %110 = vector.extract_strided_slice %73 {offsets = [0, 80], sizes = [8, 8], strides = [1, 1]} : vector<16x96xf32> to vector<8x8xf32>
    %111 = vector.extract_strided_slice %73 {offsets = [0, 88], sizes = [8, 8], strides = [1, 1]} : vector<16x96xf32> to vector<8x8xf32>
    %112 = vector.extract_strided_slice %73 {offsets = [8, 64], sizes = [8, 8], strides = [1, 1]} : vector<16x96xf32> to vector<8x8xf32>
    %113 = vector.extract_strided_slice %73 {offsets = [8, 72], sizes = [8, 8], strides = [1, 1]} : vector<16x96xf32> to vector<8x8xf32>
    %114 = vector.extract_strided_slice %73 {offsets = [8, 80], sizes = [8, 8], strides = [1, 1]} : vector<16x96xf32> to vector<8x8xf32>
    %115 = vector.extract_strided_slice %73 {offsets = [8, 88], sizes = [8, 8], strides = [1, 1]} : vector<16x96xf32> to vector<8x8xf32>
    %116 = vector.shape_cast %108 : vector<8x8xf32> to vector<1x8x8xf32>
    %117 = vector.shape_cast %109 : vector<8x8xf32> to vector<1x8x8xf32>
    %118 = vector.shape_cast %110 : vector<8x8xf32> to vector<1x8x8xf32>
    %119 = vector.shape_cast %111 : vector<8x8xf32> to vector<1x8x8xf32>
    %120 = vector.shape_cast %112 : vector<8x8xf32> to vector<1x8x8xf32>
    %121 = vector.shape_cast %113 : vector<8x8xf32> to vector<1x8x8xf32>
    %122 = vector.shape_cast %114 : vector<8x8xf32> to vector<1x8x8xf32>
    %123 = vector.shape_cast %115 : vector<8x8xf32> to vector<1x8x8xf32>
    %124 = tpu.concatenate %116, %117, %118, %119, %120, %121, %122, %123 in 0 : vector<1x8x8xf32>, vector<1x8x8xf32>, vector<1x8x8xf32>, vector<1x8x8xf32>, vector<1x8x8xf32>, vector<1x8x8xf32>, vector<1x8x8xf32>, vector<1x8x8xf32> -> vector<8x8x8xf32>
    "tpu.trace_start"() <{level = 10 : i32, message = "gqd,gkd->gqk"}> : () -> ()
    %cst_29 = arith.constant dense<0.000000e+00> : vector<8x8x8xf32>
    %125 = tpu.matmul %90, %107, %cst_29 {dimension_numbers = #tpu.dot_dimension_numbers<[2], [2], [1], [1], [0, 0, 0, 1, 1, 1], [0], [0]>} : vector<8x8x8xf32>, vector<8x8x8xf32>, vector<8x8x8xf32> -> vector<8x8x8xf32>
    "tpu.trace_stop"() : () -> ()
    %cst_30 = arith.constant 0.353553385 : f32
    %126 = vector.broadcast %cst_30 : f32 to vector<8x8x8xf32>
    %127 = arith.mulf %125, %126 : vector<8x8x8xf32>
    %cst_31 = arith.constant -1.000000e+09 : f32
    %128 = vector.broadcast %cst_31 : f32 to vector<8x8x8xf32>
    %129 = arith.select %44, %128, %127 : vector<8x8x8xi1>, vector<8x8x8xf32>
    %cst_32 = arith.constant dense<0xFF800000> : vector<8x8xf32>
    %130 = vector.multi_reduction <maximumf>, %129, %cst_32 [2] : vector<8x8x8xf32> to vector<8x8xf32>
    %131 = vector.shape_cast %130 : vector<8x8xf32> to vector<8x8x1xf32>
    %132 = vector.broadcast %131 : vector<8x8x1xf32> to vector<8x8x8xf32>
    %133 = arith.subf %129, %132 : vector<8x8x8xf32>
    %134 = math.exp %133 : vector<8x8x8xf32>
    %cst_33 = arith.constant dense<0.000000e+00> : vector<8x8xf32>
    %135 = vector.multi_reduction <add>, %134, %cst_33 [2] : vector<8x8x8xf32> to vector<8x8xf32>
    %136 = vector.shape_cast %135 : vector<8x8xf32> to vector<8x8x1xf32>
    %137 = vector.broadcast %136 : vector<8x8x1xf32> to vector<8x8x8xf32>
    %138 = arith.divf %134, %137 : vector<8x8x8xf32>
    "tpu.trace_start"() <{level = 10 : i32, message = "gqk,gkd->gqd"}> : () -> ()
    %cst_34 = arith.constant dense<0.000000e+00> : vector<8x8x8xf32>
    %139 = tpu.matmul %138, %124, %cst_34 {dimension_numbers = #tpu.dot_dimension_numbers<[2], [1], [1], [2], [0, 0, 0, 1, 1, 2], [0], [0]>} : vector<8x8x8xf32>, vector<8x8x8xf32>, vector<8x8x8xf32> -> vector<8x8x8xf32>
    "tpu.trace_stop"() : () -> ()
    %140 = vector.extract_strided_slice %139 {offsets = [0, 0, 0], sizes = [1, 8, 8], strides = [1, 1, 1]} : vector<8x8x8xf32> to vector<1x8x8xf32>
    %141 = vector.shape_cast %140 : vector<1x8x8xf32> to vector<8x8xf32>
    %142 = vector.extract_strided_slice %139 {offsets = [1, 0, 0], sizes = [1, 8, 8], strides = [1, 1, 1]} : vector<8x8x8xf32> to vector<1x8x8xf32>
    %143 = vector.shape_cast %142 : vector<1x8x8xf32> to vector<8x8xf32>
    %144 = vector.extract_strided_slice %139 {offsets = [2, 0, 0], sizes = [1, 8, 8], strides = [1, 1, 1]} : vector<8x8x8xf32> to vector<1x8x8xf32>
    %145 = vector.shape_cast %144 : vector<1x8x8xf32> to vector<8x8xf32>
    %146 = vector.extract_strided_slice %139 {offsets = [3, 0, 0], sizes = [1, 8, 8], strides = [1, 1, 1]} : vector<8x8x8xf32> to vector<1x8x8xf32>
    %147 = vector.shape_cast %146 : vector<1x8x8xf32> to vector<8x8xf32>
    %148 = tpu.concatenate %141, %143, %145, %147 in 1 : vector<8x8xf32>, vector<8x8xf32>, vector<8x8xf32>, vector<8x8xf32> -> vector<8x32xf32>
    %149 = vector.extract_strided_slice %139 {offsets = [4, 0, 0], sizes = [1, 8, 8], strides = [1, 1, 1]} : vector<8x8x8xf32> to vector<1x8x8xf32>
    %150 = vector.shape_cast %149 : vector<1x8x8xf32> to vector<8x8xf32>
    %151 = vector.extract_strided_slice %139 {offsets = [5, 0, 0], sizes = [1, 8, 8], strides = [1, 1, 1]} : vector<8x8x8xf32> to vector<1x8x8xf32>
    %152 = vector.shape_cast %151 : vector<1x8x8xf32> to vector<8x8xf32>
    %153 = vector.extract_strided_slice %139 {offsets = [6, 0, 0], sizes = [1, 8, 8], strides = [1, 1, 1]} : vector<8x8x8xf32> to vector<1x8x8xf32>
    %154 = vector.shape_cast %153 : vector<1x8x8xf32> to vector<8x8xf32>
    %155 = vector.extract_strided_slice %139 {offsets = [7, 0, 0], sizes = [1, 8, 8], strides = [1, 1, 1]} : vector<8x8x8xf32> to vector<1x8x8xf32>
    %156 = vector.shape_cast %155 : vector<1x8x8xf32> to vector<8x8xf32>
    %157 = tpu.concatenate %150, %152, %154, %156 in 1 : vector<8x8xf32>, vector<8x8xf32>, vector<8x8xf32>, vector<8x8xf32> -> vector<8x32xf32>
    %158 = tpu.concatenate %148, %157 in 0 : vector<8x32xf32>, vector<8x32xf32> -> vector<16x32xf32>
    %c0_35 = arith.constant 0 : index
    %c0_36 = arith.constant 0 : index
    %c0_37 = arith.constant 0 : index
    %159 = vector.load %arg5[%c0_35, %c0_36, %c0_37] : memref<2x32x32xf32, #tpu.memory_space<vmem>>, vector<1x32x32xf32>
    %160 = vector.shape_cast %159 : vector<1x32x32xf32> to vector<32x32xf32>
    %cst_38 = arith.constant dense<0.000000e+00> : vector<16x32xf32>
    %161 = tpu.matmul %158, %160, %cst_38 {dimension_numbers = #tpu.dot_dimension_numbers<[1], [0], [0], [1], [0, 0, 1, 1], [], []>} : vector<16x32xf32>, vector<32x32xf32>, vector<16x32xf32> -> vector<16x32xf32>
    %162 = arith.addf %24, %161 : vector<16x32xf32>
    %c0_39 = arith.constant 0 : index
    %c0_40 = arith.constant 0 : index
    %c0_41 = arith.constant 0 : index
    %163 = vector.load %arg8[%c0_39, %c0_40, %c0_41] : memref<2x1x32xf32, #tpu.memory_space<vmem>>, vector<1x1x32xf32>
    %164 = vector.shape_cast %163 : vector<1x1x32xf32> to vector<1x32xf32>
    %c0_42 = arith.constant 0 : index
    %c0_43 = arith.constant 0 : index
    %c0_44 = arith.constant 0 : index
    %165 = vector.load %arg9[%c0_42, %c0_43, %c0_44] : memref<2x1x32xf32, #tpu.memory_space<vmem>>, vector<1x1x32xf32>
    %166 = vector.shape_cast %165 : vector<1x1x32xf32> to vector<1x32xf32>
    %cst_45 = arith.constant dense<0.000000e+00> : vector<16xf32>
    %167 = vector.multi_reduction <add>, %162, %cst_45 [1] : vector<16x32xf32> to vector<16xf32>
    %168 = vector.shape_cast %167 : vector<16xf32> to vector<16x1xf32>
    %cst_46 = arith.constant 3.200000e+01 : f32
    %169 = vector.broadcast %cst_46 : f32 to vector<16x1xf32>
    %170 = arith.divf %168, %169 : vector<16x1xf32>
    %171 = vector.broadcast %170 : vector<16x1xf32> to vector<16x32xf32>
    %172 = arith.subf %162, %171 : vector<16x32xf32>
    %173 = arith.mulf %172, %172 : vector<16x32xf32>
    %cst_47 = arith.constant dense<0.000000e+00> : vector<16xf32>
    %174 = vector.multi_reduction <add>, %173, %cst_47 [1] : vector<16x32xf32> to vector<16xf32>
    %175 = vector.shape_cast %174 : vector<16xf32> to vector<16x1xf32>
    %cst_48 = arith.constant 3.200000e+01 : f32
    %176 = vector.broadcast %cst_48 : f32 to vector<16x1xf32>
    %177 = arith.divf %175, %176 : vector<16x1xf32>
    %178 = vector.broadcast %170 : vector<16x1xf32> to vector<16x32xf32>
    %179 = arith.subf %162, %178 : vector<16x32xf32>
    %cst_49 = arith.constant 9.99999974E-6 : f32
    %180 = vector.broadcast %cst_49 : f32 to vector<16x1xf32>
    %181 = arith.addf %177, %180 : vector<16x1xf32>
    %182 = math.rsqrt %181 : vector<16x1xf32>
    %183 = vector.broadcast %182 : vector<16x1xf32> to vector<16x32xf32>
    %184 = arith.mulf %179, %183 : vector<16x32xf32>
    %185 = vector.broadcast %164 : vector<1x32xf32> to vector<16x32xf32>
    %186 = arith.mulf %184, %185 : vector<16x32xf32>
    %187 = vector.broadcast %166 : vector<1x32xf32> to vector<16x32xf32>
    %188 = arith.addf %186, %187 : vector<16x32xf32>
    %c0_50 = arith.constant 0 : index
    %c0_51 = arith.constant 0 : index
    %c0_52 = arith.constant 0 : index
    %189 = vector.load %arg10[%c0_50, %c0_51, %c0_52] : memref<2x32x128xf32, #tpu.memory_space<vmem>>, vector<1x32x128xf32>
    %190 = vector.shape_cast %189 : vector<1x32x128xf32> to vector<32x128xf32>
    %cst_53 = arith.constant dense<0.000000e+00> : vector<16x128xf32>
    %191 = tpu.matmul %188, %190, %cst_53 {dimension_numbers = #tpu.dot_dimension_numbers<[1], [0], [0], [1], [0, 0, 1, 1], [], []>} : vector<16x32xf32>, vector<32x128xf32>, vector<16x128xf32> -> vector<16x128xf32>
    %c0_54 = arith.constant 0 : index
    %c0_55 = arith.constant 0 : index
    %c0_56 = arith.constant 0 : index
    %192 = vector.load %arg11[%c0_54, %c0_55, %c0_56] : memref<2x1x128xf32, #tpu.memory_space<vmem>>, vector<1x1x128xf32>
    %193 = vector.shape_cast %192 : vector<1x1x128xf32> to vector<1x128xf32>
    %194 = vector.broadcast %193 : vector<1x128xf32> to vector<16x128xf32>
    %195 = arith.addf %191, %194 : vector<16x128xf32>
    %cst_57 = arith.constant 5.000000e-01 : f32
    %196 = vector.broadcast %cst_57 : f32 to vector<16x128xf32>
    %197 = arith.mulf %196, %195 : vector<16x128xf32>
    %cst_58 = arith.constant 0.707106769 : f32
    %198 = vector.broadcast %cst_58 : f32 to vector<16x128xf32>
    %199 = arith.mulf %195, %198 : vector<16x128xf32>
    %200 = math.erf %199 : vector<16x128xf32>
    %cst_59 = arith.constant 1.000000e+00 : f32
    %201 = vector.broadcast %cst_59 : f32 to vector<16x128xf32>
    %202 = arith.addf %201, %200 : vector<16x128xf32>
    %203 = arith.mulf %197, %202 : vector<16x128xf32>
    %c0_60 = arith.constant 0 : index
    %c0_61 = arith.constant 0 : index
    %c0_62 = arith.constant 0 : index
    %204 = vector.load %arg12[%c0_60, %c0_61, %c0_62] : memref<2x128x32xf32, #tpu.memory_space<vmem>>, vector<1x128x32xf32>
    %205 = vector.shape_cast %204 : vector<1x128x32xf32> to vector<128x32xf32>
    %cst_63 = arith.constant dense<0.000000e+00> : vector<16x32xf32>
    %206 = tpu.matmul %203, %205, %cst_63 {dimension_numbers = #tpu.dot_dimension_numbers<[1], [0], [0], [1], [0, 0, 1, 1], [], []>} : vector<16x128xf32>, vector<128x32xf32>, vector<16x32xf32> -> vector<16x32xf32>
    %c0_64 = arith.constant 0 : index
    %c0_65 = arith.constant 0 : index
    %c0_66 = arith.constant 0 : index
    %207 = vector.load %arg13[%c0_64, %c0_65, %c0_66] : memref<2x1x32xf32, #tpu.memory_space<vmem>>, vector<1x1x32xf32>
    %208 = vector.shape_cast %207 : vector<1x1x32xf32> to vector<1x32xf32>
    %209 = vector.broadcast %208 : vector<1x32xf32> to vector<16x32xf32>
    %210 = arith.addf %206, %209 : vector<16x32xf32>
    %211 = arith.addf %162, %210 : vector<16x32xf32>
    %c1 = arith.constant 1 : index
    %c0_67 = arith.constant 0 : index
    %c0_68 = arith.constant 0 : index
    %212 = vector.load %arg6[%c1, %c0_67, %c0_68] : memref<2x1x32xf32, #tpu.memory_space<vmem>>, vector<1x1x32xf32>
    %213 = vector.shape_cast %212 : vector<1x1x32xf32> to vector<1x32xf32>
    %c1_69 = arith.constant 1 : index
    %c0_70 = arith.constant 0 : index
    %c0_71 = arith.constant 0 : index
    %214 = vector.load %arg7[%c1_69, %c0_70, %c0_71] : memref<2x1x32xf32, #tpu.memory_space<vmem>>, vector<1x1x32xf32>
    %215 = vector.shape_cast %214 : vector<1x1x32xf32> to vector<1x32xf32>
    %cst_72 = arith.constant dense<0.000000e+00> : vector<16xf32>
    %216 = vector.multi_reduction <add>, %211, %cst_72 [1] : vector<16x32xf32> to vector<16xf32>
    %217 = vector.shape_cast %216 : vector<16xf32> to vector<16x1xf32>
    %cst_73 = arith.constant 3.200000e+01 : f32
    %218 = vector.broadcast %cst_73 : f32 to vector<16x1xf32>
    %219 = arith.divf %217, %218 : vector<16x1xf32>
    %220 = vector.broadcast %219 : vector<16x1xf32> to vector<16x32xf32>
    %221 = arith.subf %211, %220 : vector<16x32xf32>
    %222 = arith.mulf %221, %221 : vector<16x32xf32>
    %cst_74 = arith.constant dense<0.000000e+00> : vector<16xf32>
    %223 = vector.multi_reduction <add>, %222, %cst_74 [1] : vector<16x32xf32> to vector<16xf32>
    %224 = vector.shape_cast %223 : vector<16xf32> to vector<16x1xf32>
    %cst_75 = arith.constant 3.200000e+01 : f32
    %225 = vector.broadcast %cst_75 : f32 to vector<16x1xf32>
    %226 = arith.divf %224, %225 : vector<16x1xf32>
    %227 = vector.broadcast %219 : vector<16x1xf32> to vector<16x32xf32>
    %228 = arith.subf %211, %227 : vector<16x32xf32>
    %cst_76 = arith.constant 9.99999974E-6 : f32
    %229 = vector.broadcast %cst_76 : f32 to vector<16x1xf32>
    %230 = arith.addf %226, %229 : vector<16x1xf32>
    %231 = math.rsqrt %230 : vector<16x1xf32>
    %232 = vector.broadcast %231 : vector<16x1xf32> to vector<16x32xf32>
    %233 = arith.mulf %228, %232 : vector<16x32xf32>
    %234 = vector.broadcast %213 : vector<1x32xf32> to vector<16x32xf32>
    %235 = arith.mulf %233, %234 : vector<16x32xf32>
    %236 = vector.broadcast %215 : vector<1x32xf32> to vector<16x32xf32>
    %237 = arith.addf %235, %236 : vector<16x32xf32>
    %c1_77 = arith.constant 1 : index
    %c0_78 = arith.constant 0 : index
    %c0_79 = arith.constant 0 : index
    %238 = vector.load %arg4[%c1_77, %c0_78, %c0_79] : memref<2x32x96xf32, #tpu.memory_space<vmem>>, vector<1x32x96xf32>
    %239 = vector.shape_cast %238 : vector<1x32x96xf32> to vector<32x96xf32>
    %cst_80 = arith.constant dense<0.000000e+00> : vector<16x96xf32>
    %240 = tpu.matmul %237, %239, %cst_80 {dimension_numbers = #tpu.dot_dimension_numbers<[1], [0], [0], [1], [0, 0, 1, 1], [], []>} : vector<16x32xf32>, vector<32x96xf32>, vector<16x96xf32> -> vector<16x96xf32>
    %241 = vector.extract_strided_slice %240 {offsets = [0, 0], sizes = [8, 8], strides = [1, 1]} : vector<16x96xf32> to vector<8x8xf32>
    %242 = vector.extract_strided_slice %240 {offsets = [0, 8], sizes = [8, 8], strides = [1, 1]} : vector<16x96xf32> to vector<8x8xf32>
    %243 = vector.extract_strided_slice %240 {offsets = [0, 16], sizes = [8, 8], strides = [1, 1]} : vector<16x96xf32> to vector<8x8xf32>
    %244 = vector.extract_strided_slice %240 {offsets = [0, 24], sizes = [8, 8], strides = [1, 1]} : vector<16x96xf32> to vector<8x8xf32>
    %245 = vector.extract_strided_slice %240 {offsets = [8, 0], sizes = [8, 8], strides = [1, 1]} : vector<16x96xf32> to vector<8x8xf32>
    %246 = vector.extract_strided_slice %240 {offsets = [8, 8], sizes = [8, 8], strides = [1, 1]} : vector<16x96xf32> to vector<8x8xf32>
    %247 = vector.extract_strided_slice %240 {offsets = [8, 16], sizes = [8, 8], strides = [1, 1]} : vector<16x96xf32> to vector<8x8xf32>
    %248 = vector.extract_strided_slice %240 {offsets = [8, 24], sizes = [8, 8], strides = [1, 1]} : vector<16x96xf32> to vector<8x8xf32>
    %249 = vector.shape_cast %241 : vector<8x8xf32> to vector<1x8x8xf32>
    %250 = vector.shape_cast %242 : vector<8x8xf32> to vector<1x8x8xf32>
    %251 = vector.shape_cast %243 : vector<8x8xf32> to vector<1x8x8xf32>
    %252 = vector.shape_cast %244 : vector<8x8xf32> to vector<1x8x8xf32>
    %253 = vector.shape_cast %245 : vector<8x8xf32> to vector<1x8x8xf32>
    %254 = vector.shape_cast %246 : vector<8x8xf32> to vector<1x8x8xf32>
    %255 = vector.shape_cast %247 : vector<8x8xf32> to vector<1x8x8xf32>
    %256 = vector.shape_cast %248 : vector<8x8xf32> to vector<1x8x8xf32>
    %257 = tpu.concatenate %249, %250, %251, %252, %253, %254, %255, %256 in 0 : vector<1x8x8xf32>, vector<1x8x8xf32>, vector<1x8x8xf32>, vector<1x8x8xf32>, vector<1x8x8xf32>, vector<1x8x8xf32>, vector<1x8x8xf32>, vector<1x8x8xf32> -> vector<8x8x8xf32>
    %258 = vector.extract_strided_slice %240 {offsets = [0, 32], sizes = [8, 8], strides = [1, 1]} : vector<16x96xf32> to vector<8x8xf32>
    %259 = vector.extract_strided_slice %240 {offsets = [0, 40], sizes = [8, 8], strides = [1, 1]} : vector<16x96xf32> to vector<8x8xf32>
    %260 = vector.extract_strided_slice %240 {offsets = [0, 48], sizes = [8, 8], strides = [1, 1]} : vector<16x96xf32> to vector<8x8xf32>
    %261 = vector.extract_strided_slice %240 {offsets = [0, 56], sizes = [8, 8], strides = [1, 1]} : vector<16x96xf32> to vector<8x8xf32>
    %262 = vector.extract_strided_slice %240 {offsets = [8, 32], sizes = [8, 8], strides = [1, 1]} : vector<16x96xf32> to vector<8x8xf32>
    %263 = vector.extract_strided_slice %240 {offsets = [8, 40], sizes = [8, 8], strides = [1, 1]} : vector<16x96xf32> to vector<8x8xf32>
    %264 = vector.extract_strided_slice %240 {offsets = [8, 48], sizes = [8, 8], strides = [1, 1]} : vector<16x96xf32> to vector<8x8xf32>
    %265 = vector.extract_strided_slice %240 {offsets = [8, 56], sizes = [8, 8], strides = [1, 1]} : vector<16x96xf32> to vector<8x8xf32>
    %266 = vector.shape_cast %258 : vector<8x8xf32> to vector<1x8x8xf32>
    %267 = vector.shape_cast %259 : vector<8x8xf32> to vector<1x8x8xf32>
    %268 = vector.shape_cast %260 : vector<8x8xf32> to vector<1x8x8xf32>
    %269 = vector.shape_cast %261 : vector<8x8xf32> to vector<1x8x8xf32>
    %270 = vector.shape_cast %262 : vector<8x8xf32> to vector<1x8x8xf32>
    %271 = vector.shape_cast %263 : vector<8x8xf32> to vector<1x8x8xf32>
    %272 = vector.shape_cast %264 : vector<8x8xf32> to vector<1x8x8xf32>
    %273 = vector.shape_cast %265 : vector<8x8xf32> to vector<1x8x8xf32>
    %274 = tpu.concatenate %266, %267, %268, %269, %270, %271, %272, %273 in 0 : vector<1x8x8xf32>, vector<1x8x8xf32>, vector<1x8x8xf32>, vector<1x8x8xf32>, vector<1x8x8xf32>, vector<1x8x8xf32>, vector<1x8x8xf32>, vector<1x8x8xf32> -> vector<8x8x8xf32>
    %275 = vector.extract_strided_slice %240 {offsets = [0, 64], sizes = [8, 8], strides = [1, 1]} : vector<16x96xf32> to vector<8x8xf32>
    %276 = vector.extract_strided_slice %240 {offsets = [0, 72], sizes = [8, 8], strides = [1, 1]} : vector<16x96xf32> to vector<8x8xf32>
    %277 = vector.extract_strided_slice %240 {offsets = [0, 80], sizes = [8, 8], strides = [1, 1]} : vector<16x96xf32> to vector<8x8xf32>
    %278 = vector.extract_strided_slice %240 {offsets = [0, 88], sizes = [8, 8], strides = [1, 1]} : vector<16x96xf32> to vector<8x8xf32>
    %279 = vector.extract_strided_slice %240 {offsets = [8, 64], sizes = [8, 8], strides = [1, 1]} : vector<16x96xf32> to vector<8x8xf32>
    %280 = vector.extract_strided_slice %240 {offsets = [8, 72], sizes = [8, 8], strides = [1, 1]} : vector<16x96xf32> to vector<8x8xf32>
    %281 = vector.extract_strided_slice %240 {offsets = [8, 80], sizes = [8, 8], strides = [1, 1]} : vector<16x96xf32> to vector<8x8xf32>
    %282 = vector.extract_strided_slice %240 {offsets = [8, 88], sizes = [8, 8], strides = [1, 1]} : vector<16x96xf32> to vector<8x8xf32>
    %283 = vector.shape_cast %275 : vector<8x8xf32> to vector<1x8x8xf32>
    %284 = vector.shape_cast %276 : vector<8x8xf32> to vector<1x8x8xf32>
    %285 = vector.shape_cast %277 : vector<8x8xf32> to vector<1x8x8xf32>
    %286 = vector.shape_cast %278 : vector<8x8xf32> to vector<1x8x8xf32>
    %287 = vector.shape_cast %279 : vector<8x8xf32> to vector<1x8x8xf32>
    %288 = vector.shape_cast %280 : vector<8x8xf32> to vector<1x8x8xf32>
    %289 = vector.shape_cast %281 : vector<8x8xf32> to vector<1x8x8xf32>
    %290 = vector.shape_cast %282 : vector<8x8xf32> to vector<1x8x8xf32>
    %291 = tpu.concatenate %283, %284, %285, %286, %287, %288, %289, %290 in 0 : vector<1x8x8xf32>, vector<1x8x8xf32>, vector<1x8x8xf32>, vector<1x8x8xf32>, vector<1x8x8xf32>, vector<1x8x8xf32>, vector<1x8x8xf32>, vector<1x8x8xf32> -> vector<8x8x8xf32>
    "tpu.trace_start"() <{level = 10 : i32, message = "gqd,gkd->gqk"}> : () -> ()
    %cst_81 = arith.constant dense<0.000000e+00> : vector<8x8x8xf32>
    %292 = tpu.matmul %257, %274, %cst_81 {dimension_numbers = #tpu.dot_dimension_numbers<[2], [2], [1], [1], [0, 0, 0, 1, 1, 1], [0], [0]>} : vector<8x8x8xf32>, vector<8x8x8xf32>, vector<8x8x8xf32> -> vector<8x8x8xf32>
    "tpu.trace_stop"() : () -> ()
    %cst_82 = arith.constant 0.353553385 : f32
    %293 = vector.broadcast %cst_82 : f32 to vector<8x8x8xf32>
    %294 = arith.mulf %292, %293 : vector<8x8x8xf32>
    %cst_83 = arith.constant -1.000000e+09 : f32
    %295 = vector.broadcast %cst_83 : f32 to vector<8x8x8xf32>
    %296 = arith.select %44, %295, %294 : vector<8x8x8xi1>, vector<8x8x8xf32>
    %cst_84 = arith.constant dense<0xFF800000> : vector<8x8xf32>
    %297 = vector.multi_reduction <maximumf>, %296, %cst_84 [2] : vector<8x8x8xf32> to vector<8x8xf32>
    %298 = vector.shape_cast %297 : vector<8x8xf32> to vector<8x8x1xf32>
    %299 = vector.broadcast %298 : vector<8x8x1xf32> to vector<8x8x8xf32>
    %300 = arith.subf %296, %299 : vector<8x8x8xf32>
    %301 = math.exp %300 : vector<8x8x8xf32>
    %cst_85 = arith.constant dense<0.000000e+00> : vector<8x8xf32>
    %302 = vector.multi_reduction <add>, %301, %cst_85 [2] : vector<8x8x8xf32> to vector<8x8xf32>
    %303 = vector.shape_cast %302 : vector<8x8xf32> to vector<8x8x1xf32>
    %304 = vector.broadcast %303 : vector<8x8x1xf32> to vector<8x8x8xf32>
    %305 = arith.divf %301, %304 : vector<8x8x8xf32>
    "tpu.trace_start"() <{level = 10 : i32, message = "gqk,gkd->gqd"}> : () -> ()
    %cst_86 = arith.constant dense<0.000000e+00> : vector<8x8x8xf32>
    %306 = tpu.matmul %305, %291, %cst_86 {dimension_numbers = #tpu.dot_dimension_numbers<[2], [1], [1], [2], [0, 0, 0, 1, 1, 2], [0], [0]>} : vector<8x8x8xf32>, vector<8x8x8xf32>, vector<8x8x8xf32> -> vector<8x8x8xf32>
    "tpu.trace_stop"() : () -> ()
    %307 = vector.extract_strided_slice %306 {offsets = [0, 0, 0], sizes = [1, 8, 8], strides = [1, 1, 1]} : vector<8x8x8xf32> to vector<1x8x8xf32>
    %308 = vector.shape_cast %307 : vector<1x8x8xf32> to vector<8x8xf32>
    %309 = vector.extract_strided_slice %306 {offsets = [1, 0, 0], sizes = [1, 8, 8], strides = [1, 1, 1]} : vector<8x8x8xf32> to vector<1x8x8xf32>
    %310 = vector.shape_cast %309 : vector<1x8x8xf32> to vector<8x8xf32>
    %311 = vector.extract_strided_slice %306 {offsets = [2, 0, 0], sizes = [1, 8, 8], strides = [1, 1, 1]} : vector<8x8x8xf32> to vector<1x8x8xf32>
    %312 = vector.shape_cast %311 : vector<1x8x8xf32> to vector<8x8xf32>
    %313 = vector.extract_strided_slice %306 {offsets = [3, 0, 0], sizes = [1, 8, 8], strides = [1, 1, 1]} : vector<8x8x8xf32> to vector<1x8x8xf32>
    %314 = vector.shape_cast %313 : vector<1x8x8xf32> to vector<8x8xf32>
    %315 = tpu.concatenate %308, %310, %312, %314 in 1 : vector<8x8xf32>, vector<8x8xf32>, vector<8x8xf32>, vector<8x8xf32> -> vector<8x32xf32>
    %316 = vector.extract_strided_slice %306 {offsets = [4, 0, 0], sizes = [1, 8, 8], strides = [1, 1, 1]} : vector<8x8x8xf32> to vector<1x8x8xf32>
    %317 = vector.shape_cast %316 : vector<1x8x8xf32> to vector<8x8xf32>
    %318 = vector.extract_strided_slice %306 {offsets = [5, 0, 0], sizes = [1, 8, 8], strides = [1, 1, 1]} : vector<8x8x8xf32> to vector<1x8x8xf32>
    %319 = vector.shape_cast %318 : vector<1x8x8xf32> to vector<8x8xf32>
    %320 = vector.extract_strided_slice %306 {offsets = [6, 0, 0], sizes = [1, 8, 8], strides = [1, 1, 1]} : vector<8x8x8xf32> to vector<1x8x8xf32>
    %321 = vector.shape_cast %320 : vector<1x8x8xf32> to vector<8x8xf32>
    %322 = vector.extract_strided_slice %306 {offsets = [7, 0, 0], sizes = [1, 8, 8], strides = [1, 1, 1]} : vector<8x8x8xf32> to vector<1x8x8xf32>
    %323 = vector.shape_cast %322 : vector<1x8x8xf32> to vector<8x8xf32>
    %324 = tpu.concatenate %317, %319, %321, %323 in 1 : vector<8x8xf32>, vector<8x8xf32>, vector<8x8xf32>, vector<8x8xf32> -> vector<8x32xf32>
    %325 = tpu.concatenate %315, %324 in 0 : vector<8x32xf32>, vector<8x32xf32> -> vector<16x32xf32>
    %c1_87 = arith.constant 1 : index
    %c0_88 = arith.constant 0 : index
    %c0_89 = arith.constant 0 : index
    %326 = vector.load %arg5[%c1_87, %c0_88, %c0_89] : memref<2x32x32xf32, #tpu.memory_space<vmem>>, vector<1x32x32xf32>
    %327 = vector.shape_cast %326 : vector<1x32x32xf32> to vector<32x32xf32>
    %cst_90 = arith.constant dense<0.000000e+00> : vector<16x32xf32>
    %328 = tpu.matmul %325, %327, %cst_90 {dimension_numbers = #tpu.dot_dimension_numbers<[1], [0], [0], [1], [0, 0, 1, 1], [], []>} : vector<16x32xf32>, vector<32x32xf32>, vector<16x32xf32> -> vector<16x32xf32>
    %329 = arith.addf %211, %328 : vector<16x32xf32>
    %c1_91 = arith.constant 1 : index
    %c0_92 = arith.constant 0 : index
    %c0_93 = arith.constant 0 : index
    %330 = vector.load %arg8[%c1_91, %c0_92, %c0_93] : memref<2x1x32xf32, #tpu.memory_space<vmem>>, vector<1x1x32xf32>
    %331 = vector.shape_cast %330 : vector<1x1x32xf32> to vector<1x32xf32>
    %c1_94 = arith.constant 1 : index
    %c0_95 = arith.constant 0 : index
    %c0_96 = arith.constant 0 : index
    %332 = vector.load %arg9[%c1_94, %c0_95, %c0_96] : memref<2x1x32xf32, #tpu.memory_space<vmem>>, vector<1x1x32xf32>
    %333 = vector.shape_cast %332 : vector<1x1x32xf32> to vector<1x32xf32>
    %cst_97 = arith.constant dense<0.000000e+00> : vector<16xf32>
    %334 = vector.multi_reduction <add>, %329, %cst_97 [1] : vector<16x32xf32> to vector<16xf32>
    %335 = vector.shape_cast %334 : vector<16xf32> to vector<16x1xf32>
    %cst_98 = arith.constant 3.200000e+01 : f32
    %336 = vector.broadcast %cst_98 : f32 to vector<16x1xf32>
    %337 = arith.divf %335, %336 : vector<16x1xf32>
    %338 = vector.broadcast %337 : vector<16x1xf32> to vector<16x32xf32>
    %339 = arith.subf %329, %338 : vector<16x32xf32>
    %340 = arith.mulf %339, %339 : vector<16x32xf32>
    %cst_99 = arith.constant dense<0.000000e+00> : vector<16xf32>
    %341 = vector.multi_reduction <add>, %340, %cst_99 [1] : vector<16x32xf32> to vector<16xf32>
    %342 = vector.shape_cast %341 : vector<16xf32> to vector<16x1xf32>
    %cst_100 = arith.constant 3.200000e+01 : f32
    %343 = vector.broadcast %cst_100 : f32 to vector<16x1xf32>
    %344 = arith.divf %342, %343 : vector<16x1xf32>
    %345 = vector.broadcast %337 : vector<16x1xf32> to vector<16x32xf32>
    %346 = arith.subf %329, %345 : vector<16x32xf32>
    %cst_101 = arith.constant 9.99999974E-6 : f32
    %347 = vector.broadcast %cst_101 : f32 to vector<16x1xf32>
    %348 = arith.addf %344, %347 : vector<16x1xf32>
    %349 = math.rsqrt %348 : vector<16x1xf32>
    %350 = vector.broadcast %349 : vector<16x1xf32> to vector<16x32xf32>
    %351 = arith.mulf %346, %350 : vector<16x32xf32>
    %352 = vector.broadcast %331 : vector<1x32xf32> to vector<16x32xf32>
    %353 = arith.mulf %351, %352 : vector<16x32xf32>
    %354 = vector.broadcast %333 : vector<1x32xf32> to vector<16x32xf32>
    %355 = arith.addf %353, %354 : vector<16x32xf32>
    %c1_102 = arith.constant 1 : index
    %c0_103 = arith.constant 0 : index
    %c0_104 = arith.constant 0 : index
    %356 = vector.load %arg10[%c1_102, %c0_103, %c0_104] : memref<2x32x128xf32, #tpu.memory_space<vmem>>, vector<1x32x128xf32>
    %357 = vector.shape_cast %356 : vector<1x32x128xf32> to vector<32x128xf32>
    %cst_105 = arith.constant dense<0.000000e+00> : vector<16x128xf32>
    %358 = tpu.matmul %355, %357, %cst_105 {dimension_numbers = #tpu.dot_dimension_numbers<[1], [0], [0], [1], [0, 0, 1, 1], [], []>} : vector<16x32xf32>, vector<32x128xf32>, vector<16x128xf32> -> vector<16x128xf32>
    %c1_106 = arith.constant 1 : index
    %c0_107 = arith.constant 0 : index
    %c0_108 = arith.constant 0 : index
    %359 = vector.load %arg11[%c1_106, %c0_107, %c0_108] : memref<2x1x128xf32, #tpu.memory_space<vmem>>, vector<1x1x128xf32>
    %360 = vector.shape_cast %359 : vector<1x1x128xf32> to vector<1x128xf32>
    %361 = vector.broadcast %360 : vector<1x128xf32> to vector<16x128xf32>
    %362 = arith.addf %358, %361 : vector<16x128xf32>
    %cst_109 = arith.constant 5.000000e-01 : f32
    %363 = vector.broadcast %cst_109 : f32 to vector<16x128xf32>
    %364 = arith.mulf %363, %362 : vector<16x128xf32>
    %cst_110 = arith.constant 0.707106769 : f32
    %365 = vector.broadcast %cst_110 : f32 to vector<16x128xf32>
    %366 = arith.mulf %362, %365 : vector<16x128xf32>
    %367 = math.erf %366 : vector<16x128xf32>
    %cst_111 = arith.constant 1.000000e+00 : f32
    %368 = vector.broadcast %cst_111 : f32 to vector<16x128xf32>
    %369 = arith.addf %368, %367 : vector<16x128xf32>
    %370 = arith.mulf %364, %369 : vector<16x128xf32>
    %c1_112 = arith.constant 1 : index
    %c0_113 = arith.constant 0 : index
    %c0_114 = arith.constant 0 : index
    %371 = vector.load %arg12[%c1_112, %c0_113, %c0_114] : memref<2x128x32xf32, #tpu.memory_space<vmem>>, vector<1x128x32xf32>
    %372 = vector.shape_cast %371 : vector<1x128x32xf32> to vector<128x32xf32>
    %cst_115 = arith.constant dense<0.000000e+00> : vector<16x32xf32>
    %373 = tpu.matmul %370, %372, %cst_115 {dimension_numbers = #tpu.dot_dimension_numbers<[1], [0], [0], [1], [0, 0, 1, 1], [], []>} : vector<16x128xf32>, vector<128x32xf32>, vector<16x32xf32> -> vector<16x32xf32>
    %c1_116 = arith.constant 1 : index
    %c0_117 = arith.constant 0 : index
    %c0_118 = arith.constant 0 : index
    %374 = vector.load %arg13[%c1_116, %c0_117, %c0_118] : memref<2x1x32xf32, #tpu.memory_space<vmem>>, vector<1x1x32xf32>
    %375 = vector.shape_cast %374 : vector<1x1x32xf32> to vector<1x32xf32>
    %376 = vector.broadcast %375 : vector<1x32xf32> to vector<16x32xf32>
    %377 = arith.addf %373, %376 : vector<16x32xf32>
    %378 = arith.addf %329, %377 : vector<16x32xf32>
    %c0_119 = arith.constant 0 : index
    %c0_120 = arith.constant 0 : index
    %379 = vector.load %arg16[%c0_119, %c0_120] : memref<32x128xf32, #tpu.memory_space<vmem>>, vector<32x128xf32>
    %cst_121 = arith.constant dense<0.000000e+00> : vector<16x128xf32>
    %380 = tpu.matmul %378, %379, %cst_121 {dimension_numbers = #tpu.dot_dimension_numbers<[1], [0], [0], [1], [0, 0, 1, 1], [], []>} : vector<16x32xf32>, vector<32x128xf32>, vector<16x128xf32> -> vector<16x128xf32>
    %c0_122 = arith.constant 0 : index
    %c0_123 = arith.constant 0 : index
    %381 = vector.load %arg17[%c0_122, %c0_123] : memref<1x128xf32, #tpu.memory_space<vmem>>, vector<1x128xf32>
    %382 = vector.broadcast %381 : vector<1x128xf32> to vector<16x128xf32>
    %383 = arith.addf %380, %382 : vector<16x128xf32>
    %c0_124 = arith.constant 0 : index
    %c0_125 = arith.constant 0 : index
    %384 = vector.load %arg19[%c0_124, %c0_125] : memref<16x128xf32, #tpu.memory_space<vmem>>, vector<16x128xf32>
    tpu.vector_store %arg19[%c0_124, %c0_125], %383 {strides = array<i32>} : memref<16x128xf32, #tpu.memory_space<vmem>>, vector<16x128xf32>,
    %385 = vector.extract_strided_slice %378 {offsets = [0, 0], sizes = [1, 32], strides = [1, 1]} : vector<16x32xf32> to vector<1x32xf32>
    %386 = vector.extract_strided_slice %378 {offsets = [8, 0], sizes = [1, 32], strides = [1, 1]} : vector<16x32xf32> to vector<1x32xf32>
    %387 = tpu.concatenate %385, %386 in 0 : vector<1x32xf32>, vector<1x32xf32> -> vector<2x32xf32>
    %c0_126 = arith.constant 0 : index
    %c0_127 = arith.constant 0 : index
    %388 = vector.load %arg14[%c0_126, %c0_127] : memref<32x128xf32, #tpu.memory_space<vmem>>, vector<32x128xf32>
    %cst_128 = arith.constant dense<0.000000e+00> : vector<2x128xf32>
    %389 = tpu.matmul %387, %388, %cst_128 {dimension_numbers = #tpu.dot_dimension_numbers<[1], [0], [0], [1], [0, 0, 1, 1], [], []>} : vector<2x32xf32>, vector<32x128xf32>, vector<2x128xf32> -> vector<2x128xf32>
    %c0_129 = arith.constant 0 : index
    %c0_130 = arith.constant 0 : index
    %390 = vector.load %arg15[%c0_129, %c0_130] : memref<1x128xf32, #tpu.memory_space<vmem>>, vector<1x128xf32>
    %391 = vector.broadcast %390 : vector<1x128xf32> to vector<2x128xf32>
    %392 = arith.addf %389, %391 : vector<2x128xf32>
    %c0_131 = arith.constant 0 : index
    %c0_132 = arith.constant 0 : index
    %393 = vector.load %arg18[%c0_131, %c0_132] : memref<2x128xf32, #tpu.memory_space<vmem>>, vector<2x128xf32>
    tpu.vector_store %arg18[%c0_131, %c0_132], %392 {strides = array<i32>} : memref<2x128xf32, #tpu.memory_space<vmem>>, vector<2x128xf32>,
    return
  }
}

</mosaic_0001>

<llo_original>
// kernel: tpu_custom_call.1
$region0: #{tpu_custom_call.1}
  #allocation0 [shape = 'u32[]', space=smem, size = 0x4, offset = 0x4, fixed_abs, tag = 'smem constant byte address 0x4 - core index']
  #allocation1 [shape = 'u32[144,128]{1,0:T(1,128)}', space=vmem, size = 0x12000, scoped, tag = 'internal scratch']
  %s0 = inlined_call_operand.vmem [shape: s32[2,8], index: 0, kind: input, shape index: {}]
  %s1 = inlined_call_operand.vmem [shape: f32[16,32], index: 1, kind: input, shape index: {}]
  %s2 = inlined_call_operand.vmem [shape: f32[1,32], index: 2, kind: input, shape index: {}]
  %s3 = inlined_call_operand.vmem [shape: f32[1,32], index: 3, kind: input, shape index: {}]
  %s4 = inlined_call_operand.vmem [shape: f32[2,32,96], index: 4, kind: input, shape index: {}]
  %s5 = inlined_call_operand.vmem [shape: f32[2,32,32], index: 5, kind: input, shape index: {}]
  %s6 = inlined_call_operand.vmem [shape: f32[2,1,32], index: 6, kind: input, shape index: {}]
  %s7 = inlined_call_operand.vmem [shape: f32[2,1,32], index: 7, kind: input, shape index: {}]
  %s8 = inlined_call_operand.vmem [shape: f32[2,1,32], index: 8, kind: input, shape index: {}]
  %s9 = inlined_call_operand.vmem [shape: f32[2,1,32], index: 9, kind: input, shape index: {}]
  %s10 = inlined_call_operand.vmem [shape: f32[2,32,128], index: 10, kind: input, shape index: {}]
  %s11 = inlined_call_operand.vmem [shape: f32[2,1,128], index: 11, kind: input, shape index: {}]
  %s12 = inlined_call_operand.vmem [shape: f32[2,128,32], index: 12, kind: input, shape index: {}]
  %s13 = inlined_call_operand.vmem [shape: f32[2,1,32], index: 13, kind: input, shape index: {}]
  %s14 = inlined_call_operand.vmem [shape: f32[32,128], index: 14, kind: input, shape index: {}]
  %s15 = inlined_call_operand.vmem [shape: f32[1,128], index: 15, kind: input, shape index: {}]
  %s16 = inlined_call_operand.vmem [shape: f32[32,128], index: 16, kind: input, shape index: {}]
  %s17 = inlined_call_operand.vmem [shape: f32[1,128], index: 17, kind: input, shape index: {}]
  %s18 = inlined_call_operand.hbm [shape: f32[2,128], index: 18, kind: output, shape index: {0}]
  %s19 = inlined_call_operand.hbm [shape: f32[16,128], index: 19, kind: output, shape index: {1}]
  %20 = xla_tuple %s18, %s19
  %s21 = sld [smem:[#allocation0]]
  $region90: #{tpu_custom_call.1} parent=0
    _
  %s23 = ssub.s32 1, %s21
  %s24 = scalar_select 0, %s23, %s21
  $region1: #{tpu_custom_call.1} parent=0
    #allocation2 [shape = 'u8[1024]{0}', space=vmem, size = 0x400, scoped, tag = 'output window, operand 0, single buffered']
    #allocation3 [shape = 's32[1]{0}', space=sflag, size = 0x4, scoped, tag = 'scoped memory for tpu_custom_call.1']
    #allocation4 [shape = 'u8[8192]{0}', space=vmem, size = 0x2000, scoped, tag = 'output window, operand 1, single buffered']
    #allocation5 [shape = 's32[1]{0}', space=sflag, size = 0x4, scoped, tag = 'scoped memory for tpu_custom_call.1']
    %25 = vsyncpa [#allocation3], 0
    %26 = vsyncpa [#allocation5], 0
    // Predicated region
    $region2: #{tpu_custom_call.1} parent=1 // pred_check
      _
    $region3: #{tpu_custom_call.1} parent=1 // pred_check_branch
      %28 = sbr.rel (0) target = $region5
    $region4: #{tpu_custom_call.1} parent=1 // pred_region
      _
    $region5: #{tpu_custom_call.1} parent=1 // pred_fallthru
      _
    // Predicated region
    $region6: #{tpu_custom_call.1} parent=1 // pred_check
      _
    $region7: #{tpu_custom_call.1} parent=1 // pred_check_branch
      %30 = sbr.rel (0) target = $region9
    $region8: #{tpu_custom_call.1} parent=1 // pred_region
      _
    $region9: #{tpu_custom_call.1} parent=1 // pred_fallthru
      _
    // Predicated region
    $region10: #{tpu_custom_call.1} parent=1 // pred_check
      _
    $region11: #{tpu_custom_call.1} parent=1 // pred_check_branch
      %32 = sbr.rel (0) target = $region13
    $region12: #{tpu_custom_call.1} parent=1 // pred_region
      _
    $region13: #{tpu_custom_call.1} parent=1 // pred_fallthru
      _
    // Predicated region
    $region14: #{tpu_custom_call.1} parent=1 // pred_check
      _
    $region15: #{tpu_custom_call.1} parent=1 // pred_check_branch
      %34 = sbr.rel (0) target = $region17
    $region16: #{tpu_custom_call.1} parent=1 // pred_region
      _
    $region17: #{tpu_custom_call.1} parent=1 // pred_fallthru
      _
    // Predicated region
    $region18: #{tpu_custom_call.1} parent=1 // pred_check
      _
    $region19: #{tpu_custom_call.1} parent=1 // pred_check_branch
      %36 = sbr.rel (0) target = $region21
    $region20: #{tpu_custom_call.1} parent=1 // pred_region
      _
    $region21: #{tpu_custom_call.1} parent=1 // pred_fallthru
      _
    // Predicated region
    $region22: #{tpu_custom_call.1} parent=1 // pred_check
      _
    $region23: #{tpu_custom_call.1} parent=1 // pred_check_branch
      %38 = sbr.rel (0) target = $region25
    $region24: #{tpu_custom_call.1} parent=1 // pred_region
      _
    $region25: #{tpu_custom_call.1} parent=1 // pred_fallthru
      _
    // Predicated region
    $region26: #{tpu_custom_call.1} parent=1 // pred_check
      _
    $region27: #{tpu_custom_call.1} parent=1 // pred_check_branch
      %40 = sbr.rel (0) target = $region29
    $region28: #{tpu_custom_call.1} parent=1 // pred_region
      _
    $region29: #{tpu_custom_call.1} parent=1 // pred_fallthru
      _
    // Predicated region
    $region30: #{tpu_custom_call.1} parent=1 // pred_check
      _
    $region31: #{tpu_custom_call.1} parent=1 // pred_check_branch
      %42 = sbr.rel (0) target = $region33
    $region32: #{tpu_custom_call.1} parent=1 // pred_region
      _
    $region33: #{tpu_custom_call.1} parent=1 // pred_fallthru
      _
    // Predicated region
    $region34: #{tpu_custom_call.1} parent=1 // pred_check
      _
    $region35: #{tpu_custom_call.1} parent=1 // pred_check_branch
      %44 = sbr.rel (0) target = $region37
    $region36: #{tpu_custom_call.1} parent=1 // pred_region
      _
    $region37: #{tpu_custom_call.1} parent=1 // pred_fallthru
      _
    // Predicated region
    $region38: #{tpu_custom_call.1} parent=1 // pred_check
      _
    $region39: #{tpu_custom_call.1} parent=1 // pred_check_branch
      %46 = sbr.rel (0) target = $region41
    $region40: #{tpu_custom_call.1} parent=1 // pred_region
      _
    $region41: #{tpu_custom_call.1} parent=1 // pred_fallthru
      _
    // Predicated region
    $region42: #{tpu_custom_call.1} parent=1 // pred_check
      _
    $region43: #{tpu_custom_call.1} parent=1 // pred_check_branch
      %48 = sbr.rel (0) target = $region45
    $region44: #{tpu_custom_call.1} parent=1 // pred_region
      _
    $region45: #{tpu_custom_call.1} parent=1 // pred_fallthru
      _
    // Predicated region
    $region46: #{tpu_custom_call.1} parent=1 // pred_check
      _
    $region47: #{tpu_custom_call.1} parent=1 // pred_check_branch
      %50 = sbr.rel (0) target = $region49
    $region48: #{tpu_custom_call.1} parent=1 // pred_region
      _
    $region49: #{tpu_custom_call.1} parent=1 // pred_fallthru
      _
    // Predicated region
    $region50: #{tpu_custom_call.1} parent=1 // pred_check
      _
    $region51: #{tpu_custom_call.1} parent=1 // pred_check_branch
      %52 = sbr.rel (0) target = $region53
    $region52: #{tpu_custom_call.1} parent=1 // pred_region
      _
    $region53: #{tpu_custom_call.1} parent=1 // pred_fallthru
      _
    // Predicated region
    $region54: #{tpu_custom_call.1} parent=1 // pred_check
      _
    $region55: #{tpu_custom_call.1} parent=1 // pred_check_branch
      %54 = sbr.rel (0) target = $region57
    $region56: #{tpu_custom_call.1} parent=1 // pred_region
      _
    $region57: #{tpu_custom_call.1} parent=1 // pred_fallthru
      _
    // Predicated region
    $region58: #{tpu_custom_call.1} parent=1 // pred_check
      _
    $region59: #{tpu_custom_call.1} parent=1 // pred_check_branch
      %56 = sbr.rel (0) target = $region61
    $region60: #{tpu_custom_call.1} parent=1 // pred_region
      _
    $region61: #{tpu_custom_call.1} parent=1 // pred_fallthru
      _
    // Predicated region
    $region62: #{tpu_custom_call.1} parent=1 // pred_check
      _
    $region63: #{tpu_custom_call.1} parent=1 // pred_check_branch
      %58 = sbr.rel (0) target = $region65
    $region64: #{tpu_custom_call.1} parent=1 // pred_region
      _
    $region65: #{tpu_custom_call.1} parent=1 // pred_fallthru
      _
    // Predicated region
    $region66: #{tpu_custom_call.1} parent=1 // pred_check
      _
    $region67: #{tpu_custom_call.1} parent=1 // pred_check_branch
      %60 = sbr.rel (0) target = $region69
    $region68: #{tpu_custom_call.1} parent=1 // pred_region
      _
    $region69: #{tpu_custom_call.1} parent=1 // pred_fallthru
      _
    // Predicated region
    $region70: #{tpu_custom_call.1} parent=1 // pred_check
      _
    $region71: #{tpu_custom_call.1} parent=1 // pred_check_branch
      %62 = sbr.rel (0) target = $region73
    $region72: #{tpu_custom_call.1} parent=1 // pred_region
      _
    $region73: #{tpu_custom_call.1} parent=1 // pred_fallthru
      _
    %v63 = vld [vmem:[%s1] sm:$0xff]
    %v64 = vld [vmem:[%s1 + $0x8] sm:$0xff]
    %v65 = vld [vmem:[%s2] sm:$0x1]
    %v66 = vld [vmem:[%s3] sm:$0x1]
    %vm67 = vcmask 261120
    %v68 = vsel %vm67, %v63, 0.0
    %69 = vadd.xlane.f32.xlu0 %v68
    %v70 = vpop.xlane.xlu0 %69
    %v71 = vsel %vm67, %v64, 0.0
    %72 = vadd.xlane.f32.xlu0 %v71
    %v73 = vpop.xlane.xlu0 %72
    %v74 = vrcp.pop 32.0
    %v75 = vmul.f32 %v70, %v74
    %v76 = vmul.f32 %v73, %v74
    %v77 = vsub.f32 %v63, %v75
    %v78 = vsub.f32 %v64, %v76
    %v79 = vmul.f32 %v77, %v77
    %v80 = vmul.f32 %v78, %v78
    %v81 = vsel %vm67, %v79, 0.0
    %82 = vadd.xlane.f32.xlu0 %v81
    %v83 = vpop.xlane.xlu0 %82
    %v84 = vsel %vm67, %v80, 0.0
    %85 = vadd.xlane.f32.xlu0 %v84
    %v86 = vpop.xlane.xlu0 %85
    %v87 = vmul.f32 %v83, %v74
    %v88 = vmul.f32 %v86, %v74
    %v89 = vadd.f32 %v87, 1e-05
    %v90 = vadd.f32 %v88, 1e-05
    %v91 = vrsqrt.pop %v89
    %v92 = vrsqrt.pop %v90
    %v93 = vmul.f32 %v77, %v91
    %v94 = vmul.f32 %v78, %v92
    %v96 = vlaneseq
    %v97 = vshrl.u32 %v96, 7
    %v98 = vsub.s32 0, %v97
    %v99 = vrot.slane %v65, %v98
    %v101 = vmul.f32 %v93, %v99
    %v102 = vmul.f32 %v94, %v99
    %v104 = vlaneseq
    %v105 = vshrl.u32 %v104, 7
    %v106 = vsub.s32 0, %v105
    %v107 = vrot.slane %v66, %v106
    %v109 = vadd.f32 %v101, %v107
    %v110 = vadd.f32 %v102, %v107
    %v111 = vld [vmem:[%s0] sm:$0x3]
    %vm112 = vcmp.eq.s32.totalorder %v111, 0
    %v113 = vsel %vm112, 1.0, 0.0
    %v115 = vrot.slane %v113, 7
    %v117 = vrot.slane %v113, 6
    %v119 = vrot.slane %v113, 5
    %v121 = vrot.slane %v113, 4
    %v123 = vrot.slane %v113, 3
    %v125 = vrot.slane %v113, 2
    %vm127 = vcmask 1040384
    %v128 = vsel %vm127, %v113, %v115
    %vm129 = vcmask 1041408
    %v130 = vsel %vm129, %v128, %v117
    %vm131 = vcmask 1042432
    %v132 = vsel %vm131, %v130, %v119
    %vm133 = vcmask 1043456
    %v134 = vsel %vm133, %v132, %v119
    %vm135 = vcmask 1044480
    %v136 = vsel %vm135, %v134, %v121
    %vm137 = vcmask 1045504
    %v138 = vsel %vm137, %v136, %v123
    %vm139 = vcmask 1046528
    %v140 = vsel %vm139, %v138, %v125
    %v142 = vcombine.high %v140, %v140
    %v144 = vunpack.c.l.s4 1966171168
    %v145 = vunpack.c.0.s8 %v144
    %v146 = vlaneseq
    %v147 = vshrl.u32 %v146, 7
    %v148 = vsub.s32 %v145, %v147
    %v149 = vrot.slane %v140, %v148
    %v151 = vunpack.c.l.s4 1966171168
    %v152 = vunpack.c.0.s8 %v151
    %v153 = vlaneseq
    %v154 = vshrl.u32 %v153, 7
    %v155 = vsub.s32 %v152, %v154
    %v156 = vrot.slane %v142, %v155
    %v157 = vcombine.high %v149, %v149
    %v158 = vcombine.high %v156, %v156
    %v160 = vunpack.c.l.s4 1966171168
    %v161 = vunpack.c.0.s8 %v160
    %v162 = vlaneseq
    %v163 = vshrl.u32 %v162, 7
    %v164 = vsub.s32 %v161, %v163
    %v165 = vrot.slane %v149, %v164
    %v167 = vunpack.c.l.s4 1966171168
    %v168 = vunpack.c.0.s8 %v167
    %v169 = vlaneseq
    %v170 = vshrl.u32 %v169, 7
    %v171 = vsub.s32 %v168, %v170
    %v172 = vrot.slane %v156, %v171
    %v174 = vunpack.c.l.s4 1966171168
    %v175 = vunpack.c.0.s8 %v174
    %v176 = vlaneseq
    %v177 = vshrl.u32 %v176, 7
    %v178 = vsub.s32 %v175, %v177
    %v179 = vrot.slane %v157, %v178
    %v181 = vunpack.c.l.s4 1966171168
    %v182 = vunpack.c.0.s8 %v181
    %v183 = vlaneseq
    %v184 = vshrl.u32 %v183, 7
    %v185 = vsub.s32 %v182, %v184
    %v186 = vrot.slane %v158, %v185
    %v187 = vcombine.high %v165, %v165
    %v188 = vcombine.high %v172, %v172
    %v189 = vcombine.high %v179, %v179
    %v190 = vcombine.high %v186, %v186
    %v191 = vlaneseq
    %v192 = vshrl.u32 %v191, 7
    %v193 = vsub.s32 0, %v192
    %v194 = vrot.slane %v165, %v193
    %v195 = vlaneseq
    %v196 = vshrl.u32 %v195, 7
    %v197 = vsub.s32 0, %v196
    %v198 = vrot.slane %v179, %v197
    %v199 = vlaneseq
    %v200 = vshrl.u32 %v199, 7
    %v201 = vsub.s32 0, %v200
    %v202 = vrot.slane %v187, %v201
    %v203 = vlaneseq
    %v204 = vshrl.u32 %v203, 7
    %v205 = vsub.s32 0, %v204
    %v206 = vrot.slane %v189, %v205
    %v207 = vlaneseq
    %v208 = vshrl.u32 %v207, 7
    %v209 = vsub.s32 0, %v208
    %v210 = vrot.slane %v172, %v209
    %v211 = vlaneseq
    %v212 = vshrl.u32 %v211, 7
    %v213 = vsub.s32 0, %v212
    %v214 = vrot.slane %v186, %v213
    %v215 = vlaneseq
    %v216 = vshrl.u32 %v215, 7
    %v217 = vsub.s32 0, %v216
    %v218 = vrot.slane %v188, %v217
    %v219 = vlaneseq
    %v220 = vshrl.u32 %v219, 7
    %v221 = vsub.s32 0, %v220
    %v222 = vrot.slane %v190, %v221
    %vm231 = vcmp.gt.f32.partialorder %v194, 0.5
    %vm232 = vcmp.gt.f32.partialorder %v198, 0.5
    %vm233 = vcmp.gt.f32.partialorder %v202, 0.5
    %vm234 = vcmp.gt.f32.partialorder %v206, 0.5
    %vm235 = vcmp.gt.f32.partialorder %v210, 0.5
    %vm236 = vcmp.gt.f32.partialorder %v214, 0.5
    %vm237 = vcmp.gt.f32.partialorder %v218, 0.5
    %vm238 = vcmp.gt.f32.partialorder %v222, 0.5
    %v239 = vld [vmem:[%s6] sm:$0x1]
    %v240 = vld [vmem:[%s7] sm:$0x1]
    %v241 = vsel %vm67, %v109, 0.0
    %242 = vadd.xlane.f32.xlu0 %v241
    %v243 = vpop.xlane.xlu0 %242
    %v244 = vsel %vm67, %v110, 0.0
    %245 = vadd.xlane.f32.xlu0 %v244
    %v246 = vpop.xlane.xlu0 %245
    %v247 = vmul.f32 %v243, %v74
    %v248 = vmul.f32 %v246, %v74
    %v249 = vsub.f32 %v109, %v247
    %v250 = vsub.f32 %v110, %v248
    %v251 = vmul.f32 %v249, %v249
    %v252 = vmul.f32 %v250, %v250
    %v253 = vsel %vm67, %v251, 0.0
    %254 = vadd.xlane.f32.xlu0 %v253
    %v255 = vpop.xlane.xlu0 %254
    %v256 = vsel %vm67, %v252, 0.0
    %257 = vadd.xlane.f32.xlu0 %v256
    %v258 = vpop.xlane.xlu0 %257
    %v259 = vmul.f32 %v255, %v74
    %v260 = vmul.f32 %v258, %v74
    %v261 = vadd.f32 %v259, 1e-05
    %v262 = vadd.f32 %v260, 1e-05
    %v263 = vrsqrt.pop %v261
    %v264 = vrsqrt.pop %v262
    %v265 = vmul.f32 %v249, %v263
    %v266 = vmul.f32 %v250, %v264
    %v268 = vlaneseq
    %v269 = vshrl.u32 %v268, 7
    %v270 = vsub.s32 0, %v269
    %v271 = vrot.slane %v239, %v270
    %v273 = vmul.f32 %v265, %v271
    %v274 = vmul.f32 %v266, %v271
    %v276 = vlaneseq
    %v277 = vshrl.u32 %v276, 7
    %v278 = vsub.s32 0, %v277
    %v279 = vrot.slane %v240, %v278
    %v281 = vadd.f32 %v273, %v279
    %v282 = vadd.f32 %v274, %v279
    %v283 = vld [vmem:[%s4] sm:$0xff]
    %v284 = vld [vmem:[%s4 + $0x8] sm:$0xff]
    %v285 = vld [vmem:[%s4 + $0x10] sm:$0xff]
    %v286 = vld [vmem:[%s4 + $0x18] sm:$0xff]
    %v288 = vsel %vm67, %v281, 0
    %v291 = vsel %vm67, %v282, 0
    %293 = vmatprep.subr.mxu0 0.0
    %294 = vmatpush1.msra.mxu0 0.0
    %295 = vmatprep.subr.mxu0 0.0
    %296 = vmatpush1.msra.mxu0 0.0
    %297 = vmatprep.subr.mxu0 0.0
    %298 = vmatpush1.msra.mxu0 0.0
    %299 = vmatprep.subr.mxu0 0.0
    %300 = vmatpush1.msra.mxu0 0.0
    %301 = vmatprep.subr.mxu0 0.0
    %302 = vmatpush1.msra.mxu0 0.0
    %303 = vmatprep.subr.mxu0 0.0
    %304 = vmatpush1.msra.mxu0 0.0
    %305 = vmatprep.subr.mxu0 0.0
    %306 = vmatpush1.msra.mxu0 0.0
    %307 = vmatprep.subr.mxu0 0.0
    %308 = vmatpush1.msra.mxu0 0.0
    %309 = vmatprep.subr.mxu0 0.0
    %310 = vmatpush1.msra.mxu0 0.0
    %311 = vmatprep.subr.mxu0 0.0
    %312 = vmatpush1.msra.mxu0 0.0
    %313 = vmatprep.subr.mxu0 0.0
    %314 = vmatpush1.msra.mxu0 0.0
    %315 = vmatprep.subr.mxu0 0.0
    %316 = vmatpush1.msra.mxu0 0.0
    %317 = vmatprep.subr.mxu0 0.0
    %318 = vmatpush1.msra.mxu0 %v286
    %319 = vmatprep.subr.mxu0 0.0
    %320 = vmatpush1.msra.mxu0 %v285
    %321 = vmatprep.subr.mxu0 0.0
    %322 = vmatpush1.msra.mxu0 %v284
    %323 = vmatprep.subr.mxu0 0.0
    %324 = vmatpush1.msra.mxu0 %v283
    %325 = vmatprep.subr.mxu0 0.0
    %326 = vmatpush2.msra.mxu0 0.0
    %327 = vmatprep.subr.mxu0 0.0
    %328 = vmatpush2.msra.mxu0 0.0
    %329 = vmatprep.subr.mxu0 0.0
    %330 = vmatpush2.msra.mxu0 0.0
    %331 = vmatprep.subr.mxu0 0.0
    %332 = vmatpush2.msra.mxu0 0.0
    %333 = vmatprep.subr.mxu0 0.0
    %334 = vmatpush2.msra.mxu0 0.0
    %335 = vmatprep.subr.mxu0 0.0
    %336 = vmatpush2.msra.mxu0 0.0
    %337 = vmatprep.subr.mxu0 0.0
    %338 = vmatpush2.msra.mxu0 0.0
    %339 = vmatprep.subr.mxu0 0.0
    %340 = vmatpush2.msra.mxu0 0.0
    %341 = vmatprep.subr.mxu0 0.0
    %342 = vmatpush2.msra.mxu0 0.0
    %343 = vmatprep.subr.mxu0 0.0
    %344 = vmatpush2.msra.mxu0 0.0
    %345 = vmatprep.subr.mxu0 0.0
    %346 = vmatpush2.msra.mxu0 0.0
    %347 = vmatprep.subr.mxu0 0.0
    %348 = vmatpush2.msra.mxu0 0.0
    %349 = vmatprep.subr.mxu0 0.0
    %350 = vmatpush2.msra.mxu0 0.0
    %351 = vmatprep.subr.mxu0 0.0
    %352 = vmatpush2.msra.mxu0 0.0
    %353 = vmatprep.subr.mxu0 0.0
    %354 = vmatpush2.msra.mxu0 0.0
    %355 = vmatprep.subr.mxu0 0.0
    %356 = vmatpush2.msra.mxu0 0.0
    %357 = vmatprep.mubr.f32.mxu0 0.0
    %358 = vmatmul.mubr.f32.gmra.mxu0 %v288
    %v359 = vpop.f32.mrf.mxu0
    %v360 = vadd.f32 0.0, %v359
    %v361 = vpop.f32.mrf.mxu0
    %362 = vmatprep.mubr.f32.mxu0 0.0
    %363 = vmatmul.mubr.f32.gmra.mxu0 %v291
    %v364 = vpop.f32.mrf.mxu0
    %v365 = vadd.f32 0.0, %v364
    %v366 = vpop.f32.mrf.mxu0
    %367 = vdwg.mxu0
    %369 = vrot.lane.b32.xlu0 %v360, 120
    %v370 = vpop.permute.xlu0 %369
    %371 = vrot.lane.b32.xlu0 %v360, 112
    %v372 = vpop.permute.xlu0 %371
    %373 = vrot.lane.b32.xlu0 %v360, 104
    %v374 = vpop.permute.xlu0 %373
    %376 = vrot.lane.b32.xlu0 %v365, 120
    %v377 = vpop.permute.xlu0 %376
    %378 = vrot.lane.b32.xlu0 %v365, 112
    %v379 = vpop.permute.xlu0 %378
    %380 = vrot.lane.b32.xlu0 %v365, 104
    %v381 = vpop.permute.xlu0 %380
    %382 = vrot.lane.b32.xlu0 %v360, 96
    %v383 = vpop.permute.xlu0 %382
    %vm384 = vcmask 64512
    %v385 = vsel %vm384, %v360, 0
    %v387 = vsel %vm384, %v383, 0
    %389 = vmatprep.subr.mxu0 0.0
    %390 = vmatpush1.xpose.msra.mxu0 0.0
    %391 = vmatprep.subr.mxu0 0.0
    %392 = vmatpush1.xpose.msra.mxu0 0.0
    %393 = vmatprep.subr.mxu0 0.0
    %394 = vmatpush1.xpose.msra.mxu0 0.0
    %395 = vmatprep.subr.mxu0 0.0
    %396 = vmatpush1.xpose.msra.mxu0 0.0
    %397 = vmatprep.subr.mxu0 0.0
    %398 = vmatpush1.xpose.msra.mxu0 0.0
    %399 = vmatprep.subr.mxu0 0.0
    %400 = vmatpush1.xpose.msra.mxu0 0.0
    %401 = vmatprep.subr.mxu0 0.0
    %402 = vmatpush1.xpose.msra.mxu0 0.0
    %403 = vmatprep.subr.mxu0 0.0
    %404 = vmatpush1.xpose.msra.mxu0 0.0
    %405 = vmatprep.subr.mxu0 0.0
    %406 = vmatpush1.xpose.msra.mxu0 0.0
    %407 = vmatprep.subr.mxu0 0.0
    %408 = vmatpush1.xpose.msra.mxu0 0.0
    %409 = vmatprep.subr.mxu0 0.0
    %410 = vmatpush1.xpose.msra.mxu0 0.0
    %411 = vmatprep.subr.mxu0 0.0
    %412 = vmatpush1.xpose.msra.mxu0 0.0
    %413 = vmatprep.subr.mxu0 0.0
    %414 = vmatpush1.xpose.msra.mxu0 0.0
    %415 = vmatprep.subr.mxu0 0.0
    %416 = vmatpush1.xpose.msra.mxu0 0.0
    %417 = vmatprep.subr.mxu0 0.0
    %418 = vmatpush1.xpose.msra.mxu0 0.0
    %419 = vmatprep.subr.mxu0 0.0
    %420 = vmatpush1.xpose.msra.mxu0 %v387
    %421 = vmatprep.subr.mxu0 0.0
    %422 = vmatpush2.xpose.msra.mxu0 0.0
    %423 = vmatprep.subr.mxu0 0.0
    %424 = vmatpush2.xpose.msra.mxu0 0.0
    %425 = vmatprep.subr.mxu0 0.0
    %426 = vmatpush2.xpose.msra.mxu0 0.0
    %427 = vmatprep.subr.mxu0 0.0
    %428 = vmatpush2.xpose.msra.mxu0 0.0
    %429 = vmatprep.subr.mxu0 0.0
    %430 = vmatpush2.xpose.msra.mxu0 0.0
    %431 = vmatprep.subr.mxu0 0.0
    %432 = vmatpush2.xpose.msra.mxu0 0.0
    %433 = vmatprep.subr.mxu0 0.0
    %434 = vmatpush2.xpose.msra.mxu0 0.0
    %435 = vmatprep.subr.mxu0 0.0
    %436 = vmatpush2.xpose.msra.mxu0 0.0
    %437 = vmatprep.subr.mxu0 0.0
    %438 = vmatpush2.xpose.msra.mxu0 0.0
    %439 = vmatprep.subr.mxu0 0.0
    %440 = vmatpush2.xpose.msra.mxu0 0.0
    %441 = vmatprep.subr.mxu0 0.0
    %442 = vmatpush2.xpose.msra.mxu0 0.0
    %443 = vmatprep.subr.mxu0 0.0
    %444 = vmatpush2.xpose.msra.mxu0 0.0
    %445 = vmatprep.subr.mxu0 0.0
    %446 = vmatpush2.xpose.msra.mxu0 0.0
    %447 = vmatprep.subr.mxu0 0.0
    %448 = vmatpush2.xpose.msra.mxu0 0.0
    %449 = vmatprep.subr.mxu0 0.0
    %450 = vmatpush2.xpose.msra.mxu0 0.0
    %451 = vmatprep.subr.mxu0 0.0
    %452 = vmatpush2.xpose.msra.mxu0 0.0
    %453 = vmatprep.mubr.f32.mxu0 0.0
    %454 = vmatmul.mubr.f32.gmra.mxu0 %v385
    %v455 = vpop.f32.mrf.mxu0
    %v456 = vadd.f32 0.0, %v455
    %v457 = vpop.f32.mrf.mxu0
    %458 = vdwg.mxu0
    %459 = vrot.lane.b32.xlu0 %v370, 96
    %v460 = vpop.permute.xlu0 %459
    %v461 = vsel %vm384, %v370, 0
    %v463 = vsel %vm384, %v460, 0
    %465 = vmatprep.subr.mxu0 0.0
    %466 = vmatpush1.xpose.msra.mxu0 0.0
    %467 = vmatprep.subr.mxu0 0.0
    %468 = vmatpush1.xpose.msra.mxu0 0.0
    %469 = vmatprep.subr.mxu0 0.0
    %470 = vmatpush1.xpose.msra.mxu0 0.0
    %471 = vmatprep.subr.mxu0 0.0
    %472 = vmatpush1.xpose.msra.mxu0 0.0
    %473 = vmatprep.subr.mxu0 0.0
    %474 = vmatpush1.xpose.msra.mxu0 0.0
    %475 = vmatprep.subr.mxu0 0.0
    %476 = vmatpush1.xpose.msra.mxu0 0.0
    %477 = vmatprep.subr.mxu0 0.0
    %478 = vmatpush1.xpose.msra.mxu0 0.0
    %479 = vmatprep.subr.mxu0 0.0
    %480 = vmatpush1.xpose.msra.mxu0 0.0
    %481 = vmatprep.subr.mxu0 0.0
    %482 = vmatpush1.xpose.msra.mxu0 0.0
    %483 = vmatprep.subr.mxu0 0.0
    %484 = vmatpush1.xpose.msra.mxu0 0.0
    %485 = vmatprep.subr.mxu0 0.0
    %486 = vmatpush1.xpose.msra.mxu0 0.0
    %487 = vmatprep.subr.mxu0 0.0
    %488 = vmatpush1.xpose.msra.mxu0 0.0
    %489 = vmatprep.subr.mxu0 0.0
    %490 = vmatpush1.xpose.msra.mxu0 0.0
    %491 = vmatprep.subr.mxu0 0.0
    %492 = vmatpush1.xpose.msra.mxu0 0.0
    %493 = vmatprep.subr.mxu0 0.0
    %494 = vmatpush1.xpose.msra.mxu0 0.0
    %495 = vmatprep.subr.mxu0 0.0
    %496 = vmatpush1.xpose.msra.mxu0 %v463
    %497 = vmatprep.subr.mxu0 0.0
    %498 = vmatpush2.xpose.msra.mxu0 0.0
    %499 = vmatprep.subr.mxu0 0.0
    %500 = vmatpush2.xpose.msra.mxu0 0.0
    %501 = vmatprep.subr.mxu0 0.0
    %502 = vmatpush2.xpose.msra.mxu0 0.0
    %503 = vmatprep.subr.mxu0 0.0
    %504 = vmatpush2.xpose.msra.mxu0 0.0
    %505 = vmatprep.subr.mxu0 0.0
    %506 = vmatpush2.xpose.msra.mxu0 0.0
    %507 = vmatprep.subr.mxu0 0.0
    %508 = vmatpush2.xpose.msra.mxu0 0.0
    %509 = vmatprep.subr.mxu0 0.0
    %510 = vmatpush2.xpose.msra.mxu0 0.0
    %511 = vmatprep.subr.mxu0 0.0
    %512 = vmatpush2.xpose.msra.mxu0 0.0
    %513 = vmatprep.subr.mxu0 0.0
    %514 = vmatpush2.xpose.msra.mxu0 0.0
    %515 = vmatprep.subr.mxu0 0.0
    %516 = vmatpush2.xpose.msra.mxu0 0.0
    %517 = vmatprep.subr.mxu0 0.0
    %518 = vmatpush2.xpose.msra.mxu0 0.0
    %519 = vmatprep.subr.mxu0 0.0
    %520 = vmatpush2.xpose.msra.mxu0 0.0
    %521 = vmatprep.subr.mxu0 0.0
    %522 = vmatpush2.xpose.msra.mxu0 0.0
    %523 = vmatprep.subr.mxu0 0.0
    %524 = vmatpush2.xpose.msra.mxu0 0.0
    %525 = vmatprep.subr.mxu0 0.0
    %526 = vmatpush2.xpose.msra.mxu0 0.0
    %527 = vmatprep.subr.mxu0 0.0
    %528 = vmatpush2.xpose.msra.mxu0 0.0
    %529 = vmatprep.mubr.f32.mxu0 0.0
    %530 = vmatmul.mubr.f32.gmra.mxu0 %v461
    %v531 = vpop.f32.mrf.mxu0
    %v532 = vadd.f32 0.0, %v531
    %v533 = vpop.f32.mrf.mxu0
    %534 = vdwg.mxu0
    %535 = vrot.lane.b32.xlu0 %v372, 96
    %v536 = vpop.permute.xlu0 %535
    %v537 = vsel %vm384, %v372, 0
    %v539 = vsel %vm384, %v536, 0
    %541 = vmatprep.subr.mxu0 0.0
    %542 = vmatpush1.xpose.msra.mxu0 0.0
    %543 = vmatprep.subr.mxu0 0.0
    %544 = vmatpush1.xpose.msra.mxu0 0.0
    %545 = vmatprep.subr.mxu0 0.0
    %546 = vmatpush1.xpose.msra.mxu0 0.0
    %547 = vmatprep.subr.mxu0 0.0
    %548 = vmatpush1.xpose.msra.mxu0 0.0
    %549 = vmatprep.subr.mxu0 0.0
    %550 = vmatpush1.xpose.msra.mxu0 0.0
    %551 = vmatprep.subr.mxu0 0.0
    %552 = vmatpush1.xpose.msra.mxu0 0.0
    %553 = vmatprep.subr.mxu0 0.0
    %554 = vmatpush1.xpose.msra.mxu0 0.0
    %555 = vmatprep.subr.mxu0 0.0
    %556 = vmatpush1.xpose.msra.mxu0 0.0
    %557 = vmatprep.subr.mxu0 0.0
    %558 = vmatpush1.xpose.msra.mxu0 0.0
    %559 = vmatprep.subr.mxu0 0.0
    %560 = vmatpush1.xpose.msra.mxu0 0.0
    %561 = vmatprep.subr.mxu0 0.0
    %562 = vmatpush1.xpose.msra.mxu0 0.0
    %563 = vmatprep.subr.mxu0 0.0
    %564 = vmatpush1.xpose.msra.mxu0 0.0
    %565 = vmatprep.subr.mxu0 0.0
    %566 = vmatpush1.xpose.msra.mxu0 0.0
    %567 = vmatprep.subr.mxu0 0.0
    %568 = vmatpush1.xpose.msra.mxu0 0.0
    %569 = vmatprep.subr.mxu0 0.0
    %570 = vmatpush1.xpose.msra.mxu0 0.0
    %571 = vmatprep.subr.mxu0 0.0
    %572 = vmatpush1.xpose.msra.mxu0 %v539
    %573 = vmatprep.subr.mxu0 0.0
    %574 = vmatpush2.xpose.msra.mxu0 0.0
    %575 = vmatprep.subr.mxu0 0.0
    %576 = vmatpush2.xpose.msra.mxu0 0.0
    %577 = vmatprep.subr.mxu0 0.0
    %578 = vmatpush2.xpose.msra.mxu0 0.0
    %579 = vmatprep.subr.mxu0 0.0
    %580 = vmatpush2.xpose.msra.mxu0 0.0
    %581 = vmatprep.subr.mxu0 0.0
    %582 = vmatpush2.xpose.msra.mxu0 0.0
    %583 = vmatprep.subr.mxu0 0.0
    %584 = vmatpush2.xpose.msra.mxu0 0.0
    %585 = vmatprep.subr.mxu0 0.0
    %586 = vmatpush2.xpose.msra.mxu0 0.0
    %587 = vmatprep.subr.mxu0 0.0
    %588 = vmatpush2.xpose.msra.mxu0 0.0
    %589 = vmatprep.subr.mxu0 0.0
    %590 = vmatpush2.xpose.msra.mxu0 0.0
    %591 = vmatprep.subr.mxu0 0.0
    %592 = vmatpush2.xpose.msra.mxu0 0.0
    %593 = vmatprep.subr.mxu0 0.0
    %594 = vmatpush2.xpose.msra.mxu0 0.0
    %595 = vmatprep.subr.mxu0 0.0
    %596 = vmatpush2.xpose.msra.mxu0 0.0
    %597 = vmatprep.subr.mxu0 0.0
    %598 = vmatpush2.xpose.msra.mxu0 0.0
    %599 = vmatprep.subr.mxu0 0.0
    %600 = vmatpush2.xpose.msra.mxu0 0.0
    %601 = vmatprep.subr.mxu0 0.0
    %602 = vmatpush2.xpose.msra.mxu0 0.0
    %603 = vmatprep.subr.mxu0 0.0
    %604 = vmatpush2.xpose.msra.mxu0 0.0
    %605 = vmatprep.mubr.f32.mxu0 0.0
    %606 = vmatmul.mubr.f32.gmra.mxu0 %v537
    %v607 = vpop.f32.mrf.mxu0
    %v608 = vadd.f32 0.0, %v607
    %v609 = vpop.f32.mrf.mxu0
    %610 = vdwg.mxu0
    %611 = vrot.lane.b32.xlu0 %v374, 96
    %v612 = vpop.permute.xlu0 %611
    %v613 = vsel %vm384, %v374, 0
    %v615 = vsel %vm384, %v612, 0
    %617 = vmatprep.subr.mxu0 0.0
    %618 = vmatpush1.xpose.msra.mxu0 0.0
    %619 = vmatprep.subr.mxu0 0.0
    %620 = vmatpush1.xpose.msra.mxu0 0.0
    %621 = vmatprep.subr.mxu0 0.0
    %622 = vmatpush1.xpose.msra.mxu0 0.0
    %623 = vmatprep.subr.mxu0 0.0
    %624 = vmatpush1.xpose.msra.mxu0 0.0
    %625 = vmatprep.subr.mxu0 0.0
    %626 = vmatpush1.xpose.msra.mxu0 0.0
    %627 = vmatprep.subr.mxu0 0.0
    %628 = vmatpush1.xpose.msra.mxu0 0.0
    %629 = vmatprep.subr.mxu0 0.0
    %630 = vmatpush1.xpose.msra.mxu0 0.0
    %631 = vmatprep.subr.mxu0 0.0
    %632 = vmatpush1.xpose.msra.mxu0 0.0
    %633 = vmatprep.subr.mxu0 0.0
    %634 = vmatpush1.xpose.msra.mxu0 0.0
    %635 = vmatprep.subr.mxu0 0.0
    %636 = vmatpush1.xpose.msra.mxu0 0.0
    %637 = vmatprep.subr.mxu0 0.0
    %638 = vmatpush1.xpose.msra.mxu0 0.0
    %639 = vmatprep.subr.mxu0 0.0
    %640 = vmatpush1.xpose.msra.mxu0 0.0
    %641 = vmatprep.subr.mxu0 0.0
    %642 = vmatpush1.xpose.msra.mxu0 0.0
    %643 = vmatprep.subr.mxu0 0.0
    %644 = vmatpush1.xpose.msra.mxu0 0.0
    %645 = vmatprep.subr.mxu0 0.0
    %646 = vmatpush1.xpose.msra.mxu0 0.0
    %647 = vmatprep.subr.mxu0 0.0
    %648 = vmatpush1.xpose.msra.mxu0 %v615
    %649 = vmatprep.subr.mxu0 0.0
    %650 = vmatpush2.xpose.msra.mxu0 0.0
    %651 = vmatprep.subr.mxu0 0.0
    %652 = vmatpush2.xpose.msra.mxu0 0.0
    %653 = vmatprep.subr.mxu0 0.0
    %654 = vmatpush2.xpose.msra.mxu0 0.0
    %655 = vmatprep.subr.mxu0 0.0
    %656 = vmatpush2.xpose.msra.mxu0 0.0
    %657 = vmatprep.subr.mxu0 0.0
    %658 = vmatpush2.xpose.msra.mxu0 0.0
    %659 = vmatprep.subr.mxu0 0.0
    %660 = vmatpush2.xpose.msra.mxu0 0.0
    %661 = vmatprep.subr.mxu0 0.0
    %662 = vmatpush2.xpose.msra.mxu0 0.0
    %663 = vmatprep.subr.mxu0 0.0
    %664 = vmatpush2.xpose.msra.mxu0 0.0
    %665 = vmatprep.subr.mxu0 0.0
    %666 = vmatpush2.xpose.msra.mxu0 0.0
    %667 = vmatprep.subr.mxu0 0.0
    %668 = vmatpush2.xpose.msra.mxu0 0.0
    %669 = vmatprep.subr.mxu0 0.0
    %670 = vmatpush2.xpose.msra.mxu0 0.0
    %671 = vmatprep.subr.mxu0 0.0
    %672 = vmatpush2.xpose.msra.mxu0 0.0
    %673 = vmatprep.subr.mxu0 0.0
    %674 = vmatpush2.xpose.msra.mxu0 0.0
    %675 = vmatprep.subr.mxu0 0.0
    %676 = vmatpush2.xpose.msra.mxu0 0.0
    %677 = vmatprep.subr.mxu0 0.0
    %678 = vmatpush2.xpose.msra.mxu0 0.0
    %679 = vmatprep.subr.mxu0 0.0
    %680 = vmatpush2.xpose.msra.mxu0 0.0
    %681 = vmatprep.mubr.f32.mxu0 0.0
    %682 = vmatmul.mubr.f32.gmra.mxu0 %v613
    %v683 = vpop.f32.mrf.mxu0
    %v684 = vadd.f32 0.0, %v683
    %v685 = vpop.f32.mrf.mxu0
    %686 = vdwg.mxu0
    %687 = vrot.lane.b32.xlu0 %v365, 96
    %v688 = vpop.permute.xlu0 %687
    %v689 = vsel %vm384, %v365, 0
    %v691 = vsel %vm384, %v688, 0
    %693 = vmatprep.subr.mxu0 0.0
    %694 = vmatpush1.xpose.msra.mxu0 0.0
    %695 = vmatprep.subr.mxu0 0.0
    %696 = vmatpush1.xpose.msra.mxu0 0.0
    %697 = vmatprep.subr.mxu0 0.0
    %698 = vmatpush1.xpose.msra.mxu0 0.0
    %699 = vmatprep.subr.mxu0 0.0
    %700 = vmatpush1.xpose.msra.mxu0 0.0
    %701 = vmatprep.subr.mxu0 0.0
    %702 = vmatpush1.xpose.msra.mxu0 0.0
    %703 = vmatprep.subr.mxu0 0.0
    %704 = vmatpush1.xpose.msra.mxu0 0.0
    %705 = vmatprep.subr.mxu0 0.0
    %706 = vmatpush1.xpose.msra.mxu0 0.0
    %707 = vmatprep.subr.mxu0 0.0
    %708 = vmatpush1.xpose.msra.mxu0 0.0
    %709 = vmatprep.subr.mxu0 0.0
    %710 = vmatpush1.xpose.msra.mxu0 0.0
    %711 = vmatprep.subr.mxu0 0.0
    %712 = vmatpush1.xpose.msra.mxu0 0.0
    %713 = vmatprep.subr.mxu0 0.0
    %714 = vmatpush1.xpose.msra.mxu0 0.0
    %715 = vmatprep.subr.mxu0 0.0
    %716 = vmatpush1.xpose.msra.mxu0 0.0
    %717 = vmatprep.subr.mxu0 0.0
    %718 = vmatpush1.xpose.msra.mxu0 0.0
    %719 = vmatprep.subr.mxu0 0.0
    %720 = vmatpush1.xpose.msra.mxu0 0.0
    %721 = vmatprep.subr.mxu0 0.0
    %722 = vmatpush1.xpose.msra.mxu0 0.0
    %723 = vmatprep.subr.mxu0 0.0
    %724 = vmatpush1.xpose.msra.mxu0 %v691
    %725 = vmatprep.subr.mxu0 0.0
    %726 = vmatpush2.xpose.msra.mxu0 0.0
    %727 = vmatprep.subr.mxu0 0.0
    %728 = vmatpush2.xpose.msra.mxu0 0.0
    %729 = vmatprep.subr.mxu0 0.0
    %730 = vmatpush2.xpose.msra.mxu0 0.0
    %731 = vmatprep.subr.mxu0 0.0
    %732 = vmatpush2.xpose.msra.mxu0 0.0
    %733 = vmatprep.subr.mxu0 0.0
    %734 = vmatpush2.xpose.msra.mxu0 0.0
    %735 = vmatprep.subr.mxu0 0.0
    %736 = vmatpush2.xpose.msra.mxu0 0.0
    %737 = vmatprep.subr.mxu0 0.0
    %738 = vmatpush2.xpose.msra.mxu0 0.0
    %739 = vmatprep.subr.mxu0 0.0
    %740 = vmatpush2.xpose.msra.mxu0 0.0
    %741 = vmatprep.subr.mxu0 0.0
    %742 = vmatpush2.xpose.msra.mxu0 0.0
    %743 = vmatprep.subr.mxu0 0.0
    %744 = vmatpush2.xpose.msra.mxu0 0.0
    %745 = vmatprep.subr.mxu0 0.0
    %746 = vmatpush2.xpose.msra.mxu0 0.0
    %747 = vmatprep.subr.mxu0 0.0
    %748 = vmatpush2.xpose.msra.mxu0 0.0
    %749 = vmatprep.subr.mxu0 0.0
    %750 = vmatpush2.xpose.msra.mxu0 0.0
    %751 = vmatprep.subr.mxu0 0.0
    %752 = vmatpush2.xpose.msra.mxu0 0.0
    %753 = vmatprep.subr.mxu0 0.0
    %754 = vmatpush2.xpose.msra.mxu0 0.0
    %755 = vmatprep.subr.mxu0 0.0
    %756 = vmatpush2.xpose.msra.mxu0 0.0
    %757 = vmatprep.mubr.f32.mxu0 0.0
    %758 = vmatmul.mubr.f32.gmra.mxu0 %v689
    %v759 = vpop.f32.mrf.mxu0
    %v760 = vadd.f32 0.0, %v759
    %v761 = vpop.f32.mrf.mxu0
    %762 = vdwg.mxu0
    %763 = vrot.lane.b32.xlu0 %v377, 96
    %v764 = vpop.permute.xlu0 %763
    %v765 = vsel %vm384, %v377, 0
    %v767 = vsel %vm384, %v764, 0
    %769 = vmatprep.subr.mxu0 0.0
    %770 = vmatpush1.xpose.msra.mxu0 0.0
    %771 = vmatprep.subr.mxu0 0.0
    %772 = vmatpush1.xpose.msra.mxu0 0.0
    %773 = vmatprep.subr.mxu0 0.0
    %774 = vmatpush1.xpose.msra.mxu0 0.0
    %775 = vmatprep.subr.mxu0 0.0
    %776 = vmatpush1.xpose.msra.mxu0 0.0
    %777 = vmatprep.subr.mxu0 0.0
    %778 = vmatpush1.xpose.msra.mxu0 0.0
    %779 = vmatprep.subr.mxu0 0.0
    %780 = vmatpush1.xpose.msra.mxu0 0.0
    %781 = vmatprep.subr.mxu0 0.0
    %782 = vmatpush1.xpose.msra.mxu0 0.0
    %783 = vmatprep.subr.mxu0 0.0
    %784 = vmatpush1.xpose.msra.mxu0 0.0
    %785 = vmatprep.subr.mxu0 0.0
    %786 = vmatpush1.xpose.msra.mxu0 0.0
    %787 = vmatprep.subr.mxu0 0.0
    %788 = vmatpush1.xpose.msra.mxu0 0.0
    %789 = vmatprep.subr.mxu0 0.0
    %790 = vmatpush1.xpose.msra.mxu0 0.0
    %791 = vmatprep.subr.mxu0 0.0
    %792 = vmatpush1.xpose.msra.mxu0 0.0
    %793 = vmatprep.subr.mxu0 0.0
    %794 = vmatpush1.xpose.msra.mxu0 0.0
    %795 = vmatprep.subr.mxu0 0.0
    %796 = vmatpush1.xpose.msra.mxu0 0.0
    %797 = vmatprep.subr.mxu0 0.0
    %798 = vmatpush1.xpose.msra.mxu0 0.0
    %799 = vmatprep.subr.mxu0 0.0
    %800 = vmatpush1.xpose.msra.mxu0 %v767
    %801 = vmatprep.subr.mxu0 0.0
    %802 = vmatpush2.xpose.msra.mxu0 0.0
    %803 = vmatprep.subr.mxu0 0.0
    %804 = vmatpush2.xpose.msra.mxu0 0.0
    %805 = vmatprep.subr.mxu0 0.0
    %806 = vmatpush2.xpose.msra.mxu0 0.0
    %807 = vmatprep.subr.mxu0 0.0
    %808 = vmatpush2.xpose.msra.mxu0 0.0
    %809 = vmatprep.subr.mxu0 0.0
    %810 = vmatpush2.xpose.msra.mxu0 0.0
    %811 = vmatprep.subr.mxu0 0.0
    %812 = vmatpush2.xpose.msra.mxu0 0.0
    %813 = vmatprep.subr.mxu0 0.0
    %814 = vmatpush2.xpose.msra.mxu0 0.0
    %815 = vmatprep.subr.mxu0 0.0
    %816 = vmatpush2.xpose.msra.mxu0 0.0
    %817 = vmatprep.subr.mxu0 0.0
    %818 = vmatpush2.xpose.msra.mxu0 0.0
    %819 = vmatprep.subr.mxu0 0.0
    %820 = vmatpush2.xpose.msra.mxu0 0.0
    %821 = vmatprep.subr.mxu0 0.0
    %822 = vmatpush2.xpose.msra.mxu0 0.0
    %823 = vmatprep.subr.mxu0 0.0
    %824 = vmatpush2.xpose.msra.mxu0 0.0
    %825 = vmatprep.subr.mxu0 0.0
    %826 = vmatpush2.xpose.msra.mxu0 0.0
    %827 = vmatprep.subr.mxu0 0.0
    %828 = vmatpush2.xpose.msra.mxu0 0.0
    %829 = vmatprep.subr.mxu0 0.0
    %830 = vmatpush2.xpose.msra.mxu0 0.0
    %831 = vmatprep.subr.mxu0 0.0
    %832 = vmatpush2.xpose.msra.mxu0 0.0
    %833 = vmatprep.mubr.f32.mxu0 0.0
    %834 = vmatmul.mubr.f32.gmra.mxu0 %v765
    %v835 = vpop.f32.mrf.mxu0
    %v836 = vadd.f32 0.0, %v835
    %v837 = vpop.f32.mrf.mxu0
    %838 = vdwg.mxu0
    %839 = vrot.lane.b32.xlu0 %v379, 96
    %v840 = vpop.permute.xlu0 %839
    %v841 = vsel %vm384, %v379, 0
    %v843 = vsel %vm384, %v840, 0
    %845 = vmatprep.subr.mxu0 0.0
    %846 = vmatpush1.xpose.msra.mxu0 0.0
    %847 = vmatprep.subr.mxu0 0.0
    %848 = vmatpush1.xpose.msra.mxu0 0.0
    %849 = vmatprep.subr.mxu0 0.0
    %850 = vmatpush1.xpose.msra.mxu0 0.0
    %851 = vmatprep.subr.mxu0 0.0
    %852 = vmatpush1.xpose.msra.mxu0 0.0
    %853 = vmatprep.subr.mxu0 0.0
    %854 = vmatpush1.xpose.msra.mxu0 0.0
    %855 = vmatprep.subr.mxu0 0.0
    %856 = vmatpush1.xpose.msra.mxu0 0.0
    %857 = vmatprep.subr.mxu0 0.0
    %858 = vmatpush1.xpose.msra.mxu0 0.0
    %859 = vmatprep.subr.mxu0 0.0
    %860 = vmatpush1.xpose.msra.mxu0 0.0
    %861 = vmatprep.subr.mxu0 0.0
    %862 = vmatpush1.xpose.msra.mxu0 0.0
    %863 = vmatprep.subr.mxu0 0.0
    %864 = vmatpush1.xpose.msra.mxu0 0.0
    %865 = vmatprep.subr.mxu0 0.0
    %866 = vmatpush1.xpose.msra.mxu0 0.0
    %867 = vmatprep.subr.mxu0 0.0
    %868 = vmatpush1.xpose.msra.mxu0 0.0
    %869 = vmatprep.subr.mxu0 0.0
    %870 = vmatpush1.xpose.msra.mxu0 0.0
    %871 = vmatprep.subr.mxu0 0.0
    %872 = vmatpush1.xpose.msra.mxu0 0.0
    %873 = vmatprep.subr.mxu0 0.0
    %874 = vmatpush1.xpose.msra.mxu0 0.0
    %875 = vmatprep.subr.mxu0 0.0
    %876 = vmatpush1.xpose.msra.mxu0 %v843
    %877 = vmatprep.subr.mxu0 0.0
    %878 = vmatpush2.xpose.msra.mxu0 0.0
    %879 = vmatprep.subr.mxu0 0.0
    %880 = vmatpush2.xpose.msra.mxu0 0.0
    %881 = vmatprep.subr.mxu0 0.0
    %882 = vmatpush2.xpose.msra.mxu0 0.0
    %883 = vmatprep.subr.mxu0 0.0
    %884 = vmatpush2.xpose.msra.mxu0 0.0
    %885 = vmatprep.subr.mxu0 0.0
    %886 = vmatpush2.xpose.msra.mxu0 0.0
    %887 = vmatprep.subr.mxu0 0.0
    %888 = vmatpush2.xpose.msra.mxu0 0.0
    %889 = vmatprep.subr.mxu0 0.0
    %890 = vmatpush2.xpose.msra.mxu0 0.0
    %891 = vmatprep.subr.mxu0 0.0
    %892 = vmatpush2.xpose.msra.mxu0 0.0
    %893 = vmatprep.subr.mxu0 0.0
    %894 = vmatpush2.xpose.msra.mxu0 0.0
    %895 = vmatprep.subr.mxu0 0.0
    %896 = vmatpush2.xpose.msra.mxu0 0.0
    %897 = vmatprep.subr.mxu0 0.0
    %898 = vmatpush2.xpose.msra.mxu0 0.0
    %899 = vmatprep.subr.mxu0 0.0
    %900 = vmatpush2.xpose.msra.mxu0 0.0
    %901 = vmatprep.subr.mxu0 0.0
    %902 = vmatpush2.xpose.msra.mxu0 0.0
    %903 = vmatprep.subr.mxu0 0.0
    %904 = vmatpush2.xpose.msra.mxu0 0.0
    %905 = vmatprep.subr.mxu0 0.0
    %906 = vmatpush2.xpose.msra.mxu0 0.0
    %907 = vmatprep.subr.mxu0 0.0
    %908 = vmatpush2.xpose.msra.mxu0 0.0
    %909 = vmatprep.mubr.f32.mxu0 0.0
    %910 = vmatmul.mubr.f32.gmra.mxu0 %v841
    %v911 = vpop.f32.mrf.mxu0
    %v912 = vadd.f32 0.0, %v911
    %v913 = vpop.f32.mrf.mxu0
    %914 = vdwg.mxu0
    %915 = vrot.lane.b32.xlu0 %v381, 96
    %v916 = vpop.permute.xlu0 %915
    %v917 = vsel %vm384, %v381, 0
    %v919 = vsel %vm384, %v916, 0
    %921 = vmatprep.subr.mxu0 0.0
    %922 = vmatpush1.xpose.msra.mxu0 0.0
    %923 = vmatprep.subr.mxu0 0.0
    %924 = vmatpush1.xpose.msra.mxu0 0.0
    %925 = vmatprep.subr.mxu0 0.0
    %926 = vmatpush1.xpose.msra.mxu0 0.0
    %927 = vmatprep.subr.mxu0 0.0
    %928 = vmatpush1.xpose.msra.mxu0 0.0
    %929 = vmatprep.subr.mxu0 0.0
    %930 = vmatpush1.xpose.msra.mxu0 0.0
    %931 = vmatprep.subr.mxu0 0.0
    %932 = vmatpush1.xpose.msra.mxu0 0.0
    %933 = vmatprep.subr.mxu0 0.0
    %934 = vmatpush1.xpose.msra.mxu0 0.0
    %935 = vmatprep.subr.mxu0 0.0
    %936 = vmatpush1.xpose.msra.mxu0 0.0
    %937 = vmatprep.subr.mxu0 0.0
    %938 = vmatpush1.xpose.msra.mxu0 0.0
    %939 = vmatprep.subr.mxu0 0.0
    %940 = vmatpush1.xpose.msra.mxu0 0.0
    %941 = vmatprep.subr.mxu0 0.0
    %942 = vmatpush1.xpose.msra.mxu0 0.0
    %943 = vmatprep.subr.mxu0 0.0
    %944 = vmatpush1.xpose.msra.mxu0 0.0
    %945 = vmatprep.subr.mxu0 0.0
    %946 = vmatpush1.xpose.msra.mxu0 0.0
    %947 = vmatprep.subr.mxu0 0.0
    %948 = vmatpush1.xpose.msra.mxu0 0.0
    %949 = vmatprep.subr.mxu0 0.0
    %950 = vmatpush1.xpose.msra.mxu0 0.0
    %951 = vmatprep.subr.mxu0 0.0
    %952 = vmatpush1.xpose.msra.mxu0 %v919
    %953 = vmatprep.subr.mxu0 0.0
    %954 = vmatpush2.xpose.msra.mxu0 0.0
    %955 = vmatprep.subr.mxu0 0.0
    %956 = vmatpush2.xpose.msra.mxu0 0.0
    %957 = vmatprep.subr.mxu0 0.0
    %958 = vmatpush2.xpose.msra.mxu0 0.0
    %959 = vmatprep.subr.mxu0 0.0
    %960 = vmatpush2.xpose.msra.mxu0 0.0
    %961 = vmatprep.subr.mxu0 0.0
    %962 = vmatpush2.xpose.msra.mxu0 0.0
    %963 = vmatprep.subr.mxu0 0.0
    %964 = vmatpush2.xpose.msra.mxu0 0.0
    %965 = vmatprep.subr.mxu0 0.0
    %966 = vmatpush2.xpose.msra.mxu0 0.0
    %967 = vmatprep.subr.mxu0 0.0
    %968 = vmatpush2.xpose.msra.mxu0 0.0
    %969 = vmatprep.subr.mxu0 0.0
    %970 = vmatpush2.xpose.msra.mxu0 0.0
    %971 = vmatprep.subr.mxu0 0.0
    %972 = vmatpush2.xpose.msra.mxu0 0.0
    %973 = vmatprep.subr.mxu0 0.0
    %974 = vmatpush2.xpose.msra.mxu0 0.0
    %975 = vmatprep.subr.mxu0 0.0
    %976 = vmatpush2.xpose.msra.mxu0 0.0
    %977 = vmatprep.subr.mxu0 0.0
    %978 = vmatpush2.xpose.msra.mxu0 0.0
    %979 = vmatprep.subr.mxu0 0.0
    %980 = vmatpush2.xpose.msra.mxu0 0.0
    %981 = vmatprep.subr.mxu0 0.0
    %982 = vmatpush2.xpose.msra.mxu0 0.0
    %983 = vmatprep.subr.mxu0 0.0
    %984 = vmatpush2.xpose.msra.mxu0 0.0
    %985 = vmatprep.mubr.f32.mxu0 0.0
    %986 = vmatmul.mubr.f32.gmra.mxu0 %v917
    %v987 = vpop.f32.mrf.mxu0
    %v988 = vadd.f32 0.0, %v987
    %v989 = vpop.f32.mrf.mxu0
    %990 = vdwg.mxu0
    %v991 = vmul.f32 %v456, 0.35355338
    %v992 = vmul.f32 %v532, 0.35355338
    %v993 = vmul.f32 %v608, 0.35355338
    %v994 = vmul.f32 %v684, 0.35355338
    %v995 = vmul.f32 %v760, 0.35355338
    %v996 = vmul.f32 %v836, 0.35355338
    %v997 = vmul.f32 %v912, 0.35355338
    %v998 = vmul.f32 %v988, 0.35355338
    %v999 = vsel %vm231, -1e+09, %v991
    %v1000 = vsel %vm232, -1e+09, %v992
    %v1001 = vsel %vm233, -1e+09, %v993
    %v1002 = vsel %vm234, -1e+09, %v994
    %v1003 = vsel %vm235, -1e+09, %v995
    %v1004 = vsel %vm236, -1e+09, %v996
    %v1005 = vsel %vm237, -1e+09, %v997
    %v1006 = vsel %vm238, -1e+09, %v998
    %v1007 = vsel %vm384, %v999, -inf
    %1008 = vmax.xlane.f32.xlu0 %v1007
    %v1009 = vpop.xlane.xlu0 %1008
    %v1010 = vsel %vm384, %v1000, -inf
    %1011 = vmax.xlane.f32.xlu0 %v1010
    %v1012 = vpop.xlane.xlu0 %1011
    %v1013 = vsel %vm384, %v1001, -inf
    %1014 = vmax.xlane.f32.xlu0 %v1013
    %v1015 = vpop.xlane.xlu0 %1014
    %v1016 = vsel %vm384, %v1002, -inf
    %1017 = vmax.xlane.f32.xlu0 %v1016
    %v1018 = vpop.xlane.xlu0 %1017
    %v1019 = vsel %vm384, %v1003, -inf
    %1020 = vmax.xlane.f32.xlu0 %v1019
    %v1021 = vpop.xlane.xlu0 %1020
    %v1022 = vsel %vm384, %v1004, -inf
    %1023 = vmax.xlane.f32.xlu0 %v1022
    %v1024 = vpop.xlane.xlu0 %1023
    %v1025 = vsel %vm384, %v1005, -inf
    %1026 = vmax.xlane.f32.xlu0 %v1025
    %v1027 = vpop.xlane.xlu0 %1026
    %v1028 = vsel %vm384, %v1006, -inf
    %1029 = vmax.xlane.f32.xlu0 %v1028
    %v1030 = vpop.xlane.xlu0 %1029
    %v1031 = vsub.f32 %v999, %v1009
    %v1032 = vsub.f32 %v1000, %v1012
    %v1033 = vsub.f32 %v1001, %v1015
    %v1034 = vsub.f32 %v1002, %v1018
    %v1035 = vsub.f32 %v1003, %v1021
    %v1036 = vsub.f32 %v1004, %v1024
    %v1037 = vsub.f32 %v1005, %v1027
    %v1038 = vsub.f32 %v1006, %v1030
    %v1039 = vmul.f32 %v1031, 1.442695
    %v1040 = vpow.pop %v1039
    %v1041 = vmul.f32 %v1032, 1.442695
    %v1042 = vpow.pop %v1041
    %v1043 = vmul.f32 %v1033, 1.442695
    %v1044 = vpow.pop %v1043
    %v1045 = vmul.f32 %v1034, 1.442695
    %v1046 = vpow.pop %v1045
    %v1047 = vmul.f32 %v1035, 1.442695
    %v1048 = vpow.pop %v1047
    %v1049 = vmul.f32 %v1036, 1.442695
    %v1050 = vpow.pop %v1049
    %v1051 = vmul.f32 %v1037, 1.442695
    %v1052 = vpow.pop %v1051
    %v1053 = vmul.f32 %v1038, 1.442695
    %v1054 = vpow.pop %v1053
    %v1055 = vsel %vm384, %v1040, 0.0
    %1056 = vadd.xlane.f32.xlu0 %v1055
    %v1057 = vpop.xlane.xlu0 %1056
    %v1058 = vsel %vm384, %v1042, 0.0
    %1059 = vadd.xlane.f32.xlu0 %v1058
    %v1060 = vpop.xlane.xlu0 %1059
    %v1061 = vsel %vm384, %v1044, 0.0
    %1062 = vadd.xlane.f32.xlu0 %v1061
    %v1063 = vpop.xlane.xlu0 %1062
    %v1064 = vsel %vm384, %v1046, 0.0
    %1065 = vadd.xlane.f32.xlu0 %v1064
    %v1066 = vpop.xlane.xlu0 %1065
    %v1067 = vsel %vm384, %v1048, 0.0
    %1068 = vadd.xlane.f32.xlu0 %v1067
    %v1069 = vpop.xlane.xlu0 %1068
    %v1070 = vsel %vm384, %v1050, 0.0
    %1071 = vadd.xlane.f32.xlu0 %v1070
    %v1072 = vpop.xlane.xlu0 %1071
    %v1073 = vsel %vm384, %v1052, 0.0
    %1074 = vadd.xlane.f32.xlu0 %v1073
    %v1075 = vpop.xlane.xlu0 %1074
    %v1076 = vsel %vm384, %v1054, 0.0
    %1077 = vadd.xlane.f32.xlu0 %v1076
    %v1078 = vpop.xlane.xlu0 %1077
    %v1079 = vrcp.pop %v1057
    %v1080 = vmul.f32 %v1040, %v1079
    %v1081 = vrcp.pop %v1060
    %v1082 = vmul.f32 %v1042, %v1081
    %v1083 = vrcp.pop %v1063
    %v1084 = vmul.f32 %v1044, %v1083
    %v1085 = vrcp.pop %v1066
    %v1086 = vmul.f32 %v1046, %v1085
    %v1087 = vrcp.pop %v1069
    %v1088 = vmul.f32 %v1048, %v1087
    %v1089 = vrcp.pop %v1072
    %v1090 = vmul.f32 %v1050, %v1089
    %v1091 = vrcp.pop %v1075
    %v1092 = vmul.f32 %v1052, %v1091
    %v1093 = vrcp.pop %v1078
    %v1094 = vmul.f32 %v1054, %v1093
    %1095 = vrot.lane.b32.xlu0 %v360, 64
    %v1096 = vpop.permute.xlu0 %1095
    %v1099 = vsel %vm384, %v1080, 0
    %1101 = vmatprep.subr.mxu0 0.0
    %1102 = vmatpush1.msra.mxu0 0.0
    %1103 = vmatprep.subr.mxu0 0.0
    %1104 = vmatpush1.msra.mxu0 0.0
    %1105 = vmatprep.subr.mxu0 0.0
    %1106 = vmatpush1.msra.mxu0 0.0
    %1107 = vmatprep.subr.mxu0 0.0
    %1108 = vmatpush1.msra.mxu0 0.0
    %1109 = vmatprep.subr.mxu0 0.0
    %1110 = vmatpush1.msra.mxu0 0.0
    %1111 = vmatprep.subr.mxu0 0.0
    %1112 = vmatpush1.msra.mxu0 0.0
    %1113 = vmatprep.subr.mxu0 0.0
    %1114 = vmatpush1.msra.mxu0 0.0
    %1115 = vmatprep.subr.mxu0 0.0
    %1116 = vmatpush1.msra.mxu0 0.0
    %1117 = vmatprep.subr.mxu0 0.0
    %1118 = vmatpush1.msra.mxu0 0.0
    %1119 = vmatprep.subr.mxu0 0.0
    %1120 = vmatpush1.msra.mxu0 0.0
    %1121 = vmatprep.subr.mxu0 0.0
    %1122 = vmatpush1.msra.mxu0 0.0
    %1123 = vmatprep.subr.mxu0 0.0
    %1124 = vmatpush1.msra.mxu0 0.0
    %1125 = vmatprep.subr.mxu0 0.0
    %1126 = vmatpush1.msra.mxu0 0.0
    %1127 = vmatprep.subr.mxu0 0.0
    %1128 = vmatpush1.msra.mxu0 0.0
    %1129 = vmatprep.subr.mxu0 0.0
    %1130 = vmatpush1.msra.mxu0 0.0
    %1131 = vmatprep.subr.mxu0 0.0
    %1132 = vmatpush1.msra.mxu0 %v1096
    %1133 = vmatprep.subr.mxu0 0.0
    %1134 = vmatpush2.msra.mxu0 0.0
    %1135 = vmatprep.subr.mxu0 0.0
    %1136 = vmatpush2.msra.mxu0 0.0
    %1137 = vmatprep.subr.mxu0 0.0
    %1138 = vmatpush2.msra.mxu0 0.0
    %1139 = vmatprep.subr.mxu0 0.0
    %1140 = vmatpush2.msra.mxu0 0.0
    %1141 = vmatprep.subr.mxu0 0.0
    %1142 = vmatpush2.msra.mxu0 0.0
    %1143 = vmatprep.subr.mxu0 0.0
    %1144 = vmatpush2.msra.mxu0 0.0
    %1145 = vmatprep.subr.mxu0 0.0
    %1146 = vmatpush2.msra.mxu0 0.0
    %1147 = vmatprep.subr.mxu0 0.0
    %1148 = vmatpush2.msra.mxu0 0.0
    %1149 = vmatprep.subr.mxu0 0.0
    %1150 = vmatpush2.msra.mxu0 0.0
    %1151 = vmatprep.subr.mxu0 0.0
    %1152 = vmatpush2.msra.mxu0 0.0
    %1153 = vmatprep.subr.mxu0 0.0
    %1154 = vmatpush2.msra.mxu0 0.0
    %1155 = vmatprep.subr.mxu0 0.0
    %1156 = vmatpush2.msra.mxu0 0.0
    %1157 = vmatprep.subr.mxu0 0.0
    %1158 = vmatpush2.msra.mxu0 0.0
    %1159 = vmatprep.subr.mxu0 0.0
    %1160 = vmatpush2.msra.mxu0 0.0
    %1161 = vmatprep.subr.mxu0 0.0
    %1162 = vmatpush2.msra.mxu0 0.0
    %1163 = vmatprep.subr.mxu0 0.0
    %1164 = vmatpush2.msra.mxu0 0.0
    %1165 = vmatprep.mubr.f32.mxu0 0.0
    %1166 = vmatmul.mubr.f32.gmra.mxu0 %v1099
    %v1167 = vpop.f32.mrf.mxu0
    %v1168 = vadd.f32 0.0, %v1167
    %v1169 = vpop.f32.mrf.mxu0
    %1170 = vdwg.mxu0
    %1171 = vrot.lane.b32.xlu0 %v370, 64
    %v1172 = vpop.permute.xlu0 %1171
    %v1175 = vsel %vm384, %v1082, 0
    %1177 = vmatprep.subr.mxu0 0.0
    %1178 = vmatpush1.msra.mxu0 0.0
    %1179 = vmatprep.subr.mxu0 0.0
    %1180 = vmatpush1.msra.mxu0 0.0
    %1181 = vmatprep.subr.mxu0 0.0
    %1182 = vmatpush1.msra.mxu0 0.0
    %1183 = vmatprep.subr.mxu0 0.0
    %1184 = vmatpush1.msra.mxu0 0.0
    %1185 = vmatprep.subr.mxu0 0.0
    %1186 = vmatpush1.msra.mxu0 0.0
    %1187 = vmatprep.subr.mxu0 0.0
    %1188 = vmatpush1.msra.mxu0 0.0
    %1189 = vmatprep.subr.mxu0 0.0
    %1190 = vmatpush1.msra.mxu0 0.0
    %1191 = vmatprep.subr.mxu0 0.0
    %1192 = vmatpush1.msra.mxu0 0.0
    %1193 = vmatprep.subr.mxu0 0.0
    %1194 = vmatpush1.msra.mxu0 0.0
    %1195 = vmatprep.subr.mxu0 0.0
    %1196 = vmatpush1.msra.mxu0 0.0
    %1197 = vmatprep.subr.mxu0 0.0
    %1198 = vmatpush1.msra.mxu0 0.0
    %1199 = vmatprep.subr.mxu0 0.0
    %1200 = vmatpush1.msra.mxu0 0.0
    %1201 = vmatprep.subr.mxu0 0.0
    %1202 = vmatpush1.msra.mxu0 0.0
    %1203 = vmatprep.subr.mxu0 0.0
    %1204 = vmatpush1.msra.mxu0 0.0
    %1205 = vmatprep.subr.mxu0 0.0
    %1206 = vmatpush1.msra.mxu0 0.0
    %1207 = vmatprep.subr.mxu0 0.0
    %1208 = vmatpush1.msra.mxu0 %v1172
    %1209 = vmatprep.subr.mxu0 0.0
    %1210 = vmatpush2.msra.mxu0 0.0
    %1211 = vmatprep.subr.mxu0 0.0
    %1212 = vmatpush2.msra.mxu0 0.0
    %1213 = vmatprep.subr.mxu0 0.0
    %1214 = vmatpush2.msra.mxu0 0.0
    %1215 = vmatprep.subr.mxu0 0.0
    %1216 = vmatpush2.msra.mxu0 0.0
    %1217 = vmatprep.subr.mxu0 0.0
    %1218 = vmatpush2.msra.mxu0 0.0
    %1219 = vmatprep.subr.mxu0 0.0
    %1220 = vmatpush2.msra.mxu0 0.0
    %1221 = vmatprep.subr.mxu0 0.0
    %1222 = vmatpush2.msra.mxu0 0.0
    %1223 = vmatprep.subr.mxu0 0.0
    %1224 = vmatpush2.msra.mxu0 0.0
    %1225 = vmatprep.subr.mxu0 0.0
    %1226 = vmatpush2.msra.mxu0 0.0
    %1227 = vmatprep.subr.mxu0 0.0
    %1228 = vmatpush2.msra.mxu0 0.0
    %1229 = vmatprep.subr.mxu0 0.0
    %1230 = vmatpush2.msra.mxu0 0.0
    %1231 = vmatprep.subr.mxu0 0.0
    %1232 = vmatpush2.msra.mxu0 0.0
    %1233 = vmatprep.subr.mxu0 0.0
    %1234 = vmatpush2.msra.mxu0 0.0
    %1235 = vmatprep.subr.mxu0 0.0
    %1236 = vmatpush2.msra.mxu0 0.0
    %1237 = vmatprep.subr.mxu0 0.0
    %1238 = vmatpush2.msra.mxu0 0.0
    %1239 = vmatprep.subr.mxu0 0.0
    %1240 = vmatpush2.msra.mxu0 0.0
    %1241 = vmatprep.mubr.f32.mxu0 0.0
    %1242 = vmatmul.mubr.f32.gmra.mxu0 %v1175
    %v1243 = vpop.f32.mrf.mxu0
    %v1244 = vadd.f32 0.0, %v1243
    %v1245 = vpop.f32.mrf.mxu0
    %1246 = vdwg.mxu0
    %1247 = vrot.lane.b32.xlu0 %v372, 64
    %v1248 = vpop.permute.xlu0 %1247
    %v1251 = vsel %vm384, %v1084, 0
    %1253 = vmatprep.subr.mxu0 0.0
    %1254 = vmatpush1.msra.mxu0 0.0
    %1255 = vmatprep.subr.mxu0 0.0
    %1256 = vmatpush1.msra.mxu0 0.0
    %1257 = vmatprep.subr.mxu0 0.0
    %1258 = vmatpush1.msra.mxu0 0.0
    %1259 = vmatprep.subr.mxu0 0.0
    %1260 = vmatpush1.msra.mxu0 0.0
    %1261 = vmatprep.subr.mxu0 0.0
    %1262 = vmatpush1.msra.mxu0 0.0
    %1263 = vmatprep.subr.mxu0 0.0
    %1264 = vmatpush1.msra.mxu0 0.0
    %1265 = vmatprep.subr.mxu0 0.0
    %1266 = vmatpush1.msra.mxu0 0.0
    %1267 = vmatprep.subr.mxu0 0.0
    %1268 = vmatpush1.msra.mxu0 0.0
    %1269 = vmatprep.subr.mxu0 0.0
    %1270 = vmatpush1.msra.mxu0 0.0
    %1271 = vmatprep.subr.mxu0 0.0
    %1272 = vmatpush1.msra.mxu0 0.0
    %1273 = vmatprep.subr.mxu0 0.0
    %1274 = vmatpush1.msra.mxu0 0.0
    %1275 = vmatprep.subr.mxu0 0.0
    %1276 = vmatpush1.msra.mxu0 0.0
    %1277 = vmatprep.subr.mxu0 0.0
    %1278 = vmatpush1.msra.mxu0 0.0
    %1279 = vmatprep.subr.mxu0 0.0
    %1280 = vmatpush1.msra.mxu0 0.0
    %1281 = vmatprep.subr.mxu0 0.0
    %1282 = vmatpush1.msra.mxu0 0.0
    %1283 = vmatprep.subr.mxu0 0.0
    %1284 = vmatpush1.msra.mxu0 %v1248
    %1285 = vmatprep.subr.mxu0 0.0
    %1286 = vmatpush2.msra.mxu0 0.0
    %1287 = vmatprep.subr.mxu0 0.0
    %1288 = vmatpush2.msra.mxu0 0.0
    %1289 = vmatprep.subr.mxu0 0.0
    %1290 = vmatpush2.msra.mxu0 0.0
    %1291 = vmatprep.subr.mxu0 0.0
    %1292 = vmatpush2.msra.mxu0 0.0
    %1293 = vmatprep.subr.mxu0 0.0
    %1294 = vmatpush2.msra.mxu0 0.0
    %1295 = vmatprep.subr.mxu0 0.0
    %1296 = vmatpush2.msra.mxu0 0.0
    %1297 = vmatprep.subr.mxu0 0.0
    %1298 = vmatpush2.msra.mxu0 0.0
    %1299 = vmatprep.subr.mxu0 0.0
    %1300 = vmatpush2.msra.mxu0 0.0
    %1301 = vmatprep.subr.mxu0 0.0
    %1302 = vmatpush2.msra.mxu0 0.0
    %1303 = vmatprep.subr.mxu0 0.0
    %1304 = vmatpush2.msra.mxu0 0.0
    %1305 = vmatprep.subr.mxu0 0.0
    %1306 = vmatpush2.msra.mxu0 0.0
    %1307 = vmatprep.subr.mxu0 0.0
    %1308 = vmatpush2.msra.mxu0 0.0
    %1309 = vmatprep.subr.mxu0 0.0
    %1310 = vmatpush2.msra.mxu0 0.0
    %1311 = vmatprep.subr.mxu0 0.0
    %1312 = vmatpush2.msra.mxu0 0.0
    %1313 = vmatprep.subr.mxu0 0.0
    %1314 = vmatpush2.msra.mxu0 0.0
    %1315 = vmatprep.subr.mxu0 0.0
    %1316 = vmatpush2.msra.mxu0 0.0
    %1317 = vmatprep.mubr.f32.mxu0 0.0
    %1318 = vmatmul.mubr.f32.gmra.mxu0 %v1251
    %v1319 = vpop.f32.mrf.mxu0
    %v1320 = vadd.f32 0.0, %v1319
    %v1321 = vpop.f32.mrf.mxu0
    %1322 = vdwg.mxu0
    %1323 = vrot.lane.b32.xlu0 %v374, 64
    %v1324 = vpop.permute.xlu0 %1323
    %v1327 = vsel %vm384, %v1086, 0
    %1329 = vmatprep.subr.mxu0 0.0
    %1330 = vmatpush1.msra.mxu0 0.0
    %1331 = vmatprep.subr.mxu0 0.0
    %1332 = vmatpush1.msra.mxu0 0.0
    %1333 = vmatprep.subr.mxu0 0.0
    %1334 = vmatpush1.msra.mxu0 0.0
    %1335 = vmatprep.subr.mxu0 0.0
    %1336 = vmatpush1.msra.mxu0 0.0
    %1337 = vmatprep.subr.mxu0 0.0
    %1338 = vmatpush1.msra.mxu0 0.0
    %1339 = vmatprep.subr.mxu0 0.0
    %1340 = vmatpush1.msra.mxu0 0.0
    %1341 = vmatprep.subr.mxu0 0.0
    %1342 = vmatpush1.msra.mxu0 0.0
    %1343 = vmatprep.subr.mxu0 0.0
    %1344 = vmatpush1.msra.mxu0 0.0
    %1345 = vmatprep.subr.mxu0 0.0
    %1346 = vmatpush1.msra.mxu0 0.0
    %1347 = vmatprep.subr.mxu0 0.0
    %1348 = vmatpush1.msra.mxu0 0.0
    %1349 = vmatprep.subr.mxu0 0.0
    %1350 = vmatpush1.msra.mxu0 0.0
    %1351 = vmatprep.subr.mxu0 0.0
    %1352 = vmatpush1.msra.mxu0 0.0
    %1353 = vmatprep.subr.mxu0 0.0
    %1354 = vmatpush1.msra.mxu0 0.0
    %1355 = vmatprep.subr.mxu0 0.0
    %1356 = vmatpush1.msra.mxu0 0.0
    %1357 = vmatprep.subr.mxu0 0.0
    %1358 = vmatpush1.msra.mxu0 0.0
    %1359 = vmatprep.subr.mxu0 0.0
    %1360 = vmatpush1.msra.mxu0 %v1324
    %1361 = vmatprep.subr.mxu0 0.0
    %1362 = vmatpush2.msra.mxu0 0.0
    %1363 = vmatprep.subr.mxu0 0.0
    %1364 = vmatpush2.msra.mxu0 0.0
    %1365 = vmatprep.subr.mxu0 0.0
    %1366 = vmatpush2.msra.mxu0 0.0
    %1367 = vmatprep.subr.mxu0 0.0
    %1368 = vmatpush2.msra.mxu0 0.0
    %1369 = vmatprep.subr.mxu0 0.0
    %1370 = vmatpush2.msra.mxu0 0.0
    %1371 = vmatprep.subr.mxu0 0.0
    %1372 = vmatpush2.msra.mxu0 0.0
    %1373 = vmatprep.subr.mxu0 0.0
    %1374 = vmatpush2.msra.mxu0 0.0
    %1375 = vmatprep.subr.mxu0 0.0
    %1376 = vmatpush2.msra.mxu0 0.0
    %1377 = vmatprep.subr.mxu0 0.0
    %1378 = vmatpush2.msra.mxu0 0.0
    %1379 = vmatprep.subr.mxu0 0.0
    %1380 = vmatpush2.msra.mxu0 0.0
    %1381 = vmatprep.subr.mxu0 0.0
    %1382 = vmatpush2.msra.mxu0 0.0
    %1383 = vmatprep.subr.mxu0 0.0
    %1384 = vmatpush2.msra.mxu0 0.0
    %1385 = vmatprep.subr.mxu0 0.0
    %1386 = vmatpush2.msra.mxu0 0.0
    %1387 = vmatprep.subr.mxu0 0.0
    %1388 = vmatpush2.msra.mxu0 0.0
    %1389 = vmatprep.subr.mxu0 0.0
    %1390 = vmatpush2.msra.mxu0 0.0
    %1391 = vmatprep.subr.mxu0 0.0
    %1392 = vmatpush2.msra.mxu0 0.0
    %1393 = vmatprep.mubr.f32.mxu0 0.0
    %1394 = vmatmul.mubr.f32.gmra.mxu0 %v1327
    %v1395 = vpop.f32.mrf.mxu0
    %v1396 = vadd.f32 0.0, %v1395
    %v1397 = vpop.f32.mrf.mxu0
    %1398 = vdwg.mxu0
    %1399 = vrot.lane.b32.xlu0 %v365, 64
    %v1400 = vpop.permute.xlu0 %1399
    %v1403 = vsel %vm384, %v1088, 0
    %1405 = vmatprep.subr.mxu0 0.0
    %1406 = vmatpush1.msra.mxu0 0.0
    %1407 = vmatprep.subr.mxu0 0.0
    %1408 = vmatpush1.msra.mxu0 0.0
    %1409 = vmatprep.subr.mxu0 0.0
    %1410 = vmatpush1.msra.mxu0 0.0
    %1411 = vmatprep.subr.mxu0 0.0
    %1412 = vmatpush1.msra.mxu0 0.0
    %1413 = vmatprep.subr.mxu0 0.0
    %1414 = vmatpush1.msra.mxu0 0.0
    %1415 = vmatprep.subr.mxu0 0.0
    %1416 = vmatpush1.msra.mxu0 0.0
    %1417 = vmatprep.subr.mxu0 0.0
    %1418 = vmatpush1.msra.mxu0 0.0
    %1419 = vmatprep.subr.mxu0 0.0
    %1420 = vmatpush1.msra.mxu0 0.0
    %1421 = vmatprep.subr.mxu0 0.0
    %1422 = vmatpush1.msra.mxu0 0.0
    %1423 = vmatprep.subr.mxu0 0.0
    %1424 = vmatpush1.msra.mxu0 0.0
    %1425 = vmatprep.subr.mxu0 0.0
    %1426 = vmatpush1.msra.mxu0 0.0
    %1427 = vmatprep.subr.mxu0 0.0
    %1428 = vmatpush1.msra.mxu0 0.0
    %1429 = vmatprep.subr.mxu0 0.0
    %1430 = vmatpush1.msra.mxu0 0.0
    %1431 = vmatprep.subr.mxu0 0.0
    %1432 = vmatpush1.msra.mxu0 0.0
    %1433 = vmatprep.subr.mxu0 0.0
    %1434 = vmatpush1.msra.mxu0 0.0
    %1435 = vmatprep.subr.mxu0 0.0
    %1436 = vmatpush1.msra.mxu0 %v1400
    %1437 = vmatprep.subr.mxu0 0.0
    %1438 = vmatpush2.msra.mxu0 0.0
    %1439 = vmatprep.subr.mxu0 0.0
    %1440 = vmatpush2.msra.mxu0 0.0
    %1441 = vmatprep.subr.mxu0 0.0
    %1442 = vmatpush2.msra.mxu0 0.0
    %1443 = vmatprep.subr.mxu0 0.0
    %1444 = vmatpush2.msra.mxu0 0.0
    %1445 = vmatprep.subr.mxu0 0.0
    %1446 = vmatpush2.msra.mxu0 0.0
    %1447 = vmatprep.subr.mxu0 0.0
    %1448 = vmatpush2.msra.mxu0 0.0
    %1449 = vmatprep.subr.mxu0 0.0
    %1450 = vmatpush2.msra.mxu0 0.0
    %1451 = vmatprep.subr.mxu0 0.0
    %1452 = vmatpush2.msra.mxu0 0.0
    %1453 = vmatprep.subr.mxu0 0.0
    %1454 = vmatpush2.msra.mxu0 0.0
    %1455 = vmatprep.subr.mxu0 0.0
    %1456 = vmatpush2.msra.mxu0 0.0
    %1457 = vmatprep.subr.mxu0 0.0
    %1458 = vmatpush2.msra.mxu0 0.0
    %1459 = vmatprep.subr.mxu0 0.0
    %1460 = vmatpush2.msra.mxu0 0.0
    %1461 = vmatprep.subr.mxu0 0.0
    %1462 = vmatpush2.msra.mxu0 0.0
    %1463 = vmatprep.subr.mxu0 0.0
    %1464 = vmatpush2.msra.mxu0 0.0
    %1465 = vmatprep.subr.mxu0 0.0
    %1466 = vmatpush2.msra.mxu0 0.0
    %1467 = vmatprep.subr.mxu0 0.0
    %1468 = vmatpush2.msra.mxu0 0.0
    %1469 = vmatprep.mubr.f32.mxu0 0.0
    %1470 = vmatmul.mubr.f32.gmra.mxu0 %v1403
    %v1471 = vpop.f32.mrf.mxu0
    %v1472 = vadd.f32 0.0, %v1471
    %v1473 = vpop.f32.mrf.mxu0
    %1474 = vdwg.mxu0
    %1475 = vrot.lane.b32.xlu0 %v377, 64
    %v1476 = vpop.permute.xlu0 %1475
    %v1479 = vsel %vm384, %v1090, 0
    %1481 = vmatprep.subr.mxu0 0.0
    %1482 = vmatpush1.msra.mxu0 0.0
    %1483 = vmatprep.subr.mxu0 0.0
    %1484 = vmatpush1.msra.mxu0 0.0
    %1485 = vmatprep.subr.mxu0 0.0
    %1486 = vmatpush1.msra.mxu0 0.0
    %1487 = vmatprep.subr.mxu0 0.0
    %1488 = vmatpush1.msra.mxu0 0.0
    %1489 = vmatprep.subr.mxu0 0.0
    %1490 = vmatpush1.msra.mxu0 0.0
    %1491 = vmatprep.subr.mxu0 0.0
    %1492 = vmatpush1.msra.mxu0 0.0
    %1493 = vmatprep.subr.mxu0 0.0
    %1494 = vmatpush1.msra.mxu0 0.0
    %1495 = vmatprep.subr.mxu0 0.0
    %1496 = vmatpush1.msra.mxu0 0.0
    %1497 = vmatprep.subr.mxu0 0.0
    %1498 = vmatpush1.msra.mxu0 0.0
    %1499 = vmatprep.subr.mxu0 0.0
    %1500 = vmatpush1.msra.mxu0 0.0
    %1501 = vmatprep.subr.mxu0 0.0
    %1502 = vmatpush1.msra.mxu0 0.0
    %1503 = vmatprep.subr.mxu0 0.0
    %1504 = vmatpush1.msra.mxu0 0.0
    %1505 = vmatprep.subr.mxu0 0.0
    %1506 = vmatpush1.msra.mxu0 0.0
    %1507 = vmatprep.subr.mxu0 0.0
    %1508 = vmatpush1.msra.mxu0 0.0
    %1509 = vmatprep.subr.mxu0 0.0
    %1510 = vmatpush1.msra.mxu0 0.0
    %1511 = vmatprep.subr.mxu0 0.0
    %1512 = vmatpush1.msra.mxu0 %v1476
    %1513 = vmatprep.subr.mxu0 0.0
    %1514 = vmatpush2.msra.mxu0 0.0
    %1515 = vmatprep.subr.mxu0 0.0
    %1516 = vmatpush2.msra.mxu0 0.0
    %1517 = vmatprep.subr.mxu0 0.0
    %1518 = vmatpush2.msra.mxu0 0.0
    %1519 = vmatprep.subr.mxu0 0.0
    %1520 = vmatpush2.msra.mxu0 0.0
    %1521 = vmatprep.subr.mxu0 0.0
    %1522 = vmatpush2.msra.mxu0 0.0
    %1523 = vmatprep.subr.mxu0 0.0
    %1524 = vmatpush2.msra.mxu0 0.0
    %1525 = vmatprep.subr.mxu0 0.0
    %1526 = vmatpush2.msra.mxu0 0.0
    %1527 = vmatprep.subr.mxu0 0.0
    %1528 = vmatpush2.msra.mxu0 0.0
    %1529 = vmatprep.subr.mxu0 0.0
    %1530 = vmatpush2.msra.mxu0 0.0
    %1531 = vmatprep.subr.mxu0 0.0
    %1532 = vmatpush2.msra.mxu0 0.0
    %1533 = vmatprep.subr.mxu0 0.0
    %1534 = vmatpush2.msra.mxu0 0.0
    %1535 = vmatprep.subr.mxu0 0.0
    %1536 = vmatpush2.msra.mxu0 0.0
    %1537 = vmatprep.subr.mxu0 0.0
    %1538 = vmatpush2.msra.mxu0 0.0
    %1539 = vmatprep.subr.mxu0 0.0
    %1540 = vmatpush2.msra.mxu0 0.0
    %1541 = vmatprep.subr.mxu0 0.0
    %1542 = vmatpush2.msra.mxu0 0.0
    %1543 = vmatprep.subr.mxu0 0.0
    %1544 = vmatpush2.msra.mxu0 0.0
    %1545 = vmatprep.mubr.f32.mxu0 0.0
    %1546 = vmatmul.mubr.f32.gmra.mxu0 %v1479
    %v1547 = vpop.f32.mrf.mxu0
    %v1548 = vadd.f32 0.0, %v1547
    %v1549 = vpop.f32.mrf.mxu0
    %1550 = vdwg.mxu0
    %1551 = vrot.lane.b32.xlu0 %v379, 64
    %v1552 = vpop.permute.xlu0 %1551
    %v1555 = vsel %vm384, %v1092, 0
    %1557 = vmatprep.subr.mxu0 0.0
    %1558 = vmatpush1.msra.mxu0 0.0
    %1559 = vmatprep.subr.mxu0 0.0
    %1560 = vmatpush1.msra.mxu0 0.0
    %1561 = vmatprep.subr.mxu0 0.0
    %1562 = vmatpush1.msra.mxu0 0.0
    %1563 = vmatprep.subr.mxu0 0.0
    %1564 = vmatpush1.msra.mxu0 0.0
    %1565 = vmatprep.subr.mxu0 0.0
    %1566 = vmatpush1.msra.mxu0 0.0
    %1567 = vmatprep.subr.mxu0 0.0
    %1568 = vmatpush1.msra.mxu0 0.0
    %1569 = vmatprep.subr.mxu0 0.0
    %1570 = vmatpush1.msra.mxu0 0.0
    %1571 = vmatprep.subr.mxu0 0.0
    %1572 = vmatpush1.msra.mxu0 0.0
    %1573 = vmatprep.subr.mxu0 0.0
    %1574 = vmatpush1.msra.mxu0 0.0
    %1575 = vmatprep.subr.mxu0 0.0
    %1576 = vmatpush1.msra.mxu0 0.0
    %1577 = vmatprep.subr.mxu0 0.0
    %1578 = vmatpush1.msra.mxu0 0.0
    %1579 = vmatprep.subr.mxu0 0.0
    %1580 = vmatpush1.msra.mxu0 0.0
    %1581 = vmatprep.subr.mxu0 0.0
    %1582 = vmatpush1.msra.mxu0 0.0
    %1583 = vmatprep.subr.mxu0 0.0
    %1584 = vmatpush1.msra.mxu0 0.0
    %1585 = vmatprep.subr.mxu0 0.0
    %1586 = vmatpush1.msra.mxu0 0.0
    %1587 = vmatprep.subr.mxu0 0.0
    %1588 = vmatpush1.msra.mxu0 %v1552
    %1589 = vmatprep.subr.mxu0 0.0
    %1590 = vmatpush2.msra.mxu0 0.0
    %1591 = vmatprep.subr.mxu0 0.0
    %1592 = vmatpush2.msra.mxu0 0.0
    %1593 = vmatprep.subr.mxu0 0.0
    %1594 = vmatpush2.msra.mxu0 0.0
    %1595 = vmatprep.subr.mxu0 0.0
    %1596 = vmatpush2.msra.mxu0 0.0
    %1597 = vmatprep.subr.mxu0 0.0
    %1598 = vmatpush2.msra.mxu0 0.0
    %1599 = vmatprep.subr.mxu0 0.0
    %1600 = vmatpush2.msra.mxu0 0.0
    %1601 = vmatprep.subr.mxu0 0.0
    %1602 = vmatpush2.msra.mxu0 0.0
    %1603 = vmatprep.subr.mxu0 0.0
    %1604 = vmatpush2.msra.mxu0 0.0
    %1605 = vmatprep.subr.mxu0 0.0
    %1606 = vmatpush2.msra.mxu0 0.0
    %1607 = vmatprep.subr.mxu0 0.0
    %1608 = vmatpush2.msra.mxu0 0.0
    %1609 = vmatprep.subr.mxu0 0.0
    %1610 = vmatpush2.msra.mxu0 0.0
    %1611 = vmatprep.subr.mxu0 0.0
    %1612 = vmatpush2.msra.mxu0 0.0
    %1613 = vmatprep.subr.mxu0 0.0
    %1614 = vmatpush2.msra.mxu0 0.0
    %1615 = vmatprep.subr.mxu0 0.0
    %1616 = vmatpush2.msra.mxu0 0.0
    %1617 = vmatprep.subr.mxu0 0.0
    %1618 = vmatpush2.msra.mxu0 0.0
    %1619 = vmatprep.subr.mxu0 0.0
    %1620 = vmatpush2.msra.mxu0 0.0
    %1621 = vmatprep.mubr.f32.mxu0 0.0
    %1622 = vmatmul.mubr.f32.gmra.mxu0 %v1555
    %v1623 = vpop.f32.mrf.mxu0
    %v1624 = vadd.f32 0.0, %v1623
    %v1625 = vpop.f32.mrf.mxu0
    %1626 = vdwg.mxu0
    %1627 = vrot.lane.b32.xlu0 %v381, 64
    %v1628 = vpop.permute.xlu0 %1627
    %v1631 = vsel %vm384, %v1094, 0
    %1633 = vmatprep.subr.mxu0 0.0
    %1634 = vmatpush1.msra.mxu0 0.0
    %1635 = vmatprep.subr.mxu0 0.0
    %1636 = vmatpush1.msra.mxu0 0.0
    %1637 = vmatprep.subr.mxu0 0.0
    %1638 = vmatpush1.msra.mxu0 0.0
    %1639 = vmatprep.subr.mxu0 0.0
    %1640 = vmatpush1.msra.mxu0 0.0
    %1641 = vmatprep.subr.mxu0 0.0
    %1642 = vmatpush1.msra.mxu0 0.0
    %1643 = vmatprep.subr.mxu0 0.0
    %1644 = vmatpush1.msra.mxu0 0.0
    %1645 = vmatprep.subr.mxu0 0.0
    %1646 = vmatpush1.msra.mxu0 0.0
    %1647 = vmatprep.subr.mxu0 0.0
    %1648 = vmatpush1.msra.mxu0 0.0
    %1649 = vmatprep.subr.mxu0 0.0
    %1650 = vmatpush1.msra.mxu0 0.0
    %1651 = vmatprep.subr.mxu0 0.0
    %1652 = vmatpush1.msra.mxu0 0.0
    %1653 = vmatprep.subr.mxu0 0.0
    %1654 = vmatpush1.msra.mxu0 0.0
    %1655 = vmatprep.subr.mxu0 0.0
    %1656 = vmatpush1.msra.mxu0 0.0
    %1657 = vmatprep.subr.mxu0 0.0
    %1658 = vmatpush1.msra.mxu0 0.0
    %1659 = vmatprep.subr.mxu0 0.0
    %1660 = vmatpush1.msra.mxu0 0.0
    %1661 = vmatprep.subr.mxu0 0.0
    %1662 = vmatpush1.msra.mxu0 0.0
    %1663 = vmatprep.subr.mxu0 0.0
    %1664 = vmatpush1.msra.mxu0 %v1628
    %1665 = vmatprep.subr.mxu0 0.0
    %1666 = vmatpush2.msra.mxu0 0.0
    %1667 = vmatprep.subr.mxu0 0.0
    %1668 = vmatpush2.msra.mxu0 0.0
    %1669 = vmatprep.subr.mxu0 0.0
    %1670 = vmatpush2.msra.mxu0 0.0
    %1671 = vmatprep.subr.mxu0 0.0
    %1672 = vmatpush2.msra.mxu0 0.0
    %1673 = vmatprep.subr.mxu0 0.0
    %1674 = vmatpush2.msra.mxu0 0.0
    %1675 = vmatprep.subr.mxu0 0.0
    %1676 = vmatpush2.msra.mxu0 0.0
    %1677 = vmatprep.subr.mxu0 0.0
    %1678 = vmatpush2.msra.mxu0 0.0
    %1679 = vmatprep.subr.mxu0 0.0
    %1680 = vmatpush2.msra.mxu0 0.0
    %1681 = vmatprep.subr.mxu0 0.0
    %1682 = vmatpush2.msra.mxu0 0.0
    %1683 = vmatprep.subr.mxu0 0.0
    %1684 = vmatpush2.msra.mxu0 0.0
    %1685 = vmatprep.subr.mxu0 0.0
    %1686 = vmatpush2.msra.mxu0 0.0
    %1687 = vmatprep.subr.mxu0 0.0
    %1688 = vmatpush2.msra.mxu0 0.0
    %1689 = vmatprep.subr.mxu0 0.0
    %1690 = vmatpush2.msra.mxu0 0.0
    %1691 = vmatprep.subr.mxu0 0.0
    %1692 = vmatpush2.msra.mxu0 0.0
    %1693 = vmatprep.subr.mxu0 0.0
    %1694 = vmatpush2.msra.mxu0 0.0
    %1695 = vmatprep.subr.mxu0 0.0
    %1696 = vmatpush2.msra.mxu0 0.0
    %1697 = vmatprep.mubr.f32.mxu0 0.0
    %1698 = vmatmul.mubr.f32.gmra.mxu0 %v1631
    %v1699 = vpop.f32.mrf.mxu0
    %v1700 = vadd.f32 0.0, %v1699
    %v1701 = vpop.f32.mrf.mxu0
    %1702 = vdwg.mxu0
    %1704 = vrot.lane.b32.xlu0 %v1244, 8
    %v1705 = vpop.permute.xlu0 %1704
    %1708 = vrot.lane.b32.xlu0 %v1320, 16
    %v1709 = vpop.permute.xlu0 %1708
    %1712 = vrot.lane.b32.xlu0 %v1396, 24
    %v1713 = vpop.permute.xlu0 %1712
    %v1715 = vsel %vm384, %v1168, %v1705
    %vm1716 = vcmask 130048
    %v1717 = vsel %vm1716, %v1715, %v1709
    %vm1718 = vcmask 195584
    %v1719 = vsel %vm1718, %v1717, %v1713
    %1721 = vrot.lane.b32.xlu0 %v1548, 8
    %v1722 = vpop.permute.xlu0 %1721
    %1725 = vrot.lane.b32.xlu0 %v1624, 16
    %v1726 = vpop.permute.xlu0 %1725
    %1729 = vrot.lane.b32.xlu0 %v1700, 24
    %v1730 = vpop.permute.xlu0 %1729
    %v1732 = vsel %vm384, %v1472, %v1722
    %v1733 = vsel %vm1716, %v1732, %v1726
    %v1734 = vsel %vm1718, %v1733, %v1730
    %v1735 = vld [vmem:[%s5] sm:$0xff]
    %v1736 = vld [vmem:[%s5 + $0x8] sm:$0xff]
    %v1737 = vld [vmem:[%s5 + $0x10] sm:$0xff]
    %v1738 = vld [vmem:[%s5 + $0x18] sm:$0xff]
    %v1740 = vsel %vm67, %v1719, 0
    %v1743 = vsel %vm67, %v1734, 0
    %1745 = vmatprep.subr.mxu0 0.0
    %1746 = vmatpush1.msra.mxu0 0.0
    %1747 = vmatprep.subr.mxu0 0.0
    %1748 = vmatpush1.msra.mxu0 0.0
    %1749 = vmatprep.subr.mxu0 0.0
    %1750 = vmatpush1.msra.mxu0 0.0
    %1751 = vmatprep.subr.mxu0 0.0
    %1752 = vmatpush1.msra.mxu0 0.0
    %1753 = vmatprep.subr.mxu0 0.0
    %1754 = vmatpush1.msra.mxu0 0.0
    %1755 = vmatprep.subr.mxu0 0.0
    %1756 = vmatpush1.msra.mxu0 0.0
    %1757 = vmatprep.subr.mxu0 0.0
    %1758 = vmatpush1.msra.mxu0 0.0
    %1759 = vmatprep.subr.mxu0 0.0
    %1760 = vmatpush1.msra.mxu0 0.0
    %1761 = vmatprep.subr.mxu0 0.0
    %1762 = vmatpush1.msra.mxu0 0.0
    %1763 = vmatprep.subr.mxu0 0.0
    %1764 = vmatpush1.msra.mxu0 0.0
    %1765 = vmatprep.subr.mxu0 0.0
    %1766 = vmatpush1.msra.mxu0 0.0
    %1767 = vmatprep.subr.mxu0 0.0
    %1768 = vmatpush1.msra.mxu0 0.0
    %1769 = vmatprep.subr.mxu0 0.0
    %1770 = vmatpush1.msra.mxu0 %v1738
    %1771 = vmatprep.subr.mxu0 0.0
    %1772 = vmatpush1.msra.mxu0 %v1737
    %1773 = vmatprep.subr.mxu0 0.0
    %1774 = vmatpush1.msra.mxu0 %v1736
    %1775 = vmatprep.subr.mxu0 0.0
    %1776 = vmatpush1.msra.mxu0 %v1735
    %1777 = vmatprep.subr.mxu0 0.0
    %1778 = vmatpush2.msra.mxu0 0.0
    %1779 = vmatprep.subr.mxu0 0.0
    %1780 = vmatpush2.msra.mxu0 0.0
    %1781 = vmatprep.subr.mxu0 0.0
    %1782 = vmatpush2.msra.mxu0 0.0
    %1783 = vmatprep.subr.mxu0 0.0
    %1784 = vmatpush2.msra.mxu0 0.0
    %1785 = vmatprep.subr.mxu0 0.0
    %1786 = vmatpush2.msra.mxu0 0.0
    %1787 = vmatprep.subr.mxu0 0.0
    %1788 = vmatpush2.msra.mxu0 0.0
    %1789 = vmatprep.subr.mxu0 0.0
    %1790 = vmatpush2.msra.mxu0 0.0
    %1791 = vmatprep.subr.mxu0 0.0
    %1792 = vmatpush2.msra.mxu0 0.0
    %1793 = vmatprep.subr.mxu0 0.0
    %1794 = vmatpush2.msra.mxu0 0.0
    %1795 = vmatprep.subr.mxu0 0.0
    %1796 = vmatpush2.msra.mxu0 0.0
    %1797 = vmatprep.subr.mxu0 0.0
    %1798 = vmatpush2.msra.mxu0 0.0
    %1799 = vmatprep.subr.mxu0 0.0
    %1800 = vmatpush2.msra.mxu0 0.0
    %1801 = vmatprep.subr.mxu0 0.0
    %1802 = vmatpush2.msra.mxu0 0.0
    %1803 = vmatprep.subr.mxu0 0.0
    %1804 = vmatpush2.msra.mxu0 0.0
    %1805 = vmatprep.subr.mxu0 0.0
    %1806 = vmatpush2.msra.mxu0 0.0
    %1807 = vmatprep.subr.mxu0 0.0
    %1808 = vmatpush2.msra.mxu0 0.0
    %1809 = vmatprep.mubr.f32.mxu0 0.0
    %1810 = vmatmul.mubr.f32.gmra.mxu0 %v1740
    %v1811 = vpop.f32.mrf.mxu0
    %v1812 = vadd.f32 0.0, %v1811
    %v1813 = vpop.f32.mrf.mxu0
    %1814 = vmatprep.mubr.f32.mxu0 0.0
    %1815 = vmatmul.mubr.f32.gmra.mxu0 %v1743
    %v1816 = vpop.f32.mrf.mxu0
    %v1817 = vadd.f32 0.0, %v1816
    %v1818 = vpop.f32.mrf.mxu0
    %1819 = vdwg.mxu0
    %v1820 = vadd.f32 %v109, %v1812
    %v1821 = vadd.f32 %v110, %v1817
    %v1822 = vld [vmem:[%s8] sm:$0x1]
    %v1823 = vld [vmem:[%s9] sm:$0x1]
    %v1824 = vsel %vm67, %v1820, 0.0
    %1825 = vadd.xlane.f32.xlu0 %v1824
    %v1826 = vpop.xlane.xlu0 %1825
    %v1827 = vsel %vm67, %v1821, 0.0
    %1828 = vadd.xlane.f32.xlu0 %v1827
    %v1829 = vpop.xlane.xlu0 %1828
    %v1830 = vmul.f32 %v1826, %v74
    %v1831 = vmul.f32 %v1829, %v74
    %v1832 = vsub.f32 %v1820, %v1830
    %v1833 = vsub.f32 %v1821, %v1831
    %v1834 = vmul.f32 %v1832, %v1832
    %v1835 = vmul.f32 %v1833, %v1833
    %v1836 = vsel %vm67, %v1834, 0.0
    %1837 = vadd.xlane.f32.xlu0 %v1836
    %v1838 = vpop.xlane.xlu0 %1837
    %v1839 = vsel %vm67, %v1835, 0.0
    %1840 = vadd.xlane.f32.xlu0 %v1839
    %v1841 = vpop.xlane.xlu0 %1840
    %v1842 = vmul.f32 %v1838, %v74
    %v1843 = vmul.f32 %v1841, %v74
    %v1844 = vadd.f32 %v1842, 1e-05
    %v1845 = vadd.f32 %v1843, 1e-05
    %v1846 = vrsqrt.pop %v1844
    %v1847 = vrsqrt.pop %v1845
    %v1848 = vmul.f32 %v1832, %v1846
    %v1849 = vmul.f32 %v1833, %v1847
    %v1851 = vlaneseq
    %v1852 = vshrl.u32 %v1851, 7
    %v1853 = vsub.s32 0, %v1852
    %v1854 = vrot.slane %v1822, %v1853
    %v1856 = vmul.f32 %v1848, %v1854
    %v1857 = vmul.f32 %v1849, %v1854
    %v1859 = vlaneseq
    %v1860 = vshrl.u32 %v1859, 7
    %v1861 = vsub.s32 0, %v1860
    %v1862 = vrot.slane %v1823, %v1861
    %v1864 = vadd.f32 %v1856, %v1862
    %v1865 = vadd.f32 %v1857, %v1862
    %v1866 = vld [vmem:[%s10] sm:$0xff]
    %v1867 = vld [vmem:[%s10 + $0x8] sm:$0xff]
    %v1868 = vld [vmem:[%s10 + $0x10] sm:$0xff]
    %v1869 = vld [vmem:[%s10 + $0x18] sm:$0xff]
    %v1870 = vld [vmem:[%s11] sm:$0x1]
    %v1872 = vlaneseq
    %v1873 = vshrl.u32 %v1872, 7
    %v1874 = vsub.s32 0, %v1873
    %v1875 = vrot.slane %v1870, %v1874
    %v1878 = vsel %vm67, %v1864, 0
    %v1881 = vsel %vm67, %v1865, 0
    %1883 = vmatprep.subr.mxu0 0.0
    %1884 = vmatpush1.msra.mxu0 0.0
    %1885 = vmatprep.subr.mxu0 0.0
    %1886 = vmatpush1.msra.mxu0 0.0
    %1887 = vmatprep.subr.mxu0 0.0
    %1888 = vmatpush1.msra.mxu0 0.0
    %1889 = vmatprep.subr.mxu0 0.0
    %1890 = vmatpush1.msra.mxu0 0.0
    %1891 = vmatprep.subr.mxu0 0.0
    %1892 = vmatpush1.msra.mxu0 0.0
    %1893 = vmatprep.subr.mxu0 0.0
    %1894 = vmatpush1.msra.mxu0 0.0
    %1895 = vmatprep.subr.mxu0 0.0
    %1896 = vmatpush1.msra.mxu0 0.0
    %1897 = vmatprep.subr.mxu0 0.0
    %1898 = vmatpush1.msra.mxu0 0.0
    %1899 = vmatprep.subr.mxu0 0.0
    %1900 = vmatpush1.msra.mxu0 0.0
    %1901 = vmatprep.subr.mxu0 0.0
    %1902 = vmatpush1.msra.mxu0 0.0
    %1903 = vmatprep.subr.mxu0 0.0
    %1904 = vmatpush1.msra.mxu0 0.0
    %1905 = vmatprep.subr.mxu0 0.0
    %1906 = vmatpush1.msra.mxu0 0.0
    %1907 = vmatprep.subr.mxu0 0.0
    %1908 = vmatpush1.msra.mxu0 %v1869
    %1909 = vmatprep.subr.mxu0 0.0
    %1910 = vmatpush1.msra.mxu0 %v1868
    %1911 = vmatprep.subr.mxu0 0.0
    %1912 = vmatpush1.msra.mxu0 %v1867
    %1913 = vmatprep.subr.mxu0 0.0
    %1914 = vmatpush1.msra.mxu0 %v1866
    %1915 = vmatprep.subr.mxu0 0.0
    %1916 = vmatpush2.msra.mxu0 0.0
    %1917 = vmatprep.subr.mxu0 0.0
    %1918 = vmatpush2.msra.mxu0 0.0
    %1919 = vmatprep.subr.mxu0 0.0
    %1920 = vmatpush2.msra.mxu0 0.0
    %1921 = vmatprep.subr.mxu0 0.0
    %1922 = vmatpush2.msra.mxu0 0.0
    %1923 = vmatprep.subr.mxu0 0.0
    %1924 = vmatpush2.msra.mxu0 0.0
    %1925 = vmatprep.subr.mxu0 0.0
    %1926 = vmatpush2.msra.mxu0 0.0
    %1927 = vmatprep.subr.mxu0 0.0
    %1928 = vmatpush2.msra.mxu0 0.0
    %1929 = vmatprep.subr.mxu0 0.0
    %1930 = vmatpush2.msra.mxu0 0.0
    %1931 = vmatprep.subr.mxu0 0.0
    %1932 = vmatpush2.msra.mxu0 0.0
    %1933 = vmatprep.subr.mxu0 0.0
    %1934 = vmatpush2.msra.mxu0 0.0
    %1935 = vmatprep.subr.mxu0 0.0
    %1936 = vmatpush2.msra.mxu0 0.0
    %1937 = vmatprep.subr.mxu0 0.0
    %1938 = vmatpush2.msra.mxu0 0.0
    %1939 = vmatprep.subr.mxu0 0.0
    %1940 = vmatpush2.msra.mxu0 0.0
    %1941 = vmatprep.subr.mxu0 0.0
    %1942 = vmatpush2.msra.mxu0 0.0
    %1943 = vmatprep.subr.mxu0 0.0
    %1944 = vmatpush2.msra.mxu0 0.0
    %1945 = vmatprep.subr.mxu0 0.0
    %1946 = vmatpush2.msra.mxu0 0.0
    %1947 = vmatprep.mubr.f32.mxu0 0.0
    %1948 = vmatmul.mubr.f32.gmra.mxu0 %v1878
    %v1949 = vpop.f32.mrf.mxu0
    %v1950 = vadd.f32 %v1875, %v1949
    %v1951 = vpop.f32.mrf.mxu0
    %1952 = vmatprep.mubr.f32.mxu0 0.0
    %1953 = vmatmul.mubr.f32.gmra.mxu0 %v1881
    %v1954 = vpop.f32.mrf.mxu0
    %v1955 = vadd.f32 %v1875, %v1954
    %v1956 = vpop.f32.mrf.mxu0
    %1957 = vdwg.mxu0
    %v1958 = vmul.f32 %v1950, 0.5
    %v1959 = vmul.f32 %v1955, 0.5
    %v1960 = vmul.f32 %v1950, 0.70710677
    %v1961 = vmul.f32 %v1955, 0.70710677
    %v1962 = verf.f32.pop %v1960
    %v1963 = verf.f32.pop %v1961
    %v1964 = vadd.f32 %v1962, 1.0
    %v1965 = vadd.f32 %v1963, 1.0
    %v1966 = vmul.f32 %v1958, %v1964
    %v1967 = vmul.f32 %v1959, %v1965
    %v1968 = vld [vmem:[%s12] sm:$0xff]
    %v1969 = vld [vmem:[%s12 + $0x8] sm:$0xff]
    %v1970 = vld [vmem:[%s12 + $0x10] sm:$0xff]
    %v1971 = vld [vmem:[%s12 + $0x18] sm:$0xff]
    %v1972 = vld [vmem:[%s12 + $0x20] sm:$0xff]
    %v1973 = vld [vmem:[%s12 + $0x28] sm:$0xff]
    %v1974 = vld [vmem:[%s12 + $0x30] sm:$0xff]
    %v1975 = vld [vmem:[%s12 + $0x38] sm:$0xff]
    %v1976 = vld [vmem:[%s12 + $0x40] sm:$0xff]
    %v1977 = vld [vmem:[%s12 + $0x48] sm:$0xff]
    %v1978 = vld [vmem:[%s12 + $0x50] sm:$0xff]
    %v1979 = vld [vmem:[%s12 + $0x58] sm:$0xff]
    %v1980 = vld [vmem:[%s12 + $0x60] sm:$0xff]
    %v1981 = vld [vmem:[%s12 + $0x68] sm:$0xff]
    %v1982 = vld [vmem:[%s12 + $0x70] sm:$0xff]
    %v1983 = vld [vmem:[%s12 + $0x78] sm:$0xff]
    %v1984 = vld [vmem:[%s13] sm:$0x1]
    %v1986 = vlaneseq
    %v1987 = vshrl.u32 %v1986, 7
    %v1988 = vsub.s32 0, %v1987
    %v1989 = vrot.slane %v1984, %v1988
    %1991 = vmatprep.subr.mxu0 0.0
    %1992 = vmatpush1.msra.mxu0 %v1983
    %1993 = vmatprep.subr.mxu0 0.0
    %1994 = vmatpush1.msra.mxu0 %v1982
    %1995 = vmatprep.subr.mxu0 0.0
    %1996 = vmatpush1.msra.mxu0 %v1981
    %1997 = vmatprep.subr.mxu0 0.0
    %1998 = vmatpush1.msra.mxu0 %v1980
    %1999 = vmatprep.subr.mxu0 0.0
    %2000 = vmatpush1.msra.mxu0 %v1979
    %2001 = vmatprep.subr.mxu0 0.0
    %2002 = vmatpush1.msra.mxu0 %v1978
    %2003 = vmatprep.subr.mxu0 0.0
    %2004 = vmatpush1.msra.mxu0 %v1977
    %2005 = vmatprep.subr.mxu0 0.0
    %2006 = vmatpush1.msra.mxu0 %v1976
    %2007 = vmatprep.subr.mxu0 0.0
    %2008 = vmatpush1.msra.mxu0 %v1975
    %2009 = vmatprep.subr.mxu0 0.0
    %2010 = vmatpush1.msra.mxu0 %v1974
    %2011 = vmatprep.subr.mxu0 0.0
    %2012 = vmatpush1.msra.mxu0 %v1973
    %2013 = vmatprep.subr.mxu0 0.0
    %2014 = vmatpush1.msra.mxu0 %v1972
    %2015 = vmatprep.subr.mxu0 0.0
    %2016 = vmatpush1.msra.mxu0 %v1971
    %2017 = vmatprep.subr.mxu0 0.0
    %2018 = vmatpush1.msra.mxu0 %v1970
    %2019 = vmatprep.subr.mxu0 0.0
    %2020 = vmatpush1.msra.mxu0 %v1969
    %2021 = vmatprep.subr.mxu0 0.0
    %2022 = vmatpush1.msra.mxu0 %v1968
    %2023 = vmatprep.subr.mxu0 0.0
    %2024 = vmatpush2.msra.mxu0 0.0
    %2025 = vmatprep.subr.mxu0 0.0
    %2026 = vmatpush2.msra.mxu0 0.0
    %2027 = vmatprep.subr.mxu0 0.0
    %2028 = vmatpush2.msra.mxu0 0.0
    %2029 = vmatprep.subr.mxu0 0.0
    %2030 = vmatpush2.msra.mxu0 0.0
    %2031 = vmatprep.subr.mxu0 0.0
    %2032 = vmatpush2.msra.mxu0 0.0
    %2033 = vmatprep.subr.mxu0 0.0
    %2034 = vmatpush2.msra.mxu0 0.0
    %2035 = vmatprep.subr.mxu0 0.0
    %2036 = vmatpush2.msra.mxu0 0.0
    %2037 = vmatprep.subr.mxu0 0.0
    %2038 = vmatpush2.msra.mxu0 0.0
    %2039 = vmatprep.subr.mxu0 0.0
    %2040 = vmatpush2.msra.mxu0 0.0
    %2041 = vmatprep.subr.mxu0 0.0
    %2042 = vmatpush2.msra.mxu0 0.0
    %2043 = vmatprep.subr.mxu0 0.0
    %2044 = vmatpush2.msra.mxu0 0.0
    %2045 = vmatprep.subr.mxu0 0.0
    %2046 = vmatpush2.msra.mxu0 0.0
    %2047 = vmatprep.subr.mxu0 0.0
    %2048 = vmatpush2.msra.mxu0 0.0
    %2049 = vmatprep.subr.mxu0 0.0
    %2050 = vmatpush2.msra.mxu0 0.0
    %2051 = vmatprep.subr.mxu0 0.0
    %2052 = vmatpush2.msra.mxu0 0.0
    %2053 = vmatprep.subr.mxu0 0.0
    %2054 = vmatpush2.msra.mxu0 0.0
    %2055 = vmatprep.mubr.f32.mxu0 0.0
    %2056 = vmatmul.mubr.f32.gmra.mxu0 %v1966
    %v2057 = vpop.f32.mrf.mxu0
    %v2058 = vadd.f32 %v1989, %v2057
    %v2059 = vpop.f32.mrf.mxu0
    %2060 = vmatprep.mubr.f32.mxu0 0.0
    %2061 = vmatmul.mubr.f32.gmra.mxu0 %v1967
    %v2062 = vpop.f32.mrf.mxu0
    %v2063 = vadd.f32 %v1989, %v2062
    %v2064 = vpop.f32.mrf.mxu0
    %2065 = vdwg.mxu0
    %v2066 = vadd.f32 %v1820, %v2058
    %v2067 = vadd.f32 %v1821, %v2063
    %s2068 = scalar_lea.vmem %s6, 1
    %v2069 = vld [vmem:[%s2068] sm:$0x1]
    %s2070 = scalar_lea.vmem %s7, 1
    %v2071 = vld [vmem:[%s2070] sm:$0x1]
    %v2072 = vsel %vm67, %v2066, 0.0
    %2073 = vadd.xlane.f32.xlu0 %v2072
    %v2074 = vpop.xlane.xlu0 %2073
    %v2075 = vsel %vm67, %v2067, 0.0
    %2076 = vadd.xlane.f32.xlu0 %v2075
    %v2077 = vpop.xlane.xlu0 %2076
    %v2078 = vmul.f32 %v2074, %v74
    %v2079 = vmul.f32 %v2077, %v74
    %v2080 = vsub.f32 %v2066, %v2078
    %v2081 = vsub.f32 %v2067, %v2079
    %v2082 = vmul.f32 %v2080, %v2080
    %v2083 = vmul.f32 %v2081, %v2081
    %v2084 = vsel %vm67, %v2082, 0.0
    %2085 = vadd.xlane.f32.xlu0 %v2084
    %v2086 = vpop.xlane.xlu0 %2085
    %v2087 = vsel %vm67, %v2083, 0.0
    %2088 = vadd.xlane.f32.xlu0 %v2087
    %v2089 = vpop.xlane.xlu0 %2088
    %v2090 = vmul.f32 %v2086, %v74
    %v2091 = vmul.f32 %v2089, %v74
    %v2092 = vadd.f32 %v2090, 1e-05
    %v2093 = vadd.f32 %v2091, 1e-05
    %v2094 = vrsqrt.pop %v2092
    %v2095 = vrsqrt.pop %v2093
    %v2096 = vmul.f32 %v2080, %v2094
    %v2097 = vmul.f32 %v2081, %v2095
    %v2099 = vlaneseq
    %v2100 = vshrl.u32 %v2099, 7
    %v2101 = vsub.s32 0, %v2100
    %v2102 = vrot.slane %v2069, %v2101
    %v2104 = vmul.f32 %v2096, %v2102
    %v2105 = vmul.f32 %v2097, %v2102
    %v2107 = vlaneseq
    %v2108 = vshrl.u32 %v2107, 7
    %v2109 = vsub.s32 0, %v2108
    %v2110 = vrot.slane %v2071, %v2109
    %v2112 = vadd.f32 %v2104, %v2110
    %v2113 = vadd.f32 %v2105, %v2110
    %s2114 = scalar_lea.vmem %s4, 32
    %v2115 = vld [vmem:[%s2114] sm:$0xff]
    %v2116 = vld [vmem:[%s2114 + $0x8] sm:$0xff]
    %v2117 = vld [vmem:[%s2114 + $0x10] sm:$0xff]
    %v2118 = vld [vmem:[%s2114 + $0x18] sm:$0xff]
    %v2120 = vsel %vm67, %v2112, 0
    %v2123 = vsel %vm67, %v2113, 0
    %2125 = vmatprep.subr.mxu0 0.0
    %2126 = vmatpush1.msra.mxu0 0.0
    %2127 = vmatprep.subr.mxu0 0.0
    %2128 = vmatpush1.msra.mxu0 0.0
    %2129 = vmatprep.subr.mxu0 0.0
    %2130 = vmatpush1.msra.mxu0 0.0
    %2131 = vmatprep.subr.mxu0 0.0
    %2132 = vmatpush1.msra.mxu0 0.0
    %2133 = vmatprep.subr.mxu0 0.0
    %2134 = vmatpush1.msra.mxu0 0.0
    %2135 = vmatprep.subr.mxu0 0.0
    %2136 = vmatpush1.msra.mxu0 0.0
    %2137 = vmatprep.subr.mxu0 0.0
    %2138 = vmatpush1.msra.mxu0 0.0
    %2139 = vmatprep.subr.mxu0 0.0
    %2140 = vmatpush1.msra.mxu0 0.0
    %2141 = vmatprep.subr.mxu0 0.0
    %2142 = vmatpush1.msra.mxu0 0.0
    %2143 = vmatprep.subr.mxu0 0.0
    %2144 = vmatpush1.msra.mxu0 0.0
    %2145 = vmatprep.subr.mxu0 0.0
    %2146 = vmatpush1.msra.mxu0 0.0
    %2147 = vmatprep.subr.mxu0 0.0
    %2148 = vmatpush1.msra.mxu0 0.0
    %2149 = vmatprep.subr.mxu0 0.0
    %2150 = vmatpush1.msra.mxu0 %v2118
    %2151 = vmatprep.subr.mxu0 0.0
    %2152 = vmatpush1.msra.mxu0 %v2117
    %2153 = vmatprep.subr.mxu0 0.0
    %2154 = vmatpush1.msra.mxu0 %v2116
    %2155 = vmatprep.subr.mxu0 0.0
    %2156 = vmatpush1.msra.mxu0 %v2115
    %2157 = vmatprep.subr.mxu0 0.0
    %2158 = vmatpush2.msra.mxu0 0.0
    %2159 = vmatprep.subr.mxu0 0.0
    %2160 = vmatpush2.msra.mxu0 0.0
    %2161 = vmatprep.subr.mxu0 0.0
    %2162 = vmatpush2.msra.mxu0 0.0
    %2163 = vmatprep.subr.mxu0 0.0
    %2164 = vmatpush2.msra.mxu0 0.0
    %2165 = vmatprep.subr.mxu0 0.0
    %2166 = vmatpush2.msra.mxu0 0.0
    %2167 = vmatprep.subr.mxu0 0.0
    %2168 = vmatpush2.msra.mxu0 0.0
    %2169 = vmatprep.subr.mxu0 0.0
    %2170 = vmatpush2.msra.mxu0 0.0
    %2171 = vmatprep.subr.mxu0 0.0
    %2172 = vmatpush2.msra.mxu0 0.0
    %2173 = vmatprep.subr.mxu0 0.0
    %2174 = vmatpush2.msra.mxu0 0.0
    %2175 = vmatprep.subr.mxu0 0.0
    %2176 = vmatpush2.msra.mxu0 0.0
    %2177 = vmatprep.subr.mxu0 0.0
    %2178 = vmatpush2.msra.mxu0 0.0
    %2179 = vmatprep.subr.mxu0 0.0
    %2180 = vmatpush2.msra.mxu0 0.0
    %2181 = vmatprep.subr.mxu0 0.0
    %2182 = vmatpush2.msra.mxu0 0.0
    %2183 = vmatprep.subr.mxu0 0.0
    %2184 = vmatpush2.msra.mxu0 0.0
    %2185 = vmatprep.subr.mxu0 0.0
    %2186 = vmatpush2.msra.mxu0 0.0
    %2187 = vmatprep.subr.mxu0 0.0
    %2188 = vmatpush2.msra.mxu0 0.0
    %2189 = vmatprep.mubr.f32.mxu0 0.0
    %2190 = vmatmul.mubr.f32.gmra.mxu0 %v2120
    %v2191 = vpop.f32.mrf.mxu0
    %v2192 = vadd.f32 0.0, %v2191
    %v2193 = vpop.f32.mrf.mxu0
    %2194 = vmatprep.mubr.f32.mxu0 0.0
    %2195 = vmatmul.mubr.f32.gmra.mxu0 %v2123
    %v2196 = vpop.f32.mrf.mxu0
    %v2197 = vadd.f32 0.0, %v2196
    %v2198 = vpop.f32.mrf.mxu0
    %2199 = vdwg.mxu0
    %2201 = vrot.lane.b32.xlu0 %v2192, 120
    %v2202 = vpop.permute.xlu0 %2201
    %2203 = vrot.lane.b32.xlu0 %v2192, 112
    %v2204 = vpop.permute.xlu0 %2203
    %2205 = vrot.lane.b32.xlu0 %v2192, 104
    %v2206 = vpop.permute.xlu0 %2205
    %2208 = vrot.lane.b32.xlu0 %v2197, 120
    %v2209 = vpop.permute.xlu0 %2208
    %2210 = vrot.lane.b32.xlu0 %v2197, 112
    %v2211 = vpop.permute.xlu0 %2210
    %2212 = vrot.lane.b32.xlu0 %v2197, 104
    %v2213 = vpop.permute.xlu0 %2212
    %2214 = vrot.lane.b32.xlu0 %v2192, 96
    %v2215 = vpop.permute.xlu0 %2214
    %v2216 = vsel %vm384, %v2192, 0
    %v2218 = vsel %vm384, %v2215, 0
    %2220 = vmatprep.subr.mxu0 0.0
    %2221 = vmatpush1.xpose.msra.mxu0 0.0
    %2222 = vmatprep.subr.mxu0 0.0
    %2223 = vmatpush1.xpose.msra.mxu0 0.0
    %2224 = vmatprep.subr.mxu0 0.0
    %2225 = vmatpush1.xpose.msra.mxu0 0.0
    %2226 = vmatprep.subr.mxu0 0.0
    %2227 = vmatpush1.xpose.msra.mxu0 0.0
    %2228 = vmatprep.subr.mxu0 0.0
    %2229 = vmatpush1.xpose.msra.mxu0 0.0
    %2230 = vmatprep.subr.mxu0 0.0
    %2231 = vmatpush1.xpose.msra.mxu0 0.0
    %2232 = vmatprep.subr.mxu0 0.0
    %2233 = vmatpush1.xpose.msra.mxu0 0.0
    %2234 = vmatprep.subr.mxu0 0.0
    %2235 = vmatpush1.xpose.msra.mxu0 0.0
    %2236 = vmatprep.subr.mxu0 0.0
    %2237 = vmatpush1.xpose.msra.mxu0 0.0
    %2238 = vmatprep.subr.mxu0 0.0
    %2239 = vmatpush1.xpose.msra.mxu0 0.0
    %2240 = vmatprep.subr.mxu0 0.0
    %2241 = vmatpush1.xpose.msra.mxu0 0.0
    %2242 = vmatprep.subr.mxu0 0.0
    %2243 = vmatpush1.xpose.msra.mxu0 0.0
    %2244 = vmatprep.subr.mxu0 0.0
    %2245 = vmatpush1.xpose.msra.mxu0 0.0
    %2246 = vmatprep.subr.mxu0 0.0
    %2247 = vmatpush1.xpose.msra.mxu0 0.0
    %2248 = vmatprep.subr.mxu0 0.0
    %2249 = vmatpush1.xpose.msra.mxu0 0.0
    %2250 = vmatprep.subr.mxu0 0.0
    %2251 = vmatpush1.xpose.msra.mxu0 %v2218
    %2252 = vmatprep.subr.mxu0 0.0
    %2253 = vmatpush2.xpose.msra.mxu0 0.0
    %2254 = vmatprep.subr.mxu0 0.0
    %2255 = vmatpush2.xpose.msra.mxu0 0.0
    %2256 = vmatprep.subr.mxu0 0.0
    %2257 = vmatpush2.xpose.msra.mxu0 0.0
    %2258 = vmatprep.subr.mxu0 0.0
    %2259 = vmatpush2.xpose.msra.mxu0 0.0
    %2260 = vmatprep.subr.mxu0 0.0
    %2261 = vmatpush2.xpose.msra.mxu0 0.0
    %2262 = vmatprep.subr.mxu0 0.0
    %2263 = vmatpush2.xpose.msra.mxu0 0.0
    %2264 = vmatprep.subr.mxu0 0.0
    %2265 = vmatpush2.xpose.msra.mxu0 0.0
    %2266 = vmatprep.subr.mxu0 0.0
    %2267 = vmatpush2.xpose.msra.mxu0 0.0
    %2268 = vmatprep.subr.mxu0 0.0
    %2269 = vmatpush2.xpose.msra.mxu0 0.0
    %2270 = vmatprep.subr.mxu0 0.0
    %2271 = vmatpush2.xpose.msra.mxu0 0.0
    %2272 = vmatprep.subr.mxu0 0.0
    %2273 = vmatpush2.xpose.msra.mxu0 0.0
    %2274 = vmatprep.subr.mxu0 0.0
    %2275 = vmatpush2.xpose.msra.mxu0 0.0
    %2276 = vmatprep.subr.mxu0 0.0
    %2277 = vmatpush2.xpose.msra.mxu0 0.0
    %2278 = vmatprep.subr.mxu0 0.0
    %2279 = vmatpush2.xpose.msra.mxu0 0.0
    %2280 = vmatprep.subr.mxu0 0.0
    %2281 = vmatpush2.xpose.msra.mxu0 0.0
    %2282 = vmatprep.subr.mxu0 0.0
    %2283 = vmatpush2.xpose.msra.mxu0 0.0
    %2284 = vmatprep.mubr.f32.mxu0 0.0
    %2285 = vmatmul.mubr.f32.gmra.mxu0 %v2216
    %v2286 = vpop.f32.mrf.mxu0
    %v2287 = vadd.f32 0.0, %v2286
    %v2288 = vpop.f32.mrf.mxu0
    %2289 = vdwg.mxu0
    %2290 = vrot.lane.b32.xlu0 %v2202, 96
    %v2291 = vpop.permute.xlu0 %2290
    %v2292 = vsel %vm384, %v2202, 0
    %v2294 = vsel %vm384, %v2291, 0
    %2296 = vmatprep.subr.mxu0 0.0
    %2297 = vmatpush1.xpose.msra.mxu0 0.0
    %2298 = vmatprep.subr.mxu0 0.0
    %2299 = vmatpush1.xpose.msra.mxu0 0.0
    %2300 = vmatprep.subr.mxu0 0.0
    %2301 = vmatpush1.xpose.msra.mxu0 0.0
    %2302 = vmatprep.subr.mxu0 0.0
    %2303 = vmatpush1.xpose.msra.mxu0 0.0
    %2304 = vmatprep.subr.mxu0 0.0
    %2305 = vmatpush1.xpose.msra.mxu0 0.0
    %2306 = vmatprep.subr.mxu0 0.0
    %2307 = vmatpush1.xpose.msra.mxu0 0.0
    %2308 = vmatprep.subr.mxu0 0.0
    %2309 = vmatpush1.xpose.msra.mxu0 0.0
    %2310 = vmatprep.subr.mxu0 0.0
    %2311 = vmatpush1.xpose.msra.mxu0 0.0
    %2312 = vmatprep.subr.mxu0 0.0
    %2313 = vmatpush1.xpose.msra.mxu0 0.0
    %2314 = vmatprep.subr.mxu0 0.0
    %2315 = vmatpush1.xpose.msra.mxu0 0.0
    %2316 = vmatprep.subr.mxu0 0.0
    %2317 = vmatpush1.xpose.msra.mxu0 0.0
    %2318 = vmatprep.subr.mxu0 0.0
    %2319 = vmatpush1.xpose.msra.mxu0 0.0
    %2320 = vmatprep.subr.mxu0 0.0
    %2321 = vmatpush1.xpose.msra.mxu0 0.0
    %2322 = vmatprep.subr.mxu0 0.0
    %2323 = vmatpush1.xpose.msra.mxu0 0.0
    %2324 = vmatprep.subr.mxu0 0.0
    %2325 = vmatpush1.xpose.msra.mxu0 0.0
    %2326 = vmatprep.subr.mxu0 0.0
    %2327 = vmatpush1.xpose.msra.mxu0 %v2294
    %2328 = vmatprep.subr.mxu0 0.0
    %2329 = vmatpush2.xpose.msra.mxu0 0.0
    %2330 = vmatprep.subr.mxu0 0.0
    %2331 = vmatpush2.xpose.msra.mxu0 0.0
    %2332 = vmatprep.subr.mxu0 0.0
    %2333 = vmatpush2.xpose.msra.mxu0 0.0
    %2334 = vmatprep.subr.mxu0 0.0
    %2335 = vmatpush2.xpose.msra.mxu0 0.0
    %2336 = vmatprep.subr.mxu0 0.0
    %2337 = vmatpush2.xpose.msra.mxu0 0.0
    %2338 = vmatprep.subr.mxu0 0.0
    %2339 = vmatpush2.xpose.msra.mxu0 0.0
    %2340 = vmatprep.subr.mxu0 0.0
    %2341 = vmatpush2.xpose.msra.mxu0 0.0
    %2342 = vmatprep.subr.mxu0 0.0
    %2343 = vmatpush2.xpose.msra.mxu0 0.0
    %2344 = vmatprep.subr.mxu0 0.0
    %2345 = vmatpush2.xpose.msra.mxu0 0.0
    %2346 = vmatprep.subr.mxu0 0.0
    %2347 = vmatpush2.xpose.msra.mxu0 0.0
    %2348 = vmatprep.subr.mxu0 0.0
    %2349 = vmatpush2.xpose.msra.mxu0 0.0
    %2350 = vmatprep.subr.mxu0 0.0
    %2351 = vmatpush2.xpose.msra.mxu0 0.0
    %2352 = vmatprep.subr.mxu0 0.0
    %2353 = vmatpush2.xpose.msra.mxu0 0.0
    %2354 = vmatprep.subr.mxu0 0.0
    %2355 = vmatpush2.xpose.msra.mxu0 0.0
    %2356 = vmatprep.subr.mxu0 0.0
    %2357 = vmatpush2.xpose.msra.mxu0 0.0
    %2358 = vmatprep.subr.mxu0 0.0
    %2359 = vmatpush2.xpose.msra.mxu0 0.0
    %2360 = vmatprep.mubr.f32.mxu0 0.0
    %2361 = vmatmul.mubr.f32.gmra.mxu0 %v2292
    %v2362 = vpop.f32.mrf.mxu0
    %v2363 = vadd.f32 0.0, %v2362
    %v2364 = vpop.f32.mrf.mxu0
    %2365 = vdwg.mxu0
    %2366 = vrot.lane.b32.xlu0 %v2204, 96
    %v2367 = vpop.permute.xlu0 %2366
    %v2368 = vsel %vm384, %v2204, 0
    %v2370 = vsel %vm384, %v2367, 0
    %2372 = vmatprep.subr.mxu0 0.0
    %2373 = vmatpush1.xpose.msra.mxu0 0.0
    %2374 = vmatprep.subr.mxu0 0.0
    %2375 = vmatpush1.xpose.msra.mxu0 0.0
    %2376 = vmatprep.subr.mxu0 0.0
    %2377 = vmatpush1.xpose.msra.mxu0 0.0
    %2378 = vmatprep.subr.mxu0 0.0
    %2379 = vmatpush1.xpose.msra.mxu0 0.0
    %2380 = vmatprep.subr.mxu0 0.0
    %2381 = vmatpush1.xpose.msra.mxu0 0.0
    %2382 = vmatprep.subr.mxu0 0.0
    %2383 = vmatpush1.xpose.msra.mxu0 0.0
    %2384 = vmatprep.subr.mxu0 0.0
    %2385 = vmatpush1.xpose.msra.mxu0 0.0
    %2386 = vmatprep.subr.mxu0 0.0
    %2387 = vmatpush1.xpose.msra.mxu0 0.0
    %2388 = vmatprep.subr.mxu0 0.0
    %2389 = vmatpush1.xpose.msra.mxu0 0.0
    %2390 = vmatprep.subr.mxu0 0.0
    %2391 = vmatpush1.xpose.msra.mxu0 0.0
    %2392 = vmatprep.subr.mxu0 0.0
    %2393 = vmatpush1.xpose.msra.mxu0 0.0
    %2394 = vmatprep.subr.mxu0 0.0
    %2395 = vmatpush1.xpose.msra.mxu0 0.0
    %2396 = vmatprep.subr.mxu0 0.0
    %2397 = vmatpush1.xpose.msra.mxu0 0.0
    %2398 = vmatprep.subr.mxu0 0.0
    %2399 = vmatpush1.xpose.msra.mxu0 0.0
    %2400 = vmatprep.subr.mxu0 0.0
    %2401 = vmatpush1.xpose.msra.mxu0 0.0
    %2402 = vmatprep.subr.mxu0 0.0
    %2403 = vmatpush1.xpose.msra.mxu0 %v2370
    %2404 = vmatprep.subr.mxu0 0.0
    %2405 = vmatpush2.xpose.msra.mxu0 0.0
    %2406 = vmatprep.subr.mxu0 0.0
    %2407 = vmatpush2.xpose.msra.mxu0 0.0
    %2408 = vmatprep.subr.mxu0 0.0
    %2409 = vmatpush2.xpose.msra.mxu0 0.0
    %2410 = vmatprep.subr.mxu0 0.0
    %2411 = vmatpush2.xpose.msra.mxu0 0.0
    %2412 = vmatprep.subr.mxu0 0.0
    %2413 = vmatpush2.xpose.msra.mxu0 0.0
    %2414 = vmatprep.subr.mxu0 0.0
    %2415 = vmatpush2.xpose.msra.mxu0 0.0
    %2416 = vmatprep.subr.mxu0 0.0
    %2417 = vmatpush2.xpose.msra.mxu0 0.0
    %2418 = vmatprep.subr.mxu0 0.0
    %2419 = vmatpush2.xpose.msra.mxu0 0.0
    %2420 = vmatprep.subr.mxu0 0.0
    %2421 = vmatpush2.xpose.msra.mxu0 0.0
    %2422 = vmatprep.subr.mxu0 0.0
    %2423 = vmatpush2.xpose.msra.mxu0 0.0
    %2424 = vmatprep.subr.mxu0 0.0
    %2425 = vmatpush2.xpose.msra.mxu0 0.0
    %2426 = vmatprep.subr.mxu0 0.0
    %2427 = vmatpush2.xpose.msra.mxu0 0.0
    %2428 = vmatprep.subr.mxu0 0.0
    %2429 = vmatpush2.xpose.msra.mxu0 0.0
    %2430 = vmatprep.subr.mxu0 0.0
    %2431 = vmatpush2.xpose.msra.mxu0 0.0
    %2432 = vmatprep.subr.mxu0 0.0
    %2433 = vmatpush2.xpose.msra.mxu0 0.0
    %2434 = vmatprep.subr.mxu0 0.0
    %2435 = vmatpush2.xpose.msra.mxu0 0.0
    %2436 = vmatprep.mubr.f32.mxu0 0.0
    %2437 = vmatmul.mubr.f32.gmra.mxu0 %v2368
    %v2438 = vpop.f32.mrf.mxu0
    %v2439 = vadd.f32 0.0, %v2438
    %v2440 = vpop.f32.mrf.mxu0
    %2441 = vdwg.mxu0
    %2442 = vrot.lane.b32.xlu0 %v2206, 96
    %v2443 = vpop.permute.xlu0 %2442
    %v2444 = vsel %vm384, %v2206, 0
    %v2446 = vsel %vm384, %v2443, 0
    %2448 = vmatprep.subr.mxu0 0.0
    %2449 = vmatpush1.xpose.msra.mxu0 0.0
    %2450 = vmatprep.subr.mxu0 0.0
    %2451 = vmatpush1.xpose.msra.mxu0 0.0
    %2452 = vmatprep.subr.mxu0 0.0
    %2453 = vmatpush1.xpose.msra.mxu0 0.0
    %2454 = vmatprep.subr.mxu0 0.0
    %2455 = vmatpush1.xpose.msra.mxu0 0.0
    %2456 = vmatprep.subr.mxu0 0.0
    %2457 = vmatpush1.xpose.msra.mxu0 0.0
    %2458 = vmatprep.subr.mxu0 0.0
    %2459 = vmatpush1.xpose.msra.mxu0 0.0
    %2460 = vmatprep.subr.mxu0 0.0
    %2461 = vmatpush1.xpose.msra.mxu0 0.0
    %2462 = vmatprep.subr.mxu0 0.0
    %2463 = vmatpush1.xpose.msra.mxu0 0.0
    %2464 = vmatprep.subr.mxu0 0.0
    %2465 = vmatpush1.xpose.msra.mxu0 0.0
    %2466 = vmatprep.subr.mxu0 0.0
    %2467 = vmatpush1.xpose.msra.mxu0 0.0
    %2468 = vmatprep.subr.mxu0 0.0
    %2469 = vmatpush1.xpose.msra.mxu0 0.0
    %2470 = vmatprep.subr.mxu0 0.0
    %2471 = vmatpush1.xpose.msra.mxu0 0.0
    %2472 = vmatprep.subr.mxu0 0.0
    %2473 = vmatpush1.xpose.msra.mxu0 0.0
    %2474 = vmatprep.subr.mxu0 0.0
    %2475 = vmatpush1.xpose.msra.mxu0 0.0
    %2476 = vmatprep.subr.mxu0 0.0
    %2477 = vmatpush1.xpose.msra.mxu0 0.0
    %2478 = vmatprep.subr.mxu0 0.0
    %2479 = vmatpush1.xpose.msra.mxu0 %v2446
    %2480 = vmatprep.subr.mxu0 0.0
    %2481 = vmatpush2.xpose.msra.mxu0 0.0
    %2482 = vmatprep.subr.mxu0 0.0
    %2483 = vmatpush2.xpose.msra.mxu0 0.0
    %2484 = vmatprep.subr.mxu0 0.0
    %2485 = vmatpush2.xpose.msra.mxu0 0.0
    %2486 = vmatprep.subr.mxu0 0.0
    %2487 = vmatpush2.xpose.msra.mxu0 0.0
    %2488 = vmatprep.subr.mxu0 0.0
    %2489 = vmatpush2.xpose.msra.mxu0 0.0
    %2490 = vmatprep.subr.mxu0 0.0
    %2491 = vmatpush2.xpose.msra.mxu0 0.0
    %2492 = vmatprep.subr.mxu0 0.0
    %2493 = vmatpush2.xpose.msra.mxu0 0.0
    %2494 = vmatprep.subr.mxu0 0.0
    %2495 = vmatpush2.xpose.msra.mxu0 0.0
    %2496 = vmatprep.subr.mxu0 0.0
    %2497 = vmatpush2.xpose.msra.mxu0 0.0
    %2498 = vmatprep.subr.mxu0 0.0
    %2499 = vmatpush2.xpose.msra.mxu0 0.0
    %2500 = vmatprep.subr.mxu0 0.0
    %2501 = vmatpush2.xpose.msra.mxu0 0.0
    %2502 = vmatprep.subr.mxu0 0.0
    %2503 = vmatpush2.xpose.msra.mxu0 0.0
    %2504 = vmatprep.subr.mxu0 0.0
    %2505 = vmatpush2.xpose.msra.mxu0 0.0
    %2506 = vmatprep.subr.mxu0 0.0
    %2507 = vmatpush2.xpose.msra.mxu0 0.0
    %2508 = vmatprep.subr.mxu0 0.0
    %2509 = vmatpush2.xpose.msra.mxu0 0.0
    %2510 = vmatprep.subr.mxu0 0.0
    %2511 = vmatpush2.xpose.msra.mxu0 0.0
    %2512 = vmatprep.mubr.f32.mxu0 0.0
    %2513 = vmatmul.mubr.f32.gmra.mxu0 %v2444
    %v2514 = vpop.f32.mrf.mxu0
    %v2515 = vadd.f32 0.0, %v2514
    %v2516 = vpop.f32.mrf.mxu0
    %2517 = vdwg.mxu0
    %2518 = vrot.lane.b32.xlu0 %v2197, 96
    %v2519 = vpop.permute.xlu0 %2518
    %v2520 = vsel %vm384, %v2197, 0
    %v2522 = vsel %vm384, %v2519, 0
    %2524 = vmatprep.subr.mxu0 0.0
    %2525 = vmatpush1.xpose.msra.mxu0 0.0
    %2526 = vmatprep.subr.mxu0 0.0
    %2527 = vmatpush1.xpose.msra.mxu0 0.0
    %2528 = vmatprep.subr.mxu0 0.0
    %2529 = vmatpush1.xpose.msra.mxu0 0.0
    %2530 = vmatprep.subr.mxu0 0.0
    %2531 = vmatpush1.xpose.msra.mxu0 0.0
    %2532 = vmatprep.subr.mxu0 0.0
    %2533 = vmatpush1.xpose.msra.mxu0 0.0
    %2534 = vmatprep.subr.mxu0 0.0
    %2535 = vmatpush1.xpose.msra.mxu0 0.0
    %2536 = vmatprep.subr.mxu0 0.0
    %2537 = vmatpush1.xpose.msra.mxu0 0.0
    %2538 = vmatprep.subr.mxu0 0.0
    %2539 = vmatpush1.xpose.msra.mxu0 0.0
    %2540 = vmatprep.subr.mxu0 0.0
    %2541 = vmatpush1.xpose.msra.mxu0 0.0
    %2542 = vmatprep.subr.mxu0 0.0
    %2543 = vmatpush1.xpose.msra.mxu0 0.0
    %2544 = vmatprep.subr.mxu0 0.0
    %2545 = vmatpush1.xpose.msra.mxu0 0.0
    %2546 = vmatprep.subr.mxu0 0.0
    %2547 = vmatpush1.xpose.msra.mxu0 0.0
    %2548 = vmatprep.subr.mxu0 0.0
    %2549 = vmatpush1.xpose.msra.mxu0 0.0
    %2550 = vmatprep.subr.mxu0 0.0
    %2551 = vmatpush1.xpose.msra.mxu0 0.0
    %2552 = vmatprep.subr.mxu0 0.0
    %2553 = vmatpush1.xpose.msra.mxu0 0.0
    %2554 = vmatprep.subr.mxu0 0.0
    %2555 = vmatpush1.xpose.msra.mxu0 %v2522
    %2556 = vmatprep.subr.mxu0 0.0
    %2557 = vmatpush2.xpose.msra.mxu0 0.0
    %2558 = vmatprep.subr.mxu0 0.0
    %2559 = vmatpush2.xpose.msra.mxu0 0.0
    %2560 = vmatprep.subr.mxu0 0.0
    %2561 = vmatpush2.xpose.msra.mxu0 0.0
    %2562 = vmatprep.subr.mxu0 0.0
    %2563 = vmatpush2.xpose.msra.mxu0 0.0
    %2564 = vmatprep.subr.mxu0 0.0
    %2565 = vmatpush2.xpose.msra.mxu0 0.0
    %2566 = vmatprep.subr.mxu0 0.0
    %2567 = vmatpush2.xpose.msra.mxu0 0.0
    %2568 = vmatprep.subr.mxu0 0.0
    %2569 = vmatpush2.xpose.msra.mxu0 0.0
    %2570 = vmatprep.subr.mxu0 0.0
    %2571 = vmatpush2.xpose.msra.mxu0 0.0
    %2572 = vmatprep.subr.mxu0 0.0
    %2573 = vmatpush2.xpose.msra.mxu0 0.0
    %2574 = vmatprep.subr.mxu0 0.0
    %2575 = vmatpush2.xpose.msra.mxu0 0.0
    %2576 = vmatprep.subr.mxu0 0.0
    %2577 = vmatpush2.xpose.msra.mxu0 0.0
    %2578 = vmatprep.subr.mxu0 0.0
    %2579 = vmatpush2.xpose.msra.mxu0 0.0
    %2580 = vmatprep.subr.mxu0 0.0
    %2581 = vmatpush2.xpose.msra.mxu0 0.0
    %2582 = vmatprep.subr.mxu0 0.0
    %2583 = vmatpush2.xpose.msra.mxu0 0.0
    %2584 = vmatprep.subr.mxu0 0.0
    %2585 = vmatpush2.xpose.msra.mxu0 0.0
    %2586 = vmatprep.subr.mxu0 0.0
    %2587 = vmatpush2.xpose.msra.mxu0 0.0
    %2588 = vmatprep.mubr.f32.mxu0 0.0
    %2589 = vmatmul.mubr.f32.gmra.mxu0 %v2520
    %v2590 = vpop.f32.mrf.mxu0
    %v2591 = vadd.f32 0.0, %v2590
    %v2592 = vpop.f32.mrf.mxu0
    %2593 = vdwg.mxu0
    %2594 = vrot.lane.b32.xlu0 %v2209, 96
    %v2595 = vpop.permute.xlu0 %2594
    %v2596 = vsel %vm384, %v2209, 0
    %v2598 = vsel %vm384, %v2595, 0
    %2600 = vmatprep.subr.mxu0 0.0
    %2601 = vmatpush1.xpose.msra.mxu0 0.0
    %2602 = vmatprep.subr.mxu0 0.0
    %2603 = vmatpush1.xpose.msra.mxu0 0.0
    %2604 = vmatprep.subr.mxu0 0.0
    %2605 = vmatpush1.xpose.msra.mxu0 0.0
    %2606 = vmatprep.subr.mxu0 0.0
    %2607 = vmatpush1.xpose.msra.mxu0 0.0
    %2608 = vmatprep.subr.mxu0 0.0
    %2609 = vmatpush1.xpose.msra.mxu0 0.0
    %2610 = vmatprep.subr.mxu0 0.0
    %2611 = vmatpush1.xpose.msra.mxu0 0.0
    %2612 = vmatprep.subr.mxu0 0.0
    %2613 = vmatpush1.xpose.msra.mxu0 0.0
    %2614 = vmatprep.subr.mxu0 0.0
    %2615 = vmatpush1.xpose.msra.mxu0 0.0
    %2616 = vmatprep.subr.mxu0 0.0
    %2617 = vmatpush1.xpose.msra.mxu0 0.0
    %2618 = vmatprep.subr.mxu0 0.0
    %2619 = vmatpush1.xpose.msra.mxu0 0.0
    %2620 = vmatprep.subr.mxu0 0.0
    %2621 = vmatpush1.xpose.msra.mxu0 0.0
    %2622 = vmatprep.subr.mxu0 0.0
    %2623 = vmatpush1.xpose.msra.mxu0 0.0
    %2624 = vmatprep.subr.mxu0 0.0
    %2625 = vmatpush1.xpose.msra.mxu0 0.0
    %2626 = vmatprep.subr.mxu0 0.0
    %2627 = vmatpush1.xpose.msra.mxu0 0.0
    %2628 = vmatprep.subr.mxu0 0.0
    %2629 = vmatpush1.xpose.msra.mxu0 0.0
    %2630 = vmatprep.subr.mxu0 0.0
    %2631 = vmatpush1.xpose.msra.mxu0 %v2598
    %2632 = vmatprep.subr.mxu0 0.0
    %2633 = vmatpush2.xpose.msra.mxu0 0.0
    %2634 = vmatprep.subr.mxu0 0.0
    %2635 = vmatpush2.xpose.msra.mxu0 0.0
    %2636 = vmatprep.subr.mxu0 0.0
    %2637 = vmatpush2.xpose.msra.mxu0 0.0
    %2638 = vmatprep.subr.mxu0 0.0
    %2639 = vmatpush2.xpose.msra.mxu0 0.0
    %2640 = vmatprep.subr.mxu0 0.0
    %2641 = vmatpush2.xpose.msra.mxu0 0.0
    %2642 = vmatprep.subr.mxu0 0.0
    %2643 = vmatpush2.xpose.msra.mxu0 0.0
    %2644 = vmatprep.subr.mxu0 0.0
    %2645 = vmatpush2.xpose.msra.mxu0 0.0
    %2646 = vmatprep.subr.mxu0 0.0
    %2647 = vmatpush2.xpose.msra.mxu0 0.0
    %2648 = vmatprep.subr.mxu0 0.0
    %2649 = vmatpush2.xpose.msra.mxu0 0.0
    %2650 = vmatprep.subr.mxu0 0.0
    %2651 = vmatpush2.xpose.msra.mxu0 0.0
    %2652 = vmatprep.subr.mxu0 0.0
    %2653 = vmatpush2.xpose.msra.mxu0 0.0
    %2654 = vmatprep.subr.mxu0 0.0
    %2655 = vmatpush2.xpose.msra.mxu0 0.0
    %2656 = vmatprep.subr.mxu0 0.0
    %2657 = vmatpush2.xpose.msra.mxu0 0.0
    %2658 = vmatprep.subr.mxu0 0.0
    %2659 = vmatpush2.xpose.msra.mxu0 0.0
    %2660 = vmatprep.subr.mxu0 0.0
    %2661 = vmatpush2.xpose.msra.mxu0 0.0
    %2662 = vmatprep.subr.mxu0 0.0
    %2663 = vmatpush2.xpose.msra.mxu0 0.0
    %2664 = vmatprep.mubr.f32.mxu0 0.0
    %2665 = vmatmul.mubr.f32.gmra.mxu0 %v2596
    %v2666 = vpop.f32.mrf.mxu0
    %v2667 = vadd.f32 0.0, %v2666
    %v2668 = vpop.f32.mrf.mxu0
    %2669 = vdwg.mxu0
    %2670 = vrot.lane.b32.xlu0 %v2211, 96
    %v2671 = vpop.permute.xlu0 %2670
    %v2672 = vsel %vm384, %v2211, 0
    %v2674 = vsel %vm384, %v2671, 0
    %2676 = vmatprep.subr.mxu0 0.0
    %2677 = vmatpush1.xpose.msra.mxu0 0.0
    %2678 = vmatprep.subr.mxu0 0.0
    %2679 = vmatpush1.xpose.msra.mxu0 0.0
    %2680 = vmatprep.subr.mxu0 0.0
    %2681 = vmatpush1.xpose.msra.mxu0 0.0
    %2682 = vmatprep.subr.mxu0 0.0
    %2683 = vmatpush1.xpose.msra.mxu0 0.0
    %2684 = vmatprep.subr.mxu0 0.0
    %2685 = vmatpush1.xpose.msra.mxu0 0.0
    %2686 = vmatprep.subr.mxu0 0.0
    %2687 = vmatpush1.xpose.msra.mxu0 0.0
    %2688 = vmatprep.subr.mxu0 0.0
    %2689 = vmatpush1.xpose.msra.mxu0 0.0
    %2690 = vmatprep.subr.mxu0 0.0
    %2691 = vmatpush1.xpose.msra.mxu0 0.0
    %2692 = vmatprep.subr.mxu0 0.0
    %2693 = vmatpush1.xpose.msra.mxu0 0.0
    %2694 = vmatprep.subr.mxu0 0.0
    %2695 = vmatpush1.xpose.msra.mxu0 0.0
    %2696 = vmatprep.subr.mxu0 0.0
    %2697 = vmatpush1.xpose.msra.mxu0 0.0
    %2698 = vmatprep.subr.mxu0 0.0
    %2699 = vmatpush1.xpose.msra.mxu0 0.0
    %2700 = vmatprep.subr.mxu0 0.0
    %2701 = vmatpush1.xpose.msra.mxu0 0.0
    %2702 = vmatprep.subr.mxu0 0.0
    %2703 = vmatpush1.xpose.msra.mxu0 0.0
    %2704 = vmatprep.subr.mxu0 0.0
    %2705 = vmatpush1.xpose.msra.mxu0 0.0
    %2706 = vmatprep.subr.mxu0 0.0
    %2707 = vmatpush1.xpose.msra.mxu0 %v2674
    %2708 = vmatprep.subr.mxu0 0.0
    %2709 = vmatpush2.xpose.msra.mxu0 0.0
    %2710 = vmatprep.subr.mxu0 0.0
    %2711 = vmatpush2.xpose.msra.mxu0 0.0
    %2712 = vmatprep.subr.mxu0 0.0
    %2713 = vmatpush2.xpose.msra.mxu0 0.0
    %2714 = vmatprep.subr.mxu0 0.0
    %2715 = vmatpush2.xpose.msra.mxu0 0.0
    %2716 = vmatprep.subr.mxu0 0.0
    %2717 = vmatpush2.xpose.msra.mxu0 0.0
    %2718 = vmatprep.subr.mxu0 0.0
    %2719 = vmatpush2.xpose.msra.mxu0 0.0
    %2720 = vmatprep.subr.mxu0 0.0
    %2721 = vmatpush2.xpose.msra.mxu0 0.0
    %2722 = vmatprep.subr.mxu0 0.0
    %2723 = vmatpush2.xpose.msra.mxu0 0.0
    %2724 = vmatprep.subr.mxu0 0.0
    %2725 = vmatpush2.xpose.msra.mxu0 0.0
    %2726 = vmatprep.subr.mxu0 0.0
    %2727 = vmatpush2.xpose.msra.mxu0 0.0
    %2728 = vmatprep.subr.mxu0 0.0
    %2729 = vmatpush2.xpose.msra.mxu0 0.0
    %2730 = vmatprep.subr.mxu0 0.0
    %2731 = vmatpush2.xpose.msra.mxu0 0.0
    %2732 = vmatprep.subr.mxu0 0.0
    %2733 = vmatpush2.xpose.msra.mxu0 0.0
    %2734 = vmatprep.subr.mxu0 0.0
    %2735 = vmatpush2.xpose.msra.mxu0 0.0
    %2736 = vmatprep.subr.mxu0 0.0
    %2737 = vmatpush2.xpose.msra.mxu0 0.0
    %2738 = vmatprep.subr.mxu0 0.0
    %2739 = vmatpush2.xpose.msra.mxu0 0.0
    %2740 = vmatprep.mubr.f32.mxu0 0.0
    %2741 = vmatmul.mubr.f32.gmra.mxu0 %v2672
    %v2742 = vpop.f32.mrf.mxu0
    %v2743 = vadd.f32 0.0, %v2742
    %v2744 = vpop.f32.mrf.mxu0
    %2745 = vdwg.mxu0
    %2746 = vrot.lane.b32.xlu0 %v2213, 96
    %v2747 = vpop.permute.xlu0 %2746
    %v2748 = vsel %vm384, %v2213, 0
    %v2750 = vsel %vm384, %v2747, 0
    %2752 = vmatprep.subr.mxu0 0.0
    %2753 = vmatpush1.xpose.msra.mxu0 0.0
    %2754 = vmatprep.subr.mxu0 0.0
    %2755 = vmatpush1.xpose.msra.mxu0 0.0
    %2756 = vmatprep.subr.mxu0 0.0
    %2757 = vmatpush1.xpose.msra.mxu0 0.0
    %2758 = vmatprep.subr.mxu0 0.0
    %2759 = vmatpush1.xpose.msra.mxu0 0.0
    %2760 = vmatprep.subr.mxu0 0.0
    %2761 = vmatpush1.xpose.msra.mxu0 0.0
    %2762 = vmatprep.subr.mxu0 0.0
    %2763 = vmatpush1.xpose.msra.mxu0 0.0
    %2764 = vmatprep.subr.mxu0 0.0
    %2765 = vmatpush1.xpose.msra.mxu0 0.0
    %2766 = vmatprep.subr.mxu0 0.0
    %2767 = vmatpush1.xpose.msra.mxu0 0.0
    %2768 = vmatprep.subr.mxu0 0.0
    %2769 = vmatpush1.xpose.msra.mxu0 0.0
    %2770 = vmatprep.subr.mxu0 0.0
    %2771 = vmatpush1.xpose.msra.mxu0 0.0
    %2772 = vmatprep.subr.mxu0 0.0
    %2773 = vmatpush1.xpose.msra.mxu0 0.0
    %2774 = vmatprep.subr.mxu0 0.0
    %2775 = vmatpush1.xpose.msra.mxu0 0.0
    %2776 = vmatprep.subr.mxu0 0.0
    %2777 = vmatpush1.xpose.msra.mxu0 0.0
    %2778 = vmatprep.subr.mxu0 0.0
    %2779 = vmatpush1.xpose.msra.mxu0 0.0
    %2780 = vmatprep.subr.mxu0 0.0
    %2781 = vmatpush1.xpose.msra.mxu0 0.0
    %2782 = vmatprep.subr.mxu0 0.0
    %2783 = vmatpush1.xpose.msra.mxu0 %v2750
    %2784 = vmatprep.subr.mxu0 0.0
    %2785 = vmatpush2.xpose.msra.mxu0 0.0
    %2786 = vmatprep.subr.mxu0 0.0
    %2787 = vmatpush2.xpose.msra.mxu0 0.0
    %2788 = vmatprep.subr.mxu0 0.0
    %2789 = vmatpush2.xpose.msra.mxu0 0.0
    %2790 = vmatprep.subr.mxu0 0.0
    %2791 = vmatpush2.xpose.msra.mxu0 0.0
    %2792 = vmatprep.subr.mxu0 0.0
    %2793 = vmatpush2.xpose.msra.mxu0 0.0
    %2794 = vmatprep.subr.mxu0 0.0
    %2795 = vmatpush2.xpose.msra.mxu0 0.0
    %2796 = vmatprep.subr.mxu0 0.0
    %2797 = vmatpush2.xpose.msra.mxu0 0.0
    %2798 = vmatprep.subr.mxu0 0.0
    %2799 = vmatpush2.xpose.msra.mxu0 0.0
    %2800 = vmatprep.subr.mxu0 0.0
    %2801 = vmatpush2.xpose.msra.mxu0 0.0
    %2802 = vmatprep.subr.mxu0 0.0
    %2803 = vmatpush2.xpose.msra.mxu0 0.0
    %2804 = vmatprep.subr.mxu0 0.0
    %2805 = vmatpush2.xpose.msra.mxu0 0.0
    %2806 = vmatprep.subr.mxu0 0.0
    %2807 = vmatpush2.xpose.msra.mxu0 0.0
    %2808 = vmatprep.subr.mxu0 0.0
    %2809 = vmatpush2.xpose.msra.mxu0 0.0
    %2810 = vmatprep.subr.mxu0 0.0
    %2811 = vmatpush2.xpose.msra.mxu0 0.0
    %2812 = vmatprep.subr.mxu0 0.0
    %2813 = vmatpush2.xpose.msra.mxu0 0.0
    %2814 = vmatprep.subr.mxu0 0.0
    %2815 = vmatpush2.xpose.msra.mxu0 0.0
    %2816 = vmatprep.mubr.f32.mxu0 0.0
    %2817 = vmatmul.mubr.f32.gmra.mxu0 %v2748
    %v2818 = vpop.f32.mrf.mxu0
    %v2819 = vadd.f32 0.0, %v2818
    %v2820 = vpop.f32.mrf.mxu0
    %2821 = vdwg.mxu0
    %v2822 = vmul.f32 %v2287, 0.35355338
    %v2823 = vmul.f32 %v2363, 0.35355338
    %v2824 = vmul.f32 %v2439, 0.35355338
    %v2825 = vmul.f32 %v2515, 0.35355338
    %v2826 = vmul.f32 %v2591, 0.35355338
    %v2827 = vmul.f32 %v2667, 0.35355338
    %v2828 = vmul.f32 %v2743, 0.35355338
    %v2829 = vmul.f32 %v2819, 0.35355338
    %v2830 = vsel %vm231, -1e+09, %v2822
    %v2831 = vsel %vm232, -1e+09, %v2823
    %v2832 = vsel %vm233, -1e+09, %v2824
    %v2833 = vsel %vm234, -1e+09, %v2825
    %v2834 = vsel %vm235, -1e+09, %v2826
    %v2835 = vsel %vm236, -1e+09, %v2827
    %v2836 = vsel %vm237, -1e+09, %v2828
    %v2837 = vsel %vm238, -1e+09, %v2829
    %v2838 = vsel %vm384, %v2830, -inf
    %2839 = vmax.xlane.f32.xlu0 %v2838
    %v2840 = vpop.xlane.xlu0 %2839
    %v2841 = vsel %vm384, %v2831, -inf
    %2842 = vmax.xlane.f32.xlu0 %v2841
    %v2843 = vpop.xlane.xlu0 %2842
    %v2844 = vsel %vm384, %v2832, -inf
    %2845 = vmax.xlane.f32.xlu0 %v2844
    %v2846 = vpop.xlane.xlu0 %2845
    %v2847 = vsel %vm384, %v2833, -inf
    %2848 = vmax.xlane.f32.xlu0 %v2847
    %v2849 = vpop.xlane.xlu0 %2848
    %v2850 = vsel %vm384, %v2834, -inf
    %2851 = vmax.xlane.f32.xlu0 %v2850
    %v2852 = vpop.xlane.xlu0 %2851
    %v2853 = vsel %vm384, %v2835, -inf
    %2854 = vmax.xlane.f32.xlu0 %v2853
    %v2855 = vpop.xlane.xlu0 %2854
    %v2856 = vsel %vm384, %v2836, -inf
    %2857 = vmax.xlane.f32.xlu0 %v2856
    %v2858 = vpop.xlane.xlu0 %2857
    %v2859 = vsel %vm384, %v2837, -inf
    %2860 = vmax.xlane.f32.xlu0 %v2859
    %v2861 = vpop.xlane.xlu0 %2860
    %v2862 = vsub.f32 %v2830, %v2840
    %v2863 = vsub.f32 %v2831, %v2843
    %v2864 = vsub.f32 %v2832, %v2846
    %v2865 = vsub.f32 %v2833, %v2849
    %v2866 = vsub.f32 %v2834, %v2852
    %v2867 = vsub.f32 %v2835, %v2855
    %v2868 = vsub.f32 %v2836, %v2858
    %v2869 = vsub.f32 %v2837, %v2861
    %v2870 = vmul.f32 %v2862, 1.442695
    %v2871 = vpow.pop %v2870
    %v2872 = vmul.f32 %v2863, 1.442695
    %v2873 = vpow.pop %v2872
    %v2874 = vmul.f32 %v2864, 1.442695
    %v2875 = vpow.pop %v2874
    %v2876 = vmul.f32 %v2865, 1.442695
    %v2877 = vpow.pop %v2876
    %v2878 = vmul.f32 %v2866, 1.442695
    %v2879 = vpow.pop %v2878
    %v2880 = vmul.f32 %v2867, 1.442695
    %v2881 = vpow.pop %v2880
    %v2882 = vmul.f32 %v2868, 1.442695
    %v2883 = vpow.pop %v2882
    %v2884 = vmul.f32 %v2869, 1.442695
    %v2885 = vpow.pop %v2884
    %v2886 = vsel %vm384, %v2871, 0.0
    %2887 = vadd.xlane.f32.xlu0 %v2886
    %v2888 = vpop.xlane.xlu0 %2887
    %v2889 = vsel %vm384, %v2873, 0.0
    %2890 = vadd.xlane.f32.xlu0 %v2889
    %v2891 = vpop.xlane.xlu0 %2890
    %v2892 = vsel %vm384, %v2875, 0.0
    %2893 = vadd.xlane.f32.xlu0 %v2892
    %v2894 = vpop.xlane.xlu0 %2893
    %v2895 = vsel %vm384, %v2877, 0.0
    %2896 = vadd.xlane.f32.xlu0 %v2895
    %v2897 = vpop.xlane.xlu0 %2896
    %v2898 = vsel %vm384, %v2879, 0.0
    %2899 = vadd.xlane.f32.xlu0 %v2898
    %v2900 = vpop.xlane.xlu0 %2899
    %v2901 = vsel %vm384, %v2881, 0.0
    %2902 = vadd.xlane.f32.xlu0 %v2901
    %v2903 = vpop.xlane.xlu0 %2902
    %v2904 = vsel %vm384, %v2883, 0.0
    %2905 = vadd.xlane.f32.xlu0 %v2904
    %v2906 = vpop.xlane.xlu0 %2905
    %v2907 = vsel %vm384, %v2885, 0.0
    %2908 = vadd.xlane.f32.xlu0 %v2907
    %v2909 = vpop.xlane.xlu0 %2908
    %v2910 = vrcp.pop %v2888
    %v2911 = vmul.f32 %v2871, %v2910
    %v2912 = vrcp.pop %v2891
    %v2913 = vmul.f32 %v2873, %v2912
    %v2914 = vrcp.pop %v2894
    %v2915 = vmul.f32 %v2875, %v2914
    %v2916 = vrcp.pop %v2897
    %v2917 = vmul.f32 %v2877, %v2916
    %v2918 = vrcp.pop %v2900
    %v2919 = vmul.f32 %v2879, %v2918
    %v2920 = vrcp.pop %v2903
    %v2921 = vmul.f32 %v2881, %v2920
    %v2922 = vrcp.pop %v2906
    %v2923 = vmul.f32 %v2883, %v2922
    %v2924 = vrcp.pop %v2909
    %v2925 = vmul.f32 %v2885, %v2924
    %2926 = vrot.lane.b32.xlu0 %v2192, 64
    %v2927 = vpop.permute.xlu0 %2926
    %v2930 = vsel %vm384, %v2911, 0
    %2932 = vmatprep.subr.mxu0 0.0
    %2933 = vmatpush1.msra.mxu0 0.0
    %2934 = vmatprep.subr.mxu0 0.0
    %2935 = vmatpush1.msra.mxu0 0.0
    %2936 = vmatprep.subr.mxu0 0.0
    %2937 = vmatpush1.msra.mxu0 0.0
    %2938 = vmatprep.subr.mxu0 0.0
    %2939 = vmatpush1.msra.mxu0 0.0
    %2940 = vmatprep.subr.mxu0 0.0
    %2941 = vmatpush1.msra.mxu0 0.0
    %2942 = vmatprep.subr.mxu0 0.0
    %2943 = vmatpush1.msra.mxu0 0.0
    %2944 = vmatprep.subr.mxu0 0.0
    %2945 = vmatpush1.msra.mxu0 0.0
    %2946 = vmatprep.subr.mxu0 0.0
    %2947 = vmatpush1.msra.mxu0 0.0
    %2948 = vmatprep.subr.mxu0 0.0
    %2949 = vmatpush1.msra.mxu0 0.0
    %2950 = vmatprep.subr.mxu0 0.0
    %2951 = vmatpush1.msra.mxu0 0.0
    %2952 = vmatprep.subr.mxu0 0.0
    %2953 = vmatpush1.msra.mxu0 0.0
    %2954 = vmatprep.subr.mxu0 0.0
    %2955 = vmatpush1.msra.mxu0 0.0
    %2956 = vmatprep.subr.mxu0 0.0
    %2957 = vmatpush1.msra.mxu0 0.0
    %2958 = vmatprep.subr.mxu0 0.0
    %2959 = vmatpush1.msra.mxu0 0.0
    %2960 = vmatprep.subr.mxu0 0.0
    %2961 = vmatpush1.msra.mxu0 0.0
    %2962 = vmatprep.subr.mxu0 0.0
    %2963 = vmatpush1.msra.mxu0 %v2927
    %2964 = vmatprep.subr.mxu0 0.0
    %2965 = vmatpush2.msra.mxu0 0.0
    %2966 = vmatprep.subr.mxu0 0.0
    %2967 = vmatpush2.msra.mxu0 0.0
    %2968 = vmatprep.subr.mxu0 0.0
    %2969 = vmatpush2.msra.mxu0 0.0
    %2970 = vmatprep.subr.mxu0 0.0
    %2971 = vmatpush2.msra.mxu0 0.0
    %2972 = vmatprep.subr.mxu0 0.0
    %2973 = vmatpush2.msra.mxu0 0.0
    %2974 = vmatprep.subr.mxu0 0.0
    %2975 = vmatpush2.msra.mxu0 0.0
    %2976 = vmatprep.subr.mxu0 0.0
    %2977 = vmatpush2.msra.mxu0 0.0
    %2978 = vmatprep.subr.mxu0 0.0
    %2979 = vmatpush2.msra.mxu0 0.0
    %2980 = vmatprep.subr.mxu0 0.0
    %2981 = vmatpush2.msra.mxu0 0.0
    %2982 = vmatprep.subr.mxu0 0.0
    %2983 = vmatpush2.msra.mxu0 0.0
    %2984 = vmatprep.subr.mxu0 0.0
    %2985 = vmatpush2.msra.mxu0 0.0
    %2986 = vmatprep.subr.mxu0 0.0
    %2987 = vmatpush2.msra.mxu0 0.0
    %2988 = vmatprep.subr.mxu0 0.0
    %2989 = vmatpush2.msra.mxu0 0.0
    %2990 = vmatprep.subr.mxu0 0.0
    %2991 = vmatpush2.msra.mxu0 0.0
    %2992 = vmatprep.subr.mxu0 0.0
    %2993 = vmatpush2.msra.mxu0 0.0
    %2994 = vmatprep.subr.mxu0 0.0
    %2995 = vmatpush2.msra.mxu0 0.0
    %2996 = vmatprep.mubr.f32.mxu0 0.0
    %2997 = vmatmul.mubr.f32.gmra.mxu0 %v2930
    %v2998 = vpop.f32.mrf.mxu0
    %v2999 = vadd.f32 0.0, %v2998
    %v3000 = vpop.f32.mrf.mxu0
    %3001 = vdwg.mxu0
    %3002 = vrot.lane.b32.xlu0 %v2202, 64
    %v3003 = vpop.permute.xlu0 %3002
    %v3006 = vsel %vm384, %v2913, 0
    %3008 = vmatprep.subr.mxu0 0.0
    %3009 = vmatpush1.msra.mxu0 0.0
    %3010 = vmatprep.subr.mxu0 0.0
    %3011 = vmatpush1.msra.mxu0 0.0
    %3012 = vmatprep.subr.mxu0 0.0
    %3013 = vmatpush1.msra.mxu0 0.0
    %3014 = vmatprep.subr.mxu0 0.0
    %3015 = vmatpush1.msra.mxu0 0.0
    %3016 = vmatprep.subr.mxu0 0.0
    %3017 = vmatpush1.msra.mxu0 0.0
    %3018 = vmatprep.subr.mxu0 0.0
    %3019 = vmatpush1.msra.mxu0 0.0
    %3020 = vmatprep.subr.mxu0 0.0
    %3021 = vmatpush1.msra.mxu0 0.0
    %3022 = vmatprep.subr.mxu0 0.0
    %3023 = vmatpush1.msra.mxu0 0.0
    %3024 = vmatprep.subr.mxu0 0.0
    %3025 = vmatpush1.msra.mxu0 0.0
    %3026 = vmatprep.subr.mxu0 0.0
    %3027 = vmatpush1.msra.mxu0 0.0
    %3028 = vmatprep.subr.mxu0 0.0
    %3029 = vmatpush1.msra.mxu0 0.0
    %3030 = vmatprep.subr.mxu0 0.0
    %3031 = vmatpush1.msra.mxu0 0.0
    %3032 = vmatprep.subr.mxu0 0.0
    %3033 = vmatpush1.msra.mxu0 0.0
    %3034 = vmatprep.subr.mxu0 0.0
    %3035 = vmatpush1.msra.mxu0 0.0
    %3036 = vmatprep.subr.mxu0 0.0
    %3037 = vmatpush1.msra.mxu0 0.0
    %3038 = vmatprep.subr.mxu0 0.0
    %3039 = vmatpush1.msra.mxu0 %v3003
    %3040 = vmatprep.subr.mxu0 0.0
    %3041 = vmatpush2.msra.mxu0 0.0
    %3042 = vmatprep.subr.mxu0 0.0
    %3043 = vmatpush2.msra.mxu0 0.0
    %3044 = vmatprep.subr.mxu0 0.0
    %3045 = vmatpush2.msra.mxu0 0.0
    %3046 = vmatprep.subr.mxu0 0.0
    %3047 = vmatpush2.msra.mxu0 0.0
    %3048 = vmatprep.subr.mxu0 0.0
    %3049 = vmatpush2.msra.mxu0 0.0
    %3050 = vmatprep.subr.mxu0 0.0
    %3051 = vmatpush2.msra.mxu0 0.0
    %3052 = vmatprep.subr.mxu0 0.0
    %3053 = vmatpush2.msra.mxu0 0.0
    %3054 = vmatprep.subr.mxu0 0.0
    %3055 = vmatpush2.msra.mxu0 0.0
    %3056 = vmatprep.subr.mxu0 0.0
    %3057 = vmatpush2.msra.mxu0 0.0
    %3058 = vmatprep.subr.mxu0 0.0
    %3059 = vmatpush2.msra.mxu0 0.0
    %3060 = vmatprep.subr.mxu0 0.0
    %3061 = vmatpush2.msra.mxu0 0.0
    %3062 = vmatprep.subr.mxu0 0.0
    %3063 = vmatpush2.msra.mxu0 0.0
    %3064 = vmatprep.subr.mxu0 0.0
    %3065 = vmatpush2.msra.mxu0 0.0
    %3066 = vmatprep.subr.mxu0 0.0
    %3067 = vmatpush2.msra.mxu0 0.0
    %3068 = vmatprep.subr.mxu0 0.0
    %3069 = vmatpush2.msra.mxu0 0.0
    %3070 = vmatprep.subr.mxu0 0.0
    %3071 = vmatpush2.msra.mxu0 0.0
    %3072 = vmatprep.mubr.f32.mxu0 0.0
    %3073 = vmatmul.mubr.f32.gmra.mxu0 %v3006
    %v3074 = vpop.f32.mrf.mxu0
    %v3075 = vadd.f32 0.0, %v3074
    %v3076 = vpop.f32.mrf.mxu0
    %3077 = vdwg.mxu0
    %3078 = vrot.lane.b32.xlu0 %v2204, 64
    %v3079 = vpop.permute.xlu0 %3078
    %v3082 = vsel %vm384, %v2915, 0
    %3084 = vmatprep.subr.mxu0 0.0
    %3085 = vmatpush1.msra.mxu0 0.0
    %3086 = vmatprep.subr.mxu0 0.0
    %3087 = vmatpush1.msra.mxu0 0.0
    %3088 = vmatprep.subr.mxu0 0.0
    %3089 = vmatpush1.msra.mxu0 0.0
    %3090 = vmatprep.subr.mxu0 0.0
    %3091 = vmatpush1.msra.mxu0 0.0
    %3092 = vmatprep.subr.mxu0 0.0
    %3093 = vmatpush1.msra.mxu0 0.0
    %3094 = vmatprep.subr.mxu0 0.0
    %3095 = vmatpush1.msra.mxu0 0.0
    %3096 = vmatprep.subr.mxu0 0.0
    %3097 = vmatpush1.msra.mxu0 0.0
    %3098 = vmatprep.subr.mxu0 0.0
    %3099 = vmatpush1.msra.mxu0 0.0
    %3100 = vmatprep.subr.mxu0 0.0
    %3101 = vmatpush1.msra.mxu0 0.0
    %3102 = vmatprep.subr.mxu0 0.0
    %3103 = vmatpush1.msra.mxu0 0.0
    %3104 = vmatprep.subr.mxu0 0.0
    %3105 = vmatpush1.msra.mxu0 0.0
    %3106 = vmatprep.subr.mxu0 0.0
    %3107 = vmatpush1.msra.mxu0 0.0
    %3108 = vmatprep.subr.mxu0 0.0
    %3109 = vmatpush1.msra.mxu0 0.0
    %3110 = vmatprep.subr.mxu0 0.0
    %3111 = vmatpush1.msra.mxu0 0.0
    %3112 = vmatprep.subr.mxu0 0.0
    %3113 = vmatpush1.msra.mxu0 0.0
    %3114 = vmatprep.subr.mxu0 0.0
    %3115 = vmatpush1.msra.mxu0 %v3079
    %3116 = vmatprep.subr.mxu0 0.0
    %3117 = vmatpush2.msra.mxu0 0.0
    %3118 = vmatprep.subr.mxu0 0.0
    %3119 = vmatpush2.msra.mxu0 0.0
    %3120 = vmatprep.subr.mxu0 0.0
    %3121 = vmatpush2.msra.mxu0 0.0
    %3122 = vmatprep.subr.mxu0 0.0
    %3123 = vmatpush2.msra.mxu0 0.0
    %3124 = vmatprep.subr.mxu0 0.0
    %3125 = vmatpush2.msra.mxu0 0.0
    %3126 = vmatprep.subr.mxu0 0.0
    %3127 = vmatpush2.msra.mxu0 0.0
    %3128 = vmatprep.subr.mxu0 0.0
    %3129 = vmatpush2.msra.mxu0 0.0
    %3130 = vmatprep.subr.mxu0 0.0
    %3131 = vmatpush2.msra.mxu0 0.0
    %3132 = vmatprep.subr.mxu0 0.0
    %3133 = vmatpush2.msra.mxu0 0.0
    %3134 = vmatprep.subr.mxu0 0.0
    %3135 = vmatpush2.msra.mxu0 0.0
    %3136 = vmatprep.subr.mxu0 0.0
    %3137 = vmatpush2.msra.mxu0 0.0
    %3138 = vmatprep.subr.mxu0 0.0
    %3139 = vmatpush2.msra.mxu0 0.0
    %3140 = vmatprep.subr.mxu0 0.0
    %3141 = vmatpush2.msra.mxu0 0.0
    %3142 = vmatprep.subr.mxu0 0.0
    %3143 = vmatpush2.msra.mxu0 0.0
    %3144 = vmatprep.subr.mxu0 0.0
    %3145 = vmatpush2.msra.mxu0 0.0
    %3146 = vmatprep.subr.mxu0 0.0
    %3147 = vmatpush2.msra.mxu0 0.0
    %3148 = vmatprep.mubr.f32.mxu0 0.0
    %3149 = vmatmul.mubr.f32.gmra.mxu0 %v3082
    %v3150 = vpop.f32.mrf.mxu0
    %v3151 = vadd.f32 0.0, %v3150
    %v3152 = vpop.f32.mrf.mxu0
    %3153 = vdwg.mxu0
    %3154 = vrot.lane.b32.xlu0 %v2206, 64
    %v3155 = vpop.permute.xlu0 %3154
    %v3158 = vsel %vm384, %v2917, 0
    %3160 = vmatprep.subr.mxu0 0.0
    %3161 = vmatpush1.msra.mxu0 0.0
    %3162 = vmatprep.subr.mxu0 0.0
    %3163 = vmatpush1.msra.mxu0 0.0
    %3164 = vmatprep.subr.mxu0 0.0
    %3165 = vmatpush1.msra.mxu0 0.0
    %3166 = vmatprep.subr.mxu0 0.0
    %3167 = vmatpush1.msra.mxu0 0.0
    %3168 = vmatprep.subr.mxu0 0.0
    %3169 = vmatpush1.msra.mxu0 0.0
    %3170 = vmatprep.subr.mxu0 0.0
    %3171 = vmatpush1.msra.mxu0 0.0
    %3172 = vmatprep.subr.mxu0 0.0
    %3173 = vmatpush1.msra.mxu0 0.0
    %3174 = vmatprep.subr.mxu0 0.0
    %3175 = vmatpush1.msra.mxu0 0.0
    %3176 = vmatprep.subr.mxu0 0.0
    %3177 = vmatpush1.msra.mxu0 0.0
    %3178 = vmatprep.subr.mxu0 0.0
    %3179 = vmatpush1.msra.mxu0 0.0
    %3180 = vmatprep.subr.mxu0 0.0
    %3181 = vmatpush1.msra.mxu0 0.0
    %3182 = vmatprep.subr.mxu0 0.0
    %3183 = vmatpush1.msra.mxu0 0.0
    %3184 = vmatprep.subr.mxu0 0.0
    %3185 = vmatpush1.msra.mxu0 0.0
    %3186 = vmatprep.subr.mxu0 0.0
    %3187 = vmatpush1.msra.mxu0 0.0
    %3188 = vmatprep.subr.mxu0 0.0
    %3189 = vmatpush1.msra.mxu0 0.0
    %3190 = vmatprep.subr.mxu0 0.0
    %3191 = vmatpush1.msra.mxu0 %v3155
    %3192 = vmatprep.subr.mxu0 0.0
    %3193 = vmatpush2.msra.mxu0 0.0
    %3194 = vmatprep.subr.mxu0 0.0
    %3195 = vmatpush2.msra.mxu0 0.0
    %3196 = vmatprep.subr.mxu0 0.0
    %3197 = vmatpush2.msra.mxu0 0.0
    %3198 = vmatprep.subr.mxu0 0.0
    %3199 = vmatpush2.msra.mxu0 0.0
    %3200 = vmatprep.subr.mxu0 0.0
    %3201 = vmatpush2.msra.mxu0 0.0
    %3202 = vmatprep.subr.mxu0 0.0
    %3203 = vmatpush2.msra.mxu0 0.0
    %3204 = vmatprep.subr.mxu0 0.0
    %3205 = vmatpush2.msra.mxu0 0.0
    %3206 = vmatprep.subr.mxu0 0.0
    %3207 = vmatpush2.msra.mxu0 0.0
    %3208 = vmatprep.subr.mxu0 0.0
    %3209 = vmatpush2.msra.mxu0 0.0
    %3210 = vmatprep.subr.mxu0 0.0
    %3211 = vmatpush2.msra.mxu0 0.0
    %3212 = vmatprep.subr.mxu0 0.0
    %3213 = vmatpush2.msra.mxu0 0.0
    %3214 = vmatprep.subr.mxu0 0.0
    %3215 = vmatpush2.msra.mxu0 0.0
    %3216 = vmatprep.subr.mxu0 0.0
    %3217 = vmatpush2.msra.mxu0 0.0
    %3218 = vmatprep.subr.mxu0 0.0
    %3219 = vmatpush2.msra.mxu0 0.0
    %3220 = vmatprep.subr.mxu0 0.0
    %3221 = vmatpush2.msra.mxu0 0.0
    %3222 = vmatprep.subr.mxu0 0.0
    %3223 = vmatpush2.msra.mxu0 0.0
    %3224 = vmatprep.mubr.f32.mxu0 0.0
    %3225 = vmatmul.mubr.f32.gmra.mxu0 %v3158
    %v3226 = vpop.f32.mrf.mxu0
    %v3227 = vadd.f32 0.0, %v3226
    %v3228 = vpop.f32.mrf.mxu0
    %3229 = vdwg.mxu0
    %3230 = vrot.lane.b32.xlu0 %v2197, 64
    %v3231 = vpop.permute.xlu0 %3230
    %v3234 = vsel %vm384, %v2919, 0
    %3236 = vmatprep.subr.mxu0 0.0
    %3237 = vmatpush1.msra.mxu0 0.0
    %3238 = vmatprep.subr.mxu0 0.0
    %3239 = vmatpush1.msra.mxu0 0.0
    %3240 = vmatprep.subr.mxu0 0.0
    %3241 = vmatpush1.msra.mxu0 0.0
    %3242 = vmatprep.subr.mxu0 0.0
    %3243 = vmatpush1.msra.mxu0 0.0
    %3244 = vmatprep.subr.mxu0 0.0
    %3245 = vmatpush1.msra.mxu0 0.0
    %3246 = vmatprep.subr.mxu0 0.0
    %3247 = vmatpush1.msra.mxu0 0.0
    %3248 = vmatprep.subr.mxu0 0.0
    %3249 = vmatpush1.msra.mxu0 0.0
    %3250 = vmatprep.subr.mxu0 0.0
    %3251 = vmatpush1.msra.mxu0 0.0
    %3252 = vmatprep.subr.mxu0 0.0
    %3253 = vmatpush1.msra.mxu0 0.0
    %3254 = vmatprep.subr.mxu0 0.0
    %3255 = vmatpush1.msra.mxu0 0.0
    %3256 = vmatprep.subr.mxu0 0.0
    %3257 = vmatpush1.msra.mxu0 0.0
    %3258 = vmatprep.subr.mxu0 0.0
    %3259 = vmatpush1.msra.mxu0 0.0
    %3260 = vmatprep.subr.mxu0 0.0
    %3261 = vmatpush1.msra.mxu0 0.0
    %3262 = vmatprep.subr.mxu0 0.0
    %3263 = vmatpush1.msra.mxu0 0.0
    %3264 = vmatprep.subr.mxu0 0.0
    %3265 = vmatpush1.msra.mxu0 0.0
    %3266 = vmatprep.subr.mxu0 0.0
    %3267 = vmatpush1.msra.mxu0 %v3231
    %3268 = vmatprep.subr.mxu0 0.0
    %3269 = vmatpush2.msra.mxu0 0.0
    %3270 = vmatprep.subr.mxu0 0.0
    %3271 = vmatpush2.msra.mxu0 0.0
    %3272 = vmatprep.subr.mxu0 0.0
    %3273 = vmatpush2.msra.mxu0 0.0
    %3274 = vmatprep.subr.mxu0 0.0
    %3275 = vmatpush2.msra.mxu0 0.0
    %3276 = vmatprep.subr.mxu0 0.0
    %3277 = vmatpush2.msra.mxu0 0.0
    %3278 = vmatprep.subr.mxu0 0.0
    %3279 = vmatpush2.msra.mxu0 0.0
    %3280 = vmatprep.subr.mxu0 0.0
    %3281 = vmatpush2.msra.mxu0 0.0
    %3282 = vmatprep.subr.mxu0 0.0
    %3283 = vmatpush2.msra.mxu0 0.0
    %3284 = vmatprep.subr.mxu0 0.0
    %3285 = vmatpush2.msra.mxu0 0.0
    %3286 = vmatprep.subr.mxu0 0.0
    %3287 = vmatpush2.msra.mxu0 0.0
    %3288 = vmatprep.subr.mxu0 0.0
    %3289 = vmatpush2.msra.mxu0 0.0
    %3290 = vmatprep.subr.mxu0 0.0
    %3291 = vmatpush2.msra.mxu0 0.0
    %3292 = vmatprep.subr.mxu0 0.0
    %3293 = vmatpush2.msra.mxu0 0.0
    %3294 = vmatprep.subr.mxu0 0.0
    %3295 = vmatpush2.msra.mxu0 0.0
    %3296 = vmatprep.subr.mxu0 0.0
    %3297 = vmatpush2.msra.mxu0 0.0
    %3298 = vmatprep.subr.mxu0 0.0
    %3299 = vmatpush2.msra.mxu0 0.0
    %3300 = vmatprep.mubr.f32.mxu0 0.0
    %3301 = vmatmul.mubr.f32.gmra.mxu0 %v3234
    %v3302 = vpop.f32.mrf.mxu0
    %v3303 = vadd.f32 0.0, %v3302
    %v3304 = vpop.f32.mrf.mxu0
    %3305 = vdwg.mxu0
    %3306 = vrot.lane.b32.xlu0 %v2209, 64
    %v3307 = vpop.permute.xlu0 %3306
    %v3310 = vsel %vm384, %v2921, 0
    %3312 = vmatprep.subr.mxu0 0.0
    %3313 = vmatpush1.msra.mxu0 0.0
    %3314 = vmatprep.subr.mxu0 0.0
    %3315 = vmatpush1.msra.mxu0 0.0
    %3316 = vmatprep.subr.mxu0 0.0
    %3317 = vmatpush1.msra.mxu0 0.0
    %3318 = vmatprep.subr.mxu0 0.0
    %3319 = vmatpush1.msra.mxu0 0.0
    %3320 = vmatprep.subr.mxu0 0.0
    %3321 = vmatpush1.msra.mxu0 0.0
    %3322 = vmatprep.subr.mxu0 0.0
    %3323 = vmatpush1.msra.mxu0 0.0
    %3324 = vmatprep.subr.mxu0 0.0
    %3325 = vmatpush1.msra.mxu0 0.0
    %3326 = vmatprep.subr.mxu0 0.0
    %3327 = vmatpush1.msra.mxu0 0.0
    %3328 = vmatprep.subr.mxu0 0.0
    %3329 = vmatpush1.msra.mxu0 0.0
    %3330 = vmatprep.subr.mxu0 0.0
    %3331 = vmatpush1.msra.mxu0 0.0
    %3332 = vmatprep.subr.mxu0 0.0
    %3333 = vmatpush1.msra.mxu0 0.0
    %3334 = vmatprep.subr.mxu0 0.0
    %3335 = vmatpush1.msra.mxu0 0.0
    %3336 = vmatprep.subr.mxu0 0.0
    %3337 = vmatpush1.msra.mxu0 0.0
    %3338 = vmatprep.subr.mxu0 0.0
    %3339 = vmatpush1.msra.mxu0 0.0
    %3340 = vmatprep.subr.mxu0 0.0
    %3341 = vmatpush1.msra.mxu0 0.0
    %3342 = vmatprep.subr.mxu0 0.0
    %3343 = vmatpush1.msra.mxu0 %v3307
    %3344 = vmatprep.subr.mxu0 0.0
    %3345 = vmatpush2.msra.mxu0 0.0
    %3346 = vmatprep.subr.mxu0 0.0
    %3347 = vmatpush2.msra.mxu0 0.0
    %3348 = vmatprep.subr.mxu0 0.0
    %3349 = vmatpush2.msra.mxu0 0.0
    %3350 = vmatprep.subr.mxu0 0.0
    %3351 = vmatpush2.msra.mxu0 0.0
    %3352 = vmatprep.subr.mxu0 0.0
    %3353 = vmatpush2.msra.mxu0 0.0
    %3354 = vmatprep.subr.mxu0 0.0
    %3355 = vmatpush2.msra.mxu0 0.0
    %3356 = vmatprep.subr.mxu0 0.0
    %3357 = vmatpush2.msra.mxu0 0.0
    %3358 = vmatprep.subr.mxu0 0.0
    %3359 = vmatpush2.msra.mxu0 0.0
    %3360 = vmatprep.subr.mxu0 0.0
    %3361 = vmatpush2.msra.mxu0 0.0
    %3362 = vmatprep.subr.mxu0 0.0
    %3363 = vmatpush2.msra.mxu0 0.0
    %3364 = vmatprep.subr.mxu0 0.0
    %3365 = vmatpush2.msra.mxu0 0.0
    %3366 = vmatprep.subr.mxu0 0.0
    %3367 = vmatpush2.msra.mxu0 0.0
    %3368 = vmatprep.subr.mxu0 0.0
    %3369 = vmatpush2.msra.mxu0 0.0
    %3370 = vmatprep.subr.mxu0 0.0
    %3371 = vmatpush2.msra.mxu0 0.0
    %3372 = vmatprep.subr.mxu0 0.0
    %3373 = vmatpush2.msra.mxu0 0.0
    %3374 = vmatprep.subr.mxu0 0.0
    %3375 = vmatpush2.msra.mxu0 0.0
    %3376 = vmatprep.mubr.f32.mxu0 0.0
    %3377 = vmatmul.mubr.f32.gmra.mxu0 %v3310
    %v3378 = vpop.f32.mrf.mxu0
    %v3379 = vadd.f32 0.0, %v3378
    %v3380 = vpop.f32.mrf.mxu0
    %3381 = vdwg.mxu0
    %3382 = vrot.lane.b32.xlu0 %v2211, 64
    %v3383 = vpop.permute.xlu0 %3382
    %v3386 = vsel %vm384, %v2923, 0
    %3388 = vmatprep.subr.mxu0 0.0
    %3389 = vmatpush1.msra.mxu0 0.0
    %3390 = vmatprep.subr.mxu0 0.0
    %3391 = vmatpush1.msra.mxu0 0.0
    %3392 = vmatprep.subr.mxu0 0.0
    %3393 = vmatpush1.msra.mxu0 0.0
    %3394 = vmatprep.subr.mxu0 0.0
    %3395 = vmatpush1.msra.mxu0 0.0
    %3396 = vmatprep.subr.mxu0 0.0
    %3397 = vmatpush1.msra.mxu0 0.0
    %3398 = vmatprep.subr.mxu0 0.0
    %3399 = vmatpush1.msra.mxu0 0.0
    %3400 = vmatprep.subr.mxu0 0.0
    %3401 = vmatpush1.msra.mxu0 0.0
    %3402 = vmatprep.subr.mxu0 0.0
    %3403 = vmatpush1.msra.mxu0 0.0
    %3404 = vmatprep.subr.mxu0 0.0
    %3405 = vmatpush1.msra.mxu0 0.0
    %3406 = vmatprep.subr.mxu0 0.0
    %3407 = vmatpush1.msra.mxu0 0.0
    %3408 = vmatprep.subr.mxu0 0.0
    %3409 = vmatpush1.msra.mxu0 0.0
    %3410 = vmatprep.subr.mxu0 0.0
    %3411 = vmatpush1.msra.mxu0 0.0
    %3412 = vmatprep.subr.mxu0 0.0
    %3413 = vmatpush1.msra.mxu0 0.0
    %3414 = vmatprep.subr.mxu0 0.0
    %3415 = vmatpush1.msra.mxu0 0.0
    %3416 = vmatprep.subr.mxu0 0.0
    %3417 = vmatpush1.msra.mxu0 0.0
    %3418 = vmatprep.subr.mxu0 0.0
    %3419 = vmatpush1.msra.mxu0 %v3383
    %3420 = vmatprep.subr.mxu0 0.0
    %3421 = vmatpush2.msra.mxu0 0.0
    %3422 = vmatprep.subr.mxu0 0.0
    %3423 = vmatpush2.msra.mxu0 0.0
    %3424 = vmatprep.subr.mxu0 0.0
    %3425 = vmatpush2.msra.mxu0 0.0
    %3426 = vmatprep.subr.mxu0 0.0
    %3427 = vmatpush2.msra.mxu0 0.0
    %3428 = vmatprep.subr.mxu0 0.0
    %3429 = vmatpush2.msra.mxu0 0.0
    %3430 = vmatprep.subr.mxu0 0.0
    %3431 = vmatpush2.msra.mxu0 0.0
    %3432 = vmatprep.subr.mxu0 0.0
    %3433 = vmatpush2.msra.mxu0 0.0
    %3434 = vmatprep.subr.mxu0 0.0
    %3435 = vmatpush2.msra.mxu0 0.0
    %3436 = vmatprep.subr.mxu0 0.0
    %3437 = vmatpush2.msra.mxu0 0.0
    %3438 = vmatprep.subr.mxu0 0.0
    %3439 = vmatpush2.msra.mxu0 0.0
    %3440 = vmatprep.subr.mxu0 0.0
    %3441 = vmatpush2.msra.mxu0 0.0
    %3442 = vmatprep.subr.mxu0 0.0
    %3443 = vmatpush2.msra.mxu0 0.0
    %3444 = vmatprep.subr.mxu0 0.0
    %3445 = vmatpush2.msra.mxu0 0.0
    %3446 = vmatprep.subr.mxu0 0.0
    %3447 = vmatpush2.msra.mxu0 0.0
    %3448 = vmatprep.subr.mxu0 0.0
    %3449 = vmatpush2.msra.mxu0 0.0
    %3450 = vmatprep.subr.mxu0 0.0
    %3451 = vmatpush2.msra.mxu0 0.0
    %3452 = vmatprep.mubr.f32.mxu0 0.0
    %3453 = vmatmul.mubr.f32.gmra.mxu0 %v3386
    %v3454 = vpop.f32.mrf.mxu0
    %v3455 = vadd.f32 0.0, %v3454
    %v3456 = vpop.f32.mrf.mxu0
    %3457 = vdwg.mxu0
    %3458 = vrot.lane.b32.xlu0 %v2213, 64
    %v3459 = vpop.permute.xlu0 %3458
    %v3462 = vsel %vm384, %v2925, 0
    %3464 = vmatprep.subr.mxu0 0.0
    %3465 = vmatpush1.msra.mxu0 0.0
    %3466 = vmatprep.subr.mxu0 0.0
    %3467 = vmatpush1.msra.mxu0 0.0
    %3468 = vmatprep.subr.mxu0 0.0
    %3469 = vmatpush1.msra.mxu0 0.0
    %3470 = vmatprep.subr.mxu0 0.0
    %3471 = vmatpush1.msra.mxu0 0.0
    %3472 = vmatprep.subr.mxu0 0.0
    %3473 = vmatpush1.msra.mxu0 0.0
    %3474 = vmatprep.subr.mxu0 0.0
    %3475 = vmatpush1.msra.mxu0 0.0
    %3476 = vmatprep.subr.mxu0 0.0
    %3477 = vmatpush1.msra.mxu0 0.0
    %3478 = vmatprep.subr.mxu0 0.0
    %3479 = vmatpush1.msra.mxu0 0.0
    %3480 = vmatprep.subr.mxu0 0.0
    %3481 = vmatpush1.msra.mxu0 0.0
    %3482 = vmatprep.subr.mxu0 0.0
    %3483 = vmatpush1.msra.mxu0 0.0
    %3484 = vmatprep.subr.mxu0 0.0
    %3485 = vmatpush1.msra.mxu0 0.0
    %3486 = vmatprep.subr.mxu0 0.0
    %3487 = vmatpush1.msra.mxu0 0.0
    %3488 = vmatprep.subr.mxu0 0.0
    %3489 = vmatpush1.msra.mxu0 0.0
    %3490 = vmatprep.subr.mxu0 0.0
    %3491 = vmatpush1.msra.mxu0 0.0
    %3492 = vmatprep.subr.mxu0 0.0
    %3493 = vmatpush1.msra.mxu0 0.0
    %3494 = vmatprep.subr.mxu0 0.0
    %3495 = vmatpush1.msra.mxu0 %v3459
    %3496 = vmatprep.subr.mxu0 0.0
    %3497 = vmatpush2.msra.mxu0 0.0
    %3498 = vmatprep.subr.mxu0 0.0
    %3499 = vmatpush2.msra.mxu0 0.0
    %3500 = vmatprep.subr.mxu0 0.0
    %3501 = vmatpush2.msra.mxu0 0.0
    %3502 = vmatprep.subr.mxu0 0.0
    %3503 = vmatpush2.msra.mxu0 0.0
    %3504 = vmatprep.subr.mxu0 0.0
    %3505 = vmatpush2.msra.mxu0 0.0
    %3506 = vmatprep.subr.mxu0 0.0
    %3507 = vmatpush2.msra.mxu0 0.0
    %3508 = vmatprep.subr.mxu0 0.0
    %3509 = vmatpush2.msra.mxu0 0.0
    %3510 = vmatprep.subr.mxu0 0.0
    %3511 = vmatpush2.msra.mxu0 0.0
    %3512 = vmatprep.subr.mxu0 0.0
    %3513 = vmatpush2.msra.mxu0 0.0
    %3514 = vmatprep.subr.mxu0 0.0
    %3515 = vmatpush2.msra.mxu0 0.0
    %3516 = vmatprep.subr.mxu0 0.0
    %3517 = vmatpush2.msra.mxu0 0.0
    %3518 = vmatprep.subr.mxu0 0.0
    %3519 = vmatpush2.msra.mxu0 0.0
    %3520 = vmatprep.subr.mxu0 0.0
    %3521 = vmatpush2.msra.mxu0 0.0
    %3522 = vmatprep.subr.mxu0 0.0
    %3523 = vmatpush2.msra.mxu0 0.0
    %3524 = vmatprep.subr.mxu0 0.0
    %3525 = vmatpush2.msra.mxu0 0.0
    %3526 = vmatprep.subr.mxu0 0.0
    %3527 = vmatpush2.msra.mxu0 0.0
    %3528 = vmatprep.mubr.f32.mxu0 0.0
    %3529 = vmatmul.mubr.f32.gmra.mxu0 %v3462
    %v3530 = vpop.f32.mrf.mxu0
    %v3531 = vadd.f32 0.0, %v3530
    %v3532 = vpop.f32.mrf.mxu0
    %3533 = vdwg.mxu0
    %3535 = vrot.lane.b32.xlu0 %v3075, 8
    %v3536 = vpop.permute.xlu0 %3535
    %3539 = vrot.lane.b32.xlu0 %v3151, 16
    %v3540 = vpop.permute.xlu0 %3539
    %3543 = vrot.lane.b32.xlu0 %v3227, 24
    %v3544 = vpop.permute.xlu0 %3543
    %v3546 = vsel %vm384, %v2999, %v3536
    %v3547 = vsel %vm1716, %v3546, %v3540
    %v3548 = vsel %vm1718, %v3547, %v3544
    %3550 = vrot.lane.b32.xlu0 %v3379, 8
    %v3551 = vpop.permute.xlu0 %3550
    %3554 = vrot.lane.b32.xlu0 %v3455, 16
    %v3555 = vpop.permute.xlu0 %3554
    %3558 = vrot.lane.b32.xlu0 %v3531, 24
    %v3559 = vpop.permute.xlu0 %3558
    %v3561 = vsel %vm384, %v3303, %v3551
    %v3562 = vsel %vm1716, %v3561, %v3555
    %v3563 = vsel %vm1718, %v3562, %v3559
    %s3564 = scalar_lea.vmem %s5, 32
    %v3565 = vld [vmem:[%s3564] sm:$0xff]
    %v3566 = vld [vmem:[%s3564 + $0x8] sm:$0xff]
    %v3567 = vld [vmem:[%s3564 + $0x10] sm:$0xff]
    %v3568 = vld [vmem:[%s3564 + $0x18] sm:$0xff]
    %v3570 = vsel %vm67, %v3548, 0
    %v3573 = vsel %vm67, %v3563, 0
    %3575 = vmatprep.subr.mxu0 0.0
    %3576 = vmatpush1.msra.mxu0 0.0
    %3577 = vmatprep.subr.mxu0 0.0
    %3578 = vmatpush1.msra.mxu0 0.0
    %3579 = vmatprep.subr.mxu0 0.0
    %3580 = vmatpush1.msra.mxu0 0.0
    %3581 = vmatprep.subr.mxu0 0.0
    %3582 = vmatpush1.msra.mxu0 0.0
    %3583 = vmatprep.subr.mxu0 0.0
    %3584 = vmatpush1.msra.mxu0 0.0
    %3585 = vmatprep.subr.mxu0 0.0
    %3586 = vmatpush1.msra.mxu0 0.0
    %3587 = vmatprep.subr.mxu0 0.0
    %3588 = vmatpush1.msra.mxu0 0.0
    %3589 = vmatprep.subr.mxu0 0.0
    %3590 = vmatpush1.msra.mxu0 0.0
    %3591 = vmatprep.subr.mxu0 0.0
    %3592 = vmatpush1.msra.mxu0 0.0
    %3593 = vmatprep.subr.mxu0 0.0
    %3594 = vmatpush1.msra.mxu0 0.0
    %3595 = vmatprep.subr.mxu0 0.0
    %3596 = vmatpush1.msra.mxu0 0.0
    %3597 = vmatprep.subr.mxu0 0.0
    %3598 = vmatpush1.msra.mxu0 0.0
    %3599 = vmatprep.subr.mxu0 0.0
    %3600 = vmatpush1.msra.mxu0 %v3568
    %3601 = vmatprep.subr.mxu0 0.0
    %3602 = vmatpush1.msra.mxu0 %v3567
    %3603 = vmatprep.subr.mxu0 0.0
    %3604 = vmatpush1.msra.mxu0 %v3566
    %3605 = vmatprep.subr.mxu0 0.0
    %3606 = vmatpush1.msra.mxu0 %v3565
    %3607 = vmatprep.subr.mxu0 0.0
    %3608 = vmatpush2.msra.mxu0 0.0
    %3609 = vmatprep.subr.mxu0 0.0
    %3610 = vmatpush2.msra.mxu0 0.0
    %3611 = vmatprep.subr.mxu0 0.0
    %3612 = vmatpush2.msra.mxu0 0.0
    %3613 = vmatprep.subr.mxu0 0.0
    %3614 = vmatpush2.msra.mxu0 0.0
    %3615 = vmatprep.subr.mxu0 0.0
    %3616 = vmatpush2.msra.mxu0 0.0
    %3617 = vmatprep.subr.mxu0 0.0
    %3618 = vmatpush2.msra.mxu0 0.0
    %3619 = vmatprep.subr.mxu0 0.0
    %3620 = vmatpush2.msra.mxu0 0.0
    %3621 = vmatprep.subr.mxu0 0.0
    %3622 = vmatpush2.msra.mxu0 0.0
    %3623 = vmatprep.subr.mxu0 0.0
    %3624 = vmatpush2.msra.mxu0 0.0
    %3625 = vmatprep.subr.mxu0 0.0
    %3626 = vmatpush2.msra.mxu0 0.0
    %3627 = vmatprep.subr.mxu0 0.0
    %3628 = vmatpush2.msra.mxu0 0.0
    %3629 = vmatprep.subr.mxu0 0.0
    %3630 = vmatpush2.msra.mxu0 0.0
    %3631 = vmatprep.subr.mxu0 0.0
    %3632 = vmatpush2.msra.mxu0 0.0
    %3633 = vmatprep.subr.mxu0 0.0
    %3634 = vmatpush2.msra.mxu0 0.0
    %3635 = vmatprep.subr.mxu0 0.0
    %3636 = vmatpush2.msra.mxu0 0.0
    %3637 = vmatprep.subr.mxu0 0.0
    %3638 = vmatpush2.msra.mxu0 0.0
    %3639 = vmatprep.mubr.f32.mxu0 0.0
    %3640 = vmatmul.mubr.f32.gmra.mxu0 %v3570
    %v3641 = vpop.f32.mrf.mxu0
    %v3642 = vadd.f32 0.0, %v3641
    %v3643 = vpop.f32.mrf.mxu0
    %3644 = vmatprep.mubr.f32.mxu0 0.0
    %3645 = vmatmul.mubr.f32.gmra.mxu0 %v3573
    %v3646 = vpop.f32.mrf.mxu0
    %v3647 = vadd.f32 0.0, %v3646
    %v3648 = vpop.f32.mrf.mxu0
    %3649 = vdwg.mxu0
    %v3650 = vadd.f32 %v2066, %v3642
    %v3651 = vadd.f32 %v2067, %v3647
    %s3652 = scalar_lea.vmem %s8, 1
    %v3653 = vld [vmem:[%s3652] sm:$0x1]
    %s3654 = scalar_lea.vmem %s9, 1
    %v3655 = vld [vmem:[%s3654] sm:$0x1]
    %v3656 = vsel %vm67, %v3650, 0.0
    %3657 = vadd.xlane.f32.xlu0 %v3656
    %v3658 = vpop.xlane.xlu0 %3657
    %v3659 = vsel %vm67, %v3651, 0.0
    %3660 = vadd.xlane.f32.xlu0 %v3659
    %v3661 = vpop.xlane.xlu0 %3660
    %v3662 = vmul.f32 %v3658, %v74
    %v3663 = vmul.f32 %v3661, %v74
    %v3664 = vsub.f32 %v3650, %v3662
    %v3665 = vsub.f32 %v3651, %v3663
    %v3666 = vmul.f32 %v3664, %v3664
    %v3667 = vmul.f32 %v3665, %v3665
    %v3668 = vsel %vm67, %v3666, 0.0
    %3669 = vadd.xlane.f32.xlu0 %v3668
    %v3670 = vpop.xlane.xlu0 %3669
    %v3671 = vsel %vm67, %v3667, 0.0
    %3672 = vadd.xlane.f32.xlu0 %v3671
    %v3673 = vpop.xlane.xlu0 %3672
    %v3674 = vmul.f32 %v3670, %v74
    %v3675 = vmul.f32 %v3673, %v74
    %v3676 = vadd.f32 %v3674, 1e-05
    %v3677 = vadd.f32 %v3675, 1e-05
    %v3678 = vrsqrt.pop %v3676
    %v3679 = vrsqrt.pop %v3677
    %v3680 = vmul.f32 %v3664, %v3678
    %v3681 = vmul.f32 %v3665, %v3679
    %v3683 = vlaneseq
    %v3684 = vshrl.u32 %v3683, 7
    %v3685 = vsub.s32 0, %v3684
    %v3686 = vrot.slane %v3653, %v3685
    %v3688 = vmul.f32 %v3680, %v3686
    %v3689 = vmul.f32 %v3681, %v3686
    %v3691 = vlaneseq
    %v3692 = vshrl.u32 %v3691, 7
    %v3693 = vsub.s32 0, %v3692
    %v3694 = vrot.slane %v3655, %v3693
    %v3696 = vadd.f32 %v3688, %v3694
    %v3697 = vadd.f32 %v3689, %v3694
    %s3698 = scalar_lea.vmem %s10, 32
    %v3699 = vld [vmem:[%s3698] sm:$0xff]
    %v3700 = vld [vmem:[%s3698 + $0x8] sm:$0xff]
    %v3701 = vld [vmem:[%s3698 + $0x10] sm:$0xff]
    %v3702 = vld [vmem:[%s3698 + $0x18] sm:$0xff]
    %s3703 = scalar_lea.vmem %s11, 1
    %v3704 = vld [vmem:[%s3703] sm:$0x1]
    %v3706 = vlaneseq
    %v3707 = vshrl.u32 %v3706, 7
    %v3708 = vsub.s32 0, %v3707
    %v3709 = vrot.slane %v3704, %v3708
    %v3712 = vsel %vm67, %v3696, 0
    %v3715 = vsel %vm67, %v3697, 0
    %3717 = vmatprep.subr.mxu0 0.0
    %3718 = vmatpush1.msra.mxu0 0.0
    %3719 = vmatprep.subr.mxu0 0.0
    %3720 = vmatpush1.msra.mxu0 0.0
    %3721 = vmatprep.subr.mxu0 0.0
    %3722 = vmatpush1.msra.mxu0 0.0
    %3723 = vmatprep.subr.mxu0 0.0
    %3724 = vmatpush1.msra.mxu0 0.0
    %3725 = vmatprep.subr.mxu0 0.0
    %3726 = vmatpush1.msra.mxu0 0.0
    %3727 = vmatprep.subr.mxu0 0.0
    %3728 = vmatpush1.msra.mxu0 0.0
    %3729 = vmatprep.subr.mxu0 0.0
    %3730 = vmatpush1.msra.mxu0 0.0
    %3731 = vmatprep.subr.mxu0 0.0
    %3732 = vmatpush1.msra.mxu0 0.0
    %3733 = vmatprep.subr.mxu0 0.0
    %3734 = vmatpush1.msra.mxu0 0.0
    %3735 = vmatprep.subr.mxu0 0.0
    %3736 = vmatpush1.msra.mxu0 0.0
    %3737 = vmatprep.subr.mxu0 0.0
    %3738 = vmatpush1.msra.mxu0 0.0
    %3739 = vmatprep.subr.mxu0 0.0
    %3740 = vmatpush1.msra.mxu0 0.0
    %3741 = vmatprep.subr.mxu0 0.0
    %3742 = vmatpush1.msra.mxu0 %v3702
    %3743 = vmatprep.subr.mxu0 0.0
    %3744 = vmatpush1.msra.mxu0 %v3701
    %3745 = vmatprep.subr.mxu0 0.0
    %3746 = vmatpush1.msra.mxu0 %v3700
    %3747 = vmatprep.subr.mxu0 0.0
    %3748 = vmatpush1.msra.mxu0 %v3699
    %3749 = vmatprep.subr.mxu0 0.0
    %3750 = vmatpush2.msra.mxu0 0.0
    %3751 = vmatprep.subr.mxu0 0.0
    %3752 = vmatpush2.msra.mxu0 0.0
    %3753 = vmatprep.subr.mxu0 0.0
    %3754 = vmatpush2.msra.mxu0 0.0
    %3755 = vmatprep.subr.mxu0 0.0
    %3756 = vmatpush2.msra.mxu0 0.0
    %3757 = vmatprep.subr.mxu0 0.0
    %3758 = vmatpush2.msra.mxu0 0.0
    %3759 = vmatprep.subr.mxu0 0.0
    %3760 = vmatpush2.msra.mxu0 0.0
    %3761 = vmatprep.subr.mxu0 0.0
    %3762 = vmatpush2.msra.mxu0 0.0
    %3763 = vmatprep.subr.mxu0 0.0
    %3764 = vmatpush2.msra.mxu0 0.0
    %3765 = vmatprep.subr.mxu0 0.0
    %3766 = vmatpush2.msra.mxu0 0.0
    %3767 = vmatprep.subr.mxu0 0.0
    %3768 = vmatpush2.msra.mxu0 0.0
    %3769 = vmatprep.subr.mxu0 0.0
    %3770 = vmatpush2.msra.mxu0 0.0
    %3771 = vmatprep.subr.mxu0 0.0
    %3772 = vmatpush2.msra.mxu0 0.0
    %3773 = vmatprep.subr.mxu0 0.0
    %3774 = vmatpush2.msra.mxu0 0.0
    %3775 = vmatprep.subr.mxu0 0.0
    %3776 = vmatpush2.msra.mxu0 0.0
    %3777 = vmatprep.subr.mxu0 0.0
    %3778 = vmatpush2.msra.mxu0 0.0
    %3779 = vmatprep.subr.mxu0 0.0
    %3780 = vmatpush2.msra.mxu0 0.0
    %3781 = vmatprep.mubr.f32.mxu0 0.0
    %3782 = vmatmul.mubr.f32.gmra.mxu0 %v3712
    %v3783 = vpop.f32.mrf.mxu0
    %v3784 = vadd.f32 %v3709, %v3783
    %v3785 = vpop.f32.mrf.mxu0
    %3786 = vmatprep.mubr.f32.mxu0 0.0
    %3787 = vmatmul.mubr.f32.gmra.mxu0 %v3715
    %v3788 = vpop.f32.mrf.mxu0
    %v3789 = vadd.f32 %v3709, %v3788
    %v3790 = vpop.f32.mrf.mxu0
    %3791 = vdwg.mxu0
    %v3792 = vmul.f32 %v3784, 0.5
    %v3793 = vmul.f32 %v3789, 0.5
    %v3794 = vmul.f32 %v3784, 0.70710677
    %v3795 = vmul.f32 %v3789, 0.70710677
    %v3796 = verf.f32.pop %v3794
    %v3797 = verf.f32.pop %v3795
    %v3798 = vadd.f32 %v3796, 1.0
    %v3799 = vadd.f32 %v3797, 1.0
    %v3800 = vmul.f32 %v3792, %v3798
    %v3801 = vmul.f32 %v3793, %v3799
    %s3802 = scalar_lea.vmem %s12, 128
    %v3803 = vld [vmem:[%s3802] sm:$0xff]
    %v3804 = vld [vmem:[%s3802 + $0x8] sm:$0xff]
    %v3805 = vld [vmem:[%s3802 + $0x10] sm:$0xff]
    %v3806 = vld [vmem:[%s3802 + $0x18] sm:$0xff]
    %v3807 = vld [vmem:[%s3802 + $0x20] sm:$0xff]
    %v3808 = vld [vmem:[%s3802 + $0x28] sm:$0xff]
    %v3809 = vld [vmem:[%s3802 + $0x30] sm:$0xff]
    %v3810 = vld [vmem:[%s3802 + $0x38] sm:$0xff]
    %v3811 = vld [vmem:[%s3802 + $0x40] sm:$0xff]
    %v3812 = vld [vmem:[%s3802 + $0x48] sm:$0xff]
    %v3813 = vld [vmem:[%s3802 + $0x50] sm:$0xff]
    %v3814 = vld [vmem:[%s3802 + $0x58] sm:$0xff]
    %v3815 = vld [vmem:[%s3802 + $0x60] sm:$0xff]
    %v3816 = vld [vmem:[%s3802 + $0x68] sm:$0xff]
    %v3817 = vld [vmem:[%s3802 + $0x70] sm:$0xff]
    %v3818 = vld [vmem:[%s3802 + $0x78] sm:$0xff]
    %s3819 = scalar_lea.vmem %s13, 1
    %v3820 = vld [vmem:[%s3819] sm:$0x1]
    %v3822 = vlaneseq
    %v3823 = vshrl.u32 %v3822, 7
    %v3824 = vsub.s32 0, %v3823
    %v3825 = vrot.slane %v3820, %v3824
    %3827 = vmatprep.subr.mxu0 0.0
    %3828 = vmatpush1.msra.mxu0 %v3818
    %3829 = vmatprep.subr.mxu0 0.0
    %3830 = vmatpush1.msra.mxu0 %v3817
    %3831 = vmatprep.subr.mxu0 0.0
    %3832 = vmatpush1.msra.mxu0 %v3816
    %3833 = vmatprep.subr.mxu0 0.0
    %3834 = vmatpush1.msra.mxu0 %v3815
    %3835 = vmatprep.subr.mxu0 0.0
    %3836 = vmatpush1.msra.mxu0 %v3814
    %3837 = vmatprep.subr.mxu0 0.0
    %3838 = vmatpush1.msra.mxu0 %v3813
    %3839 = vmatprep.subr.mxu0 0.0
    %3840 = vmatpush1.msra.mxu0 %v3812
    %3841 = vmatprep.subr.mxu0 0.0
    %3842 = vmatpush1.msra.mxu0 %v3811
    %3843 = vmatprep.subr.mxu0 0.0
    %3844 = vmatpush1.msra.mxu0 %v3810
    %3845 = vmatprep.subr.mxu0 0.0
    %3846 = vmatpush1.msra.mxu0 %v3809
    %3847 = vmatprep.subr.mxu0 0.0
    %3848 = vmatpush1.msra.mxu0 %v3808
    %3849 = vmatprep.subr.mxu0 0.0
    %3850 = vmatpush1.msra.mxu0 %v3807
    %3851 = vmatprep.subr.mxu0 0.0
    %3852 = vmatpush1.msra.mxu0 %v3806
    %3853 = vmatprep.subr.mxu0 0.0
    %3854 = vmatpush1.msra.mxu0 %v3805
    %3855 = vmatprep.subr.mxu0 0.0
    %3856 = vmatpush1.msra.mxu0 %v3804
    %3857 = vmatprep.subr.mxu0 0.0
    %3858 = vmatpush1.msra.mxu0 %v3803
    %3859 = vmatprep.subr.mxu0 0.0
    %3860 = vmatpush2.msra.mxu0 0.0
    %3861 = vmatprep.subr.mxu0 0.0
    %3862 = vmatpush2.msra.mxu0 0.0
    %3863 = vmatprep.subr.mxu0 0.0
    %3864 = vmatpush2.msra.mxu0 0.0
    %3865 = vmatprep.subr.mxu0 0.0
    %3866 = vmatpush2.msra.mxu0 0.0
    %3867 = vmatprep.subr.mxu0 0.0
    %3868 = vmatpush2.msra.mxu0 0.0
    %3869 = vmatprep.subr.mxu0 0.0
    %3870 = vmatpush2.msra.mxu0 0.0
    %3871 = vmatprep.subr.mxu0 0.0
    %3872 = vmatpush2.msra.mxu0 0.0
    %3873 = vmatprep.subr.mxu0 0.0
    %3874 = vmatpush2.msra.mxu0 0.0
    %3875 = vmatprep.subr.mxu0 0.0
    %3876 = vmatpush2.msra.mxu0 0.0
    %3877 = vmatprep.subr.mxu0 0.0
    %3878 = vmatpush2.msra.mxu0 0.0
    %3879 = vmatprep.subr.mxu0 0.0
    %3880 = vmatpush2.msra.mxu0 0.0
    %3881 = vmatprep.subr.mxu0 0.0
    %3882 = vmatpush2.msra.mxu0 0.0
    %3883 = vmatprep.subr.mxu0 0.0
    %3884 = vmatpush2.msra.mxu0 0.0
    %3885 = vmatprep.subr.mxu0 0.0
    %3886 = vmatpush2.msra.mxu0 0.0
    %3887 = vmatprep.subr.mxu0 0.0
    %3888 = vmatpush2.msra.mxu0 0.0
    %3889 = vmatprep.subr.mxu0 0.0
    %3890 = vmatpush2.msra.mxu0 0.0
    %3891 = vmatprep.mubr.f32.mxu0 0.0
    %3892 = vmatmul.mubr.f32.gmra.mxu0 %v3800
    %v3893 = vpop.f32.mrf.mxu0
    %v3894 = vadd.f32 %v3825, %v3893
    %v3895 = vpop.f32.mrf.mxu0
    %3896 = vmatprep.mubr.f32.mxu0 0.0
    %3897 = vmatmul.mubr.f32.gmra.mxu0 %v3801
    %v3898 = vpop.f32.mrf.mxu0
    %v3899 = vadd.f32 %v3825, %v3898
    %v3900 = vpop.f32.mrf.mxu0
    %3901 = vdwg.mxu0
    %v3902 = vadd.f32 %v3650, %v3894
    %v3903 = vadd.f32 %v3651, %v3899
    %v3904 = vld [vmem:[%s16] sm:$0xff]
    %v3905 = vld [vmem:[%s16 + $0x8] sm:$0xff]
    %v3906 = vld [vmem:[%s16 + $0x10] sm:$0xff]
    %v3907 = vld [vmem:[%s16 + $0x18] sm:$0xff]
    %v3908 = vld [vmem:[%s17] sm:$0x1]
    %v3910 = vlaneseq
    %v3911 = vshrl.u32 %v3910, 7
    %v3912 = vsub.s32 0, %v3911
    %v3913 = vrot.slane %v3908, %v3912
    %v3916 = vsel %vm67, %v3902, 0
    %v3919 = vsel %vm67, %v3903, 0
    %3921 = vmatprep.subr.mxu0 0.0
    %3922 = vmatpush1.msra.mxu0 0.0
    %3923 = vmatprep.subr.mxu0 0.0
    %3924 = vmatpush1.msra.mxu0 0.0
    %3925 = vmatprep.subr.mxu0 0.0
    %3926 = vmatpush1.msra.mxu0 0.0
    %3927 = vmatprep.subr.mxu0 0.0
    %3928 = vmatpush1.msra.mxu0 0.0
    %3929 = vmatprep.subr.mxu0 0.0
    %3930 = vmatpush1.msra.mxu0 0.0
    %3931 = vmatprep.subr.mxu0 0.0
    %3932 = vmatpush1.msra.mxu0 0.0
    %3933 = vmatprep.subr.mxu0 0.0
    %3934 = vmatpush1.msra.mxu0 0.0
    %3935 = vmatprep.subr.mxu0 0.0
    %3936 = vmatpush1.msra.mxu0 0.0
    %3937 = vmatprep.subr.mxu0 0.0
    %3938 = vmatpush1.msra.mxu0 0.0
    %3939 = vmatprep.subr.mxu0 0.0
    %3940 = vmatpush1.msra.mxu0 0.0
    %3941 = vmatprep.subr.mxu0 0.0
    %3942 = vmatpush1.msra.mxu0 0.0
    %3943 = vmatprep.subr.mxu0 0.0
    %3944 = vmatpush1.msra.mxu0 0.0
    %3945 = vmatprep.subr.mxu0 0.0
    %3946 = vmatpush1.msra.mxu0 %v3907
    %3947 = vmatprep.subr.mxu0 0.0
    %3948 = vmatpush1.msra.mxu0 %v3906
    %3949 = vmatprep.subr.mxu0 0.0
    %3950 = vmatpush1.msra.mxu0 %v3905
    %3951 = vmatprep.subr.mxu0 0.0
    %3952 = vmatpush1.msra.mxu0 %v3904
    %3953 = vmatprep.subr.mxu0 0.0
    %3954 = vmatpush2.msra.mxu0 0.0
    %3955 = vmatprep.subr.mxu0 0.0
    %3956 = vmatpush2.msra.mxu0 0.0
    %3957 = vmatprep.subr.mxu0 0.0
    %3958 = vmatpush2.msra.mxu0 0.0
    %3959 = vmatprep.subr.mxu0 0.0
    %3960 = vmatpush2.msra.mxu0 0.0
    %3961 = vmatprep.subr.mxu0 0.0
    %3962 = vmatpush2.msra.mxu0 0.0
    %3963 = vmatprep.subr.mxu0 0.0
    %3964 = vmatpush2.msra.mxu0 0.0
    %3965 = vmatprep.subr.mxu0 0.0
    %3966 = vmatpush2.msra.mxu0 0.0
    %3967 = vmatprep.subr.mxu0 0.0
    %3968 = vmatpush2.msra.mxu0 0.0
    %3969 = vmatprep.subr.mxu0 0.0
    %3970 = vmatpush2.msra.mxu0 0.0
    %3971 = vmatprep.subr.mxu0 0.0
    %3972 = vmatpush2.msra.mxu0 0.0
    %3973 = vmatprep.subr.mxu0 0.0
    %3974 = vmatpush2.msra.mxu0 0.0
    %3975 = vmatprep.subr.mxu0 0.0
    %3976 = vmatpush2.msra.mxu0 0.0
    %3977 = vmatprep.subr.mxu0 0.0
    %3978 = vmatpush2.msra.mxu0 0.0
    %3979 = vmatprep.subr.mxu0 0.0
    %3980 = vmatpush2.msra.mxu0 0.0
    %3981 = vmatprep.subr.mxu0 0.0
    %3982 = vmatpush2.msra.mxu0 0.0
    %3983 = vmatprep.subr.mxu0 0.0
    %3984 = vmatpush2.msra.mxu0 0.0
    %3985 = vmatprep.mubr.f32.mxu0 0.0
    %3986 = vmatmul.mubr.f32.gmra.mxu0 %v3916
    %v3987 = vpop.f32.mrf.mxu0
    %v3988 = vadd.f32 %v3913, %v3987
    %v3989 = vpop.f32.mrf.mxu0
    %3990 = vmatprep.mubr.f32.mxu0 0.0
    %3991 = vmatmul.mubr.f32.gmra.mxu0 %v3919
    %v3992 = vpop.f32.mrf.mxu0
    %v3993 = vadd.f32 %v3913, %v3992
    %v3994 = vpop.f32.mrf.mxu0
    %3995 = vdwg.mxu0
    %3996 = vst [vmem:[#allocation4] sm:$0xff] %v3988
    %3997 = vst [vmem:[#allocation4 + $0x8] sm:$0xff] %v3993
    %v3998 = vrot.slane %v3903, 7
    %v4000 = vsel %vm127, %v3902, %v3998
    %v4001 = vld [vmem:[%s14] sm:$0xff]
    %v4002 = vld [vmem:[%s14 + $0x8] sm:$0xff]
    %v4003 = vld [vmem:[%s14 + $0x10] sm:$0xff]
    %v4004 = vld [vmem:[%s14 + $0x18] sm:$0xff]
    %v4005 = vld [vmem:[%s15] sm:$0x1]
    %v4007 = vlaneseq
    %v4008 = vshrl.u32 %v4007, 7
    %v4009 = vsub.s32 0, %v4008
    %v4010 = vrot.slane %v4005, %v4009
    %v4013 = vsel %vm67, %v4000, 0
    %4015 = vmatprep.subr.mxu0 0.0
    %4016 = vmatpush1.msra.mxu0 0.0
    %4017 = vmatprep.subr.mxu0 0.0
    %4018 = vmatpush1.msra.mxu0 0.0
    %4019 = vmatprep.subr.mxu0 0.0
    %4020 = vmatpush1.msra.mxu0 0.0
    %4021 = vmatprep.subr.mxu0 0.0
    %4022 = vmatpush1.msra.mxu0 0.0
    %4023 = vmatprep.subr.mxu0 0.0
    %4024 = vmatpush1.msra.mxu0 0.0
    %4025 = vmatprep.subr.mxu0 0.0
    %4026 = vmatpush1.msra.mxu0 0.0
    %4027 = vmatprep.subr.mxu0 0.0
    %4028 = vmatpush1.msra.mxu0 0.0
    %4029 = vmatprep.subr.mxu0 0.0
    %4030 = vmatpush1.msra.mxu0 0.0
    %4031 = vmatprep.subr.mxu0 0.0
    %4032 = vmatpush1.msra.mxu0 0.0
    %4033 = vmatprep.subr.mxu0 0.0
    %4034 = vmatpush1.msra.mxu0 0.0
    %4035 = vmatprep.subr.mxu0 0.0
    %4036 = vmatpush1.msra.mxu0 0.0
    %4037 = vmatprep.subr.mxu0 0.0
    %4038 = vmatpush1.msra.mxu0 0.0
    %4039 = vmatprep.subr.mxu0 0.0
    %4040 = vmatpush1.msra.mxu0 %v4004
    %4041 = vmatprep.subr.mxu0 0.0
    %4042 = vmatpush1.msra.mxu0 %v4003
    %4043 = vmatprep.subr.mxu0 0.0
    %4044 = vmatpush1.msra.mxu0 %v4002
    %4045 = vmatprep.subr.mxu0 0.0
    %4046 = vmatpush1.msra.mxu0 %v4001
    %4047 = vmatprep.subr.mxu0 0.0
    %4048 = vmatpush2.msra.mxu0 0.0
    %4049 = vmatprep.subr.mxu0 0.0
    %4050 = vmatpush2.msra.mxu0 0.0
    %4051 = vmatprep.subr.mxu0 0.0
    %4052 = vmatpush2.msra.mxu0 0.0
    %4053 = vmatprep.subr.mxu0 0.0
    %4054 = vmatpush2.msra.mxu0 0.0
    %4055 = vmatprep.subr.mxu0 0.0
    %4056 = vmatpush2.msra.mxu0 0.0
    %4057 = vmatprep.subr.mxu0 0.0
    %4058 = vmatpush2.msra.mxu0 0.0
    %4059 = vmatprep.subr.mxu0 0.0
    %4060 = vmatpush2.msra.mxu0 0.0
    %4061 = vmatprep.subr.mxu0 0.0
    %4062 = vmatpush2.msra.mxu0 0.0
    %4063 = vmatprep.subr.mxu0 0.0
    %4064 = vmatpush2.msra.mxu0 0.0
    %4065 = vmatprep.subr.mxu0 0.0
    %4066 = vmatpush2.msra.mxu0 0.0
    %4067 = vmatprep.subr.mxu0 0.0
    %4068 = vmatpush2.msra.mxu0 0.0
    %4069 = vmatprep.subr.mxu0 0.0
    %4070 = vmatpush2.msra.mxu0 0.0
    %4071 = vmatprep.subr.mxu0 0.0
    %4072 = vmatpush2.msra.mxu0 0.0
    %4073 = vmatprep.subr.mxu0 0.0
    %4074 = vmatpush2.msra.mxu0 0.0
    %4075 = vmatprep.subr.mxu0 0.0
    %4076 = vmatpush2.msra.mxu0 0.0
    %4077 = vmatprep.subr.mxu0 0.0
    %4078 = vmatpush2.msra.mxu0 0.0
    %4079 = vmatprep.mubr.f32.mxu0 0.0
    %4080 = vmatmul.mubr.f32.gmra.mxu0 %v4013
    %v4081 = vpop.f32.mrf.mxu0
    %v4082 = vadd.f32 %v4010, %v4081
    %v4083 = vpop.f32.mrf.mxu0
    %4084 = vdwg.mxu0
    %4085 = vst [vmem:[#allocation2] sm:$0x3] %v4082
    // Predicated region
    $region74: #{tpu_custom_call.1} parent=1 // pred_check
      _
    $region75: #{tpu_custom_call.1} parent=1 // pred_check_branch
      %4087 = sbr.rel (0) target = $region77
    $region76: #{tpu_custom_call.1} parent=1 // pred_region
      %s4089 = ssub.s32 32, 32
      %4090 = vsyncadd [#allocation3], %s4089
      %s4092 = sshll.u32 [#allocation2], 4
      %s4093 = int_to_ptr.vmem [resolvable:$true] %s4092
      %4095 = dma.vmem_to_hbm [thread:$0]  %s4093, 32, %s18, [#allocation3]
    $region77: #{tpu_custom_call.1} parent=1 // pred_fallthru
      _
    // Predicated region
    $region78: #{tpu_custom_call.1} parent=1 // pred_check
      _
    $region79: #{tpu_custom_call.1} parent=1 // pred_check_branch
      %4097 = sbr.rel (0) target = $region81
    $region80: #{tpu_custom_call.1} parent=1 // pred_region
      %s4099 = ssub.s32 256, 256
      %4100 = vsyncadd [#allocation5], %s4099
      %s4101 = sshll.u32 [#allocation4], 4
      %s4102 = int_to_ptr.vmem [resolvable:$true] %s4101
      %4107 = dma.vmem_to_hbm [thread:$0]  %s4102, 256, %s19, [#allocation5], 128, 128, 8
    $region81: #{tpu_custom_call.1} parent=1 // pred_fallthru
      _
    // Predicated region
    $region82: #{tpu_custom_call.1} parent=1 // pred_check
      _
    $region83: #{tpu_custom_call.1} parent=1 // pred_check_branch
      %4109 = sbr.rel (0) target = $region85
    $region84: #{tpu_custom_call.1} parent=1 // pred_region
      %4110 = dma.done [#allocation3], 32
    $region85: #{tpu_custom_call.1} parent=1 // pred_fallthru
      _
    // Predicated region
    $region86: #{tpu_custom_call.1} parent=1 // pred_check
      _
    $region87: #{tpu_custom_call.1} parent=1 // pred_check_branch
      %4112 = sbr.rel (0) target = $region89
    $region88: #{tpu_custom_call.1} parent=1 // pred_region
      %4113 = dma.done [#allocation5], 256
    $region89: #{tpu_custom_call.1} parent=1 // pred_fallthru
      _
    %4114 = vsyncpa [#allocation3], 1
    %4115 = vsyncpa [#allocation5], 1

</llo_original>
